<compile_context>
chip_gen: v7x
topology: tpu7x:2x2x1
jax: 0.10.0
libtpu: 0.0.40
codegen_flags: <defaults>
</compile_context>

<pallas_src>
import functools

import jax
import jax.numpy as jnp
from jax.experimental import pallas as pl
from jax.experimental.pallas import tpu as pltpu

_EPS = 1e-5
_MXU_DTYPE = jnp.bfloat16      # MXU operand dtype; accumulation stays f32.


def _conv3x3_im2col(src, p_ref, w_ref, H, W, C):
    """src: (H+2, W+2, C) zero-padded activation (f32).

    Builds im2col patches (H*W, 9*C) in the bf16 scratch `p_ref` and returns the
    (H*W, Cout) f32 conv result as a single MXU matmul (K = 9*C).
    """
    k = 0
    for ky in range(3):
        for kx in range(3):
            patch = src[ky:ky + H, kx:kx + W, :].reshape(H * W, C)
            p_ref[:, k * C:(k + 1) * C] = patch.astype(p_ref.dtype)
            k += 1
    return jnp.dot(p_ref[...], w_ref[...], preferred_element_type=jnp.float32)


def _conv1_kernel(xp_ref, w_ref, y_ref, stats_ref, p_ref):
    # xp_ref   : (1, H+2, W+2, Cin)  zero-padded input image, f32
    # w_ref    : (9*Cin, Cout)       im2col conv1 weights, bf16
    # y_ref    : (1, H*W, Cout)      raw conv1 output, f32
    # stats_ref: (1, 2, Cout)        per-image [sum, sum_of_squares] over H*W
    # p_ref    : (H*W, 9*Cin)        bf16 im2col scratch
    _, Hp, Wp, Cin = xp_ref.shape
    H, W = Hp - 2, Wp - 2

    acc = _conv3x3_im2col(xp_ref[0], p_ref, w_ref, H, W, Cin)      # (H*W, Cout) f32
    y_ref[0] = acc

    stats_ref[0, 0:1, :] = jnp.sum(acc, axis=0, keepdims=True)
    stats_ref[0, 1:2, :] = jnp.sum(acc * acc, axis=0, keepdims=True)


def _bn1_conv2_kernel(y1_ref, w_ref, sc_ref, sh_ref, y2_ref, stats_ref,
                      h1p_ref, p_ref):
    # y1_ref   : (1, H*W, Cout)      raw conv1 output, f32
    # w_ref    : (9*Cout, Cout)      im2col conv2 weights, bf16
    # sc_ref   : (1, Cout)           BN1 scale = gamma * rsqrt(var + eps)
    # sh_ref   : (1, Cout)           BN1 shift = beta - mean * scale
    # y2_ref   : (1, H*W, Cout)      raw conv2 output, f32
    # stats_ref: (1, 2, Cout)        per-image [sum, sum_of_squares]
    # h1p_ref  : (H+2, W+2, Cout)    f32 scratch: zero-padded BN1+ReLU activation
    # p_ref    : (H*W, 9*Cout)       bf16 im2col scratch
    Cout = w_ref.shape[1]
    Hp = h1p_ref.shape[0]
    H, W = Hp - 2, h1p_ref.shape[1] - 2

    # BN1 (affine pre-folded in the wrapper) + ReLU.
    h1 = jnp.maximum(y1_ref[0] * sc_ref[...] + sh_ref[...], 0.0)   # (H*W, Cout)

    # Re-pad for conv2: clear only the four border strips, overwrite the interior.
    h1p_ref[0:1, :, :] = jnp.zeros((1, W + 2, Cout), h1p_ref.dtype)
    h1p_ref[H + 1:H + 2, :, :] = jnp.zeros((1, W + 2, Cout), h1p_ref.dtype)
    h1p_ref[:, 0:1, :] = jnp.zeros((H + 2, 1, Cout), h1p_ref.dtype)
    h1p_ref[:, W + 1:W + 2, :] = jnp.zeros((H + 2, 1, Cout), h1p_ref.dtype)
    h1p_ref[1:H + 1, 1:W + 1, :] = h1.reshape(H, W, Cout)

    acc = _conv3x3_im2col(h1p_ref[...], p_ref, w_ref, H, W, Cout)  # (H*W, Cout) f32
    y2_ref[0] = acc

    stats_ref[0, 0:1, :] = jnp.sum(acc, axis=0, keepdims=True)
    stats_ref[0, 1:2, :] = jnp.sum(acc * acc, axis=0, keepdims=True)


def _bn2_relu_kernel(y2_ref, sc_ref, sh_ref, out_ref):
    # y2_ref : (1, H, W*Cout)   raw conv2 output, lane-dense view
    # sc_ref : (1, W*Cout)      BN2 scale, pre-tiled per lane
    # sh_ref : (1, W*Cout)      BN2 shift, pre-tiled per lane
    # out_ref: (1, H, W*Cout)   final activation (lane-dense store)
    out_ref[0] = jnp.maximum(y2_ref[0] * sc_ref[...] + sh_ref[...], 0.0)


def _fold_bn_affine(stats, gamma, beta, count):
    """stats: (N, 2, Cout) per-image [sum, sumsq]. Returns per-channel scale/shift so
    that BN(y) == y * scale + shift (training-mode batch statistics, biased variance)."""
    ssum = jnp.sum(stats[:, 0, :], axis=0)
    ssq = jnp.sum(stats[:, 1, :], axis=0)
    mean = ssum / count
    var = jnp.maximum(ssq / count - mean * mean, 0.0)
    scale = gamma.astype(jnp.float32) * jax.lax.rsqrt(var + _EPS)
    shift = beta.astype(jnp.float32) - mean * scale
    return scale, shift


@functools.partial(jax.jit, static_argnames=("stride",))
def plain_block_forward(x_nchw, w1_oihw, w2_oihw, gamma1, beta1, gamma2, beta2,
                        stride=1):
    """Pallas implementation of PlainBlock.forward. Input/output are NCHW."""
    if stride != 1:
        raise NotImplementedError("TODO(synk): stride>1 not implemented")

    N, Cin, H, W = x_nchw.shape
    Cout = w1_oihw.shape[0]
    count = float(N * H * W)

    # glue: NCHW -> NHWC + spatial zero-pad (pad=1); OIHW -> (9*Cin, Cout) im2col weights.
    # (In a full NHWC network these transposes would be elided.)
    x_nhwc = jnp.transpose(x_nchw, (0, 2, 3, 1)).astype(jnp.float32)
    xp = jnp.pad(x_nhwc, ((0, 0), (1, 1), (1, 1), (0, 0)))
    w1 = jnp.transpose(w1_oihw, (2, 3, 1, 0)).reshape(9 * Cin, Cout).astype(_MXU_DTYPE)
    w2 = jnp.transpose(w2_oihw, (2, 3, 1, 0)).reshape(9 * Cout, Cout).astype(_MXU_DTYPE)

    cparams = pltpu.CompilerParams(
        dimension_semantics=("parallel",),          # shards batch over v7x's 2 TCs
        vmem_limit_bytes=32 * 1024 * 1024)          # explicit, v7x-safe budget

    # ---- pass 1: conv1 + per-image BN1 partial stats -------------------------------
    y1, st1 = pl.pallas_call(
        _conv1_kernel,
        grid=(N,),
        out_shape=(jax.ShapeDtypeStruct((N, H * W, Cout), jnp.float32),
                   jax.ShapeDtypeStruct((N, 2, Cout), jnp.float32)),
        in_specs=[pl.BlockSpec((1, H + 2, W + 2, Cin), lambda n: (n, 0, 0, 0)),
                  pl.BlockSpec((9 * Cin, Cout), lambda n: (0, 0))],
        out_specs=(pl.BlockSpec((1, H * W, Cout), lambda n: (n, 0, 0)),
                   pl.BlockSpec((1, 2, Cout), lambda n: (n, 0, 0))),
        scratch_shapes=[pltpu.VMEM((H * W, 9 * Cin), _MXU_DTYPE)],
        compiler_params=cparams,
    )(xp, w1)

    scale1, shift1 = _fold_bn_affine(st1, gamma1, beta1, count)
    sc1 = scale1.reshape(1, Cout)
    sh1 = shift1.reshape(1, Cout)

    # ---- pass 2: BN1 + ReLU + conv2 + per-image BN2 partial stats -------------------
    y2, st2 = pl.pallas_call(
        _bn1_conv2_kernel,
        grid=(N,),
        out_shape=(jax.ShapeDtypeStruct((N, H * W, Cout), jnp.float32),
                   jax.ShapeDtypeStruct((N, 2, Cout), jnp.float32)),
        in_specs=[pl.BlockSpec((1, H * W, Cout), lambda n: (n, 0, 0)),
                  pl.BlockSpec((9 * Cout, Cout), lambda n: (0, 0)),
                  pl.BlockSpec((1, Cout), lambda n: (0, 0)),
                  pl.BlockSpec((1, Cout), lambda n: (0, 0))],
        out_specs=(pl.BlockSpec((1, H * W, Cout), lambda n: (n, 0, 0)),
                   pl.BlockSpec((1, 2, Cout), lambda n: (n, 0, 0))),
        scratch_shapes=[pltpu.VMEM((H + 2, W + 2, Cout), jnp.float32),
                        pltpu.VMEM((H * W, 9 * Cout), _MXU_DTYPE)],
        compiler_params=cparams,
    )(y1, w2, sc1, sh1)

    scale2, shift2 = _fold_bn_affine(st2, gamma2, beta2, count)
    # pre-tile BN2 affine to the lane-dense (1, W*Cout) layout used by pass 3.
    sc2 = jnp.tile(scale2.reshape(1, Cout), (1, W))
    sh2 = jnp.tile(shift2.reshape(1, Cout), (1, W))

    # ---- pass 3: BN2 + ReLU, fully lane-dense (last dim = W*Cout) -------------------
    y2_dense = y2.reshape(N, H, W * Cout)          # free, contiguous reinterpretation
    out = pl.pallas_call(
        _bn2_relu_kernel,
        grid=(N,),
        out_shape=jax.ShapeDtypeStruct((N, H, W * Cout), jnp.float32),
        in_specs=[pl.BlockSpec((1, H, W * Cout), lambda n: (n, 0, 0)),
                  pl.BlockSpec((1, W * Cout), lambda n: (0, 0)),
                  pl.BlockSpec((1, W * Cout), lambda n: (0, 0))],
        out_specs=pl.BlockSpec((1, H, W * Cout), lambda n: (n, 0, 0)),
        compiler_params=cparams,
    )(y2_dense, sc2, sh2)

    # glue back to NCHW for PyTorch interface parity.
    return jnp.transpose(out.reshape(N, H, W, Cout), (0, 3, 1, 2))


def _reference_forward(x, w1, w2, g1, b1, g2, b2):
    """Pure-JAX f32 reference mirroring the PyTorch module (training-mode BN)."""
    dn = ("NCHW", "OIHW", "NCHW")

    def bn_relu(y, g, b):
        m = jnp.mean(y, axis=(0, 2, 3), keepdims=True)
        v = jnp.mean((y - m) ** 2, axis=(0, 2, 3), keepdims=True)
        y = (y - m) * jax.lax.rsqrt(v + _EPS)
        y = y * g.reshape(1, -1, 1, 1) + b.reshape(1, -1, 1, 1)
        return jnp.maximum(y, 0.0)

    y = jax.lax.conv_general_dilated(x, w1, (1, 1), "SAME", dimension_numbers=dn)
    y = bn_relu(y, g1, b1)
    y = jax.lax.conv_general_dilated(y, w2, (1, 1), "SAME", dimension_numbers=dn)
    y = bn_relu(y, g2, b2)
    return y


if __name__ == "__main__":
    key = jax.random.PRNGKey(0)
    kx_, kw1, kw2, kg1, kb1, kg2, kb2 = jax.random.split(key, 7)

    N, Cin, Cout, H, W = 2, 4, 8, 16, 16

    x = jax.random.normal(kx_, (N, Cin, H, W), jnp.float32)
    w1 = jax.random.normal(kw1, (Cout, Cin, 3, 3), jnp.float32) * 0.2
    w2 = jax.random.normal(kw2, (Cout, Cout, 3, 3), jnp.float32) * 0.2
    gamma1 = 1.0 + 0.1 * jax.random.normal(kg1, (Cout,), jnp.float32)
    beta1 = 0.05 * jax.random.normal(kb1, (Cout,), jnp.float32)
    gamma2 = 1.0 + 0.1 * jax.random.normal(kg2, (Cout,), jnp.float32)
    beta2 = 0.05 * jax.random.normal(kb2, (Cout,), jnp.float32)

    out = jax.block_until_ready(
        plain_block_forward(x, w1, w2, gamma1, beta1, gamma2, beta2))
    ref = jax.block_until_ready(
        _reference_forward(x, w1, w2, gamma1, beta1, gamma2, beta2))

    assert out.shape == (N, Cout, H, W), out.shape

    # MXU operands are bf16 (f32 accumulation), so compare against the f32 reference
    # with a bf16-appropriate tolerance and additionally require a tiny mean error.
    max_err = float(jnp.max(jnp.abs(out - ref)))
    mean_err = float(jnp.mean(jnp.abs(out - ref)))
    assert jnp.allclose(out, ref, rtol=2e-2, atol=1e-1), (max_err, mean_err)
    assert mean_err < 3e-2, mean_err

    print("KERNEL_OK")
</pallas_src>

<mosaic_0001>
module attributes {stable_mosaic.version = 11 : i64} {
  func.func @_conv1_kernel(%arg0: i32, %arg1: memref<1x18x18x4xf32, #tpu.memory_space<vmem>>, %arg2: memref<36x8xbf16, #tpu.memory_space<vmem>>, %arg3: memref<1x256x8xf32, #tpu.memory_space<vmem>>, %arg4: memref<1x2x8xf32, #tpu.memory_space<vmem>>, %arg5: memref<256x36xbf16, #tpu.memory_space<vmem>>) attributes {dimension_semantics = [#tpu.dimension_semantics<parallel>], iteration_bounds = array<i64: 2>, scalar_prefetch = 0 : i64, scratch_operands = 1 : i64, tpu.core_type = #tpu.core_type<tc>, window_params = [{transform_indices = @transform_0, window_bounds = array<i64: 1, 18, 18, 4>}, {pipeline_mode = #tpu.pipeline_mode<synchronous>, transform_indices = @transform_1, window_bounds = array<i64: 36, 8>}, {transform_indices = @transform_2, window_bounds = array<i64: 1, 256, 8>}, {transform_indices = @transform_3, window_bounds = array<i64: 1, 2, 8>}]} {
    %c0 = arith.constant 0 : index
    %c0_0 = arith.constant 0 : index
    %c0_1 = arith.constant 0 : index
    %c0_2 = arith.constant 0 : index
    %0 = vector.load %arg1[%c0, %c0_0, %c0_1, %c0_2] : memref<1x18x18x4xf32, #tpu.memory_space<vmem>>, vector<1x18x18x4xf32>
    %1 = vector.shape_cast %0 : vector<1x18x18x4xf32> to vector<18x18x4xf32>
    %2 = vector.extract_strided_slice %1 {offsets = [0, 0, 0], sizes = [16, 16, 4], strides = [1, 1, 1]} : vector<18x18x4xf32> to vector<16x16x4xf32>
    %3 = vector.shape_cast %2 : vector<16x16x4xf32> to vector<256x4xf32>
    %4 = arith.truncf %3 : vector<256x4xf32> to vector<256x4xbf16>
    %c0_3 = arith.constant 0 : index
    %c0_4 = arith.constant 0 : index
    %5 = vector.load %arg5[%c0_3, %c0_4] : memref<256x36xbf16, #tpu.memory_space<vmem>>, vector<256x4xbf16>
    tpu.vector_store %arg5[%c0_3, %c0_4], %4 {strides = array<i32>} : memref<256x36xbf16, #tpu.memory_space<vmem>>, vector<256x4xbf16>,
    %6 = vector.extract_strided_slice %1 {offsets = [0, 1, 0], sizes = [16, 16, 4], strides = [1, 1, 1]} : vector<18x18x4xf32> to vector<16x16x4xf32>
    %7 = vector.shape_cast %6 : vector<16x16x4xf32> to vector<256x4xf32>
    %8 = arith.truncf %7 : vector<256x4xf32> to vector<256x4xbf16>
    %c0_5 = arith.constant 0 : index
    %c4 = arith.constant 4 : index
    %9 = vector.load %arg5[%c0_5, %c4] : memref<256x36xbf16, #tpu.memory_space<vmem>>, vector<256x4xbf16>
    tpu.vector_store %arg5[%c0_5, %c4], %8 {strides = array<i32>} : memref<256x36xbf16, #tpu.memory_space<vmem>>, vector<256x4xbf16>,
    %10 = vector.extract_strided_slice %1 {offsets = [0, 2, 0], sizes = [16, 16, 4], strides = [1, 1, 1]} : vector<18x18x4xf32> to vector<16x16x4xf32>
    %11 = vector.shape_cast %10 : vector<16x16x4xf32> to vector<256x4xf32>
    %12 = arith.truncf %11 : vector<256x4xf32> to vector<256x4xbf16>
    %c0_6 = arith.constant 0 : index
    %c8 = arith.constant 8 : index
    %13 = vector.load %arg5[%c0_6, %c8] : memref<256x36xbf16, #tpu.memory_space<vmem>>, vector<256x4xbf16>
    tpu.vector_store %arg5[%c0_6, %c8], %12 {strides = array<i32>} : memref<256x36xbf16, #tpu.memory_space<vmem>>, vector<256x4xbf16>,
    %14 = vector.extract_strided_slice %1 {offsets = [1, 0, 0], sizes = [16, 16, 4], strides = [1, 1, 1]} : vector<18x18x4xf32> to vector<16x16x4xf32>
    %15 = vector.shape_cast %14 : vector<16x16x4xf32> to vector<256x4xf32>
    %16 = arith.truncf %15 : vector<256x4xf32> to vector<256x4xbf16>
    %c0_7 = arith.constant 0 : index
    %c12 = arith.constant 12 : index
    %17 = vector.load %arg5[%c0_7, %c12] : memref<256x36xbf16, #tpu.memory_space<vmem>>, vector<256x4xbf16>
    tpu.vector_store %arg5[%c0_7, %c12], %16 {strides = array<i32>} : memref<256x36xbf16, #tpu.memory_space<vmem>>, vector<256x4xbf16>,
    %18 = vector.extract_strided_slice %1 {offsets = [1, 1, 0], sizes = [16, 16, 4], strides = [1, 1, 1]} : vector<18x18x4xf32> to vector<16x16x4xf32>
    %19 = vector.shape_cast %18 : vector<16x16x4xf32> to vector<256x4xf32>
    %20 = arith.truncf %19 : vector<256x4xf32> to vector<256x4xbf16>
    %c0_8 = arith.constant 0 : index
    %c16 = arith.constant 16 : index
    %21 = vector.load %arg5[%c0_8, %c16] : memref<256x36xbf16, #tpu.memory_space<vmem>>, vector<256x4xbf16>
    tpu.vector_store %arg5[%c0_8, %c16], %20 {strides = array<i32>} : memref<256x36xbf16, #tpu.memory_space<vmem>>, vector<256x4xbf16>,
    %22 = vector.extract_strided_slice %1 {offsets = [1, 2, 0], sizes = [16, 16, 4], strides = [1, 1, 1]} : vector<18x18x4xf32> to vector<16x16x4xf32>
    %23 = vector.shape_cast %22 : vector<16x16x4xf32> to vector<256x4xf32>
    %24 = arith.truncf %23 : vector<256x4xf32> to vector<256x4xbf16>
    %c0_9 = arith.constant 0 : index
    %c20 = arith.constant 20 : index
    %25 = vector.load %arg5[%c0_9, %c20] : memref<256x36xbf16, #tpu.memory_space<vmem>>, vector<256x4xbf16>
    tpu.vector_store %arg5[%c0_9, %c20], %24 {strides = array<i32>} : memref<256x36xbf16, #tpu.memory_space<vmem>>, vector<256x4xbf16>,
    %26 = vector.extract_strided_slice %1 {offsets = [2, 0, 0], sizes = [16, 16, 4], strides = [1, 1, 1]} : vector<18x18x4xf32> to vector<16x16x4xf32>
    %27 = vector.shape_cast %26 : vector<16x16x4xf32> to vector<256x4xf32>
    %28 = arith.truncf %27 : vector<256x4xf32> to vector<256x4xbf16>
    %c0_10 = arith.constant 0 : index
    %c24 = arith.constant 24 : index
    %29 = vector.load %arg5[%c0_10, %c24] : memref<256x36xbf16, #tpu.memory_space<vmem>>, vector<256x4xbf16>
    tpu.vector_store %arg5[%c0_10, %c24], %28 {strides = array<i32>} : memref<256x36xbf16, #tpu.memory_space<vmem>>, vector<256x4xbf16>,
    %30 = vector.extract_strided_slice %1 {offsets = [2, 1, 0], sizes = [16, 16, 4], strides = [1, 1, 1]} : vector<18x18x4xf32> to vector<16x16x4xf32>
    %31 = vector.shape_cast %30 : vector<16x16x4xf32> to vector<256x4xf32>
    %32 = arith.truncf %31 : vector<256x4xf32> to vector<256x4xbf16>
    %c0_11 = arith.constant 0 : index
    %c28 = arith.constant 28 : index
    %33 = vector.load %arg5[%c0_11, %c28] : memref<256x36xbf16, #tpu.memory_space<vmem>>, vector<256x4xbf16>
    tpu.vector_store %arg5[%c0_11, %c28], %32 {strides = array<i32>} : memref<256x36xbf16, #tpu.memory_space<vmem>>, vector<256x4xbf16>,
    %34 = vector.extract_strided_slice %1 {offsets = [2, 2, 0], sizes = [16, 16, 4], strides = [1, 1, 1]} : vector<18x18x4xf32> to vector<16x16x4xf32>
    %35 = vector.shape_cast %34 : vector<16x16x4xf32> to vector<256x4xf32>
    %36 = arith.truncf %35 : vector<256x4xf32> to vector<256x4xbf16>
    %c0_12 = arith.constant 0 : index
    %c32 = arith.constant 32 : index
    %37 = vector.load %arg5[%c0_12, %c32] : memref<256x36xbf16, #tpu.memory_space<vmem>>, vector<256x4xbf16>
    tpu.vector_store %arg5[%c0_12, %c32], %36 {strides = array<i32>} : memref<256x36xbf16, #tpu.memory_space<vmem>>, vector<256x4xbf16>,
    %c0_13 = arith.constant 0 : index
    %c0_14 = arith.constant 0 : index
    %38 = vector.load %arg5[%c0_13, %c0_14] : memref<256x36xbf16, #tpu.memory_space<vmem>>, vector<256x36xbf16>
    %c0_15 = arith.constant 0 : index
    %c0_16 = arith.constant 0 : index
    %39 = vector.load %arg2[%c0_15, %c0_16] : memref<36x8xbf16, #tpu.memory_space<vmem>>, vector<36x8xbf16>
    %cst = arith.constant dense<0.000000e+00> : vector<256x8xf32>
    %40 = tpu.matmul %38, %39, %cst {dimension_numbers = #tpu.dot_dimension_numbers<[1], [0], [0], [1], [0, 0, 1, 1], [], []>} : vector<256x36xbf16>, vector<36x8xbf16>, vector<256x8xf32> -> vector<256x8xf32>
    %c0_17 = arith.constant 0 : index
    %c0_18 = arith.constant 0 : index
    %c0_19 = arith.constant 0 : index
    %41 = vector.load %arg3[%c0_17, %c0_18, %c0_19] : memref<1x256x8xf32, #tpu.memory_space<vmem>>, vector<1x256x8xf32>
    %42 = vector.shape_cast %41 : vector<1x256x8xf32> to vector<256x8xf32>
    %43 = vector.shape_cast %40 : vector<256x8xf32> to vector<1x256x8xf32>
    tpu.vector_store %arg3[%c0_17, %c0_18, %c0_19], %43 {strides = array<i32>} : memref<1x256x8xf32, #tpu.memory_space<vmem>>, vector<1x256x8xf32>,
    %cst_20 = arith.constant dense<0.000000e+00> : vector<8xf32>
    %44 = vector.multi_reduction <add>, %40, %cst_20 [0] : vector<256x8xf32> to vector<8xf32>
    %45 = vector.shape_cast %44 : vector<8xf32> to vector<1x8xf32>
    %c0_21 = arith.constant 0 : index
    %c0_22 = arith.constant 0 : index
    %c0_23 = arith.constant 0 : index
    %46 = vector.load %arg4[%c0_21, %c0_22, %c0_23] : memref<1x2x8xf32, #tpu.memory_space<vmem>>, vector<1x1x8xf32>
    %47 = vector.shape_cast %46 : vector<1x1x8xf32> to vector<1x8xf32>
    %48 = vector.shape_cast %45 : vector<1x8xf32> to vector<1x1x8xf32>
    tpu.vector_store %arg4[%c0_21, %c0_22, %c0_23], %48 {strides = array<i32>} : memref<1x2x8xf32, #tpu.memory_space<vmem>>, vector<1x1x8xf32>,
    %49 = arith.mulf %40, %40 : vector<256x8xf32>
    %cst_24 = arith.constant dense<0.000000e+00> : vector<8xf32>
    %50 = vector.multi_reduction <add>, %49, %cst_24 [0] : vector<256x8xf32> to vector<8xf32>
    %51 = vector.shape_cast %50 : vector<8xf32> to vector<1x8xf32>
    %c0_25 = arith.constant 0 : index
    %c1 = arith.constant 1 : index
    %c0_26 = arith.constant 0 : index
    %52 = vector.load %arg4[%c0_25, %c1, %c0_26] : memref<1x2x8xf32, #tpu.memory_space<vmem>>, vector<1x1x8xf32>
    %53 = vector.shape_cast %52 : vector<1x1x8xf32> to vector<1x8xf32>
    %54 = vector.shape_cast %51 : vector<1x8xf32> to vector<1x1x8xf32>
    tpu.vector_store %arg4[%c0_25, %c1, %c0_26], %54 {strides = array<i32>} : memref<1x2x8xf32, #tpu.memory_space<vmem>>, vector<1x1x8xf32>,
    return
  }
  func.func @transform_0(%arg0: i32) -> (i32, i32, i32, i32) {
    %c0_i32 = arith.constant 0 : i32
    %c0_i32_0 = arith.constant 0 : i32
    %c0_i32_1 = arith.constant 0 : i32
    %c0_i32_2 = arith.constant 0 : i32
    return %arg0, %c0_i32, %c0_i32_0, %c0_i32_1 : i32, i32, i32, i32
  }
  func.func @transform_1(%arg0: i32) -> (i32, i32) {
    %c0_i32 = arith.constant 0 : i32
    %c0_i32_0 = arith.constant 0 : i32
    %c0_i32_1 = arith.constant 0 : i32
    return %c0_i32, %c0_i32_0 : i32, i32
  }
  func.func @transform_2(%arg0: i32) -> (i32, i32, i32) {
    %c0_i32 = arith.constant 0 : i32
    %c0_i32_0 = arith.constant 0 : i32
    %c0_i32_1 = arith.constant 0 : i32
    return %arg0, %c0_i32, %c0_i32_0 : i32, i32, i32
  }
  func.func @transform_3(%arg0: i32) -> (i32, i32, i32) {
    %c0_i32 = arith.constant 0 : i32
    %c0_i32_0 = arith.constant 0 : i32
    %c0_i32_1 = arith.constant 0 : i32
    return %arg0, %c0_i32, %c0_i32_0 : i32, i32, i32
  }
}

module attributes {stable_mosaic.version = 11 : i64} {
  func.func @_bn1_conv2_kernel(%arg0: i32, %arg1: memref<1x256x8xf32, #tpu.memory_space<vmem>>, %arg2: memref<72x8xbf16, #tpu.memory_space<vmem>>, %arg3: memref<1x8xf32, #tpu.memory_space<vmem>>, %arg4: memref<1x8xf32, #tpu.memory_space<vmem>>, %arg5: memref<1x256x8xf32, #tpu.memory_space<vmem>>, %arg6: memref<1x2x8xf32, #tpu.memory_space<vmem>>, %arg7: memref<18x18x8xf32, #tpu.memory_space<vmem>>, %arg8: memref<256x72xbf16, #tpu.memory_space<vmem>>) attributes {dimension_semantics = [#tpu.dimension_semantics<parallel>], iteration_bounds = array<i64: 2>, scalar_prefetch = 0 : i64, scratch_operands = 2 : i64, tpu.core_type = #tpu.core_type<tc>, window_params = [{transform_indices = @transform_0, window_bounds = array<i64: 1, 256, 8>}, {pipeline_mode = #tpu.pipeline_mode<synchronous>, transform_indices = @transform_1, window_bounds = array<i64: 72, 8>}, {pipeline_mode = #tpu.pipeline_mode<synchronous>, transform_indices = @transform_2, window_bounds = array<i64: 1, 8>}, {pipeline_mode = #tpu.pipeline_mode<synchronous>, transform_indices = @transform_3, window_bounds = array<i64: 1, 8>}, {transform_indices = @transform_4, window_bounds = array<i64: 1, 256, 8>}, {transform_indices = @transform_5, window_bounds = array<i64: 1, 2, 8>}]} {
    %c0 = arith.constant 0 : index
    %c0_0 = arith.constant 0 : index
    %c0_1 = arith.constant 0 : index
    %0 = vector.load %arg1[%c0, %c0_0, %c0_1] : memref<1x256x8xf32, #tpu.memory_space<vmem>>, vector<1x256x8xf32>
    %1 = vector.shape_cast %0 : vector<1x256x8xf32> to vector<256x8xf32>
    %c0_2 = arith.constant 0 : index
    %c0_3 = arith.constant 0 : index
    %2 = vector.load %arg3[%c0_2, %c0_3] : memref<1x8xf32, #tpu.memory_space<vmem>>, vector<1x8xf32>
    %3 = vector.broadcast %2 : vector<1x8xf32> to vector<256x8xf32>
    %4 = arith.mulf %1, %3 : vector<256x8xf32>
    %c0_4 = arith.constant 0 : index
    %c0_5 = arith.constant 0 : index
    %5 = vector.load %arg4[%c0_4, %c0_5] : memref<1x8xf32, #tpu.memory_space<vmem>>, vector<1x8xf32>
    %6 = vector.broadcast %5 : vector<1x8xf32> to vector<256x8xf32>
    %7 = arith.addf %4, %6 : vector<256x8xf32>
    %cst = arith.constant 0.000000e+00 : f32
    %8 = vector.broadcast %cst : f32 to vector<256x8xf32>
    %9 = arith.maximumf %7, %8 : vector<256x8xf32>
    %cst_6 = arith.constant 0.000000e+00 : f32
    %10 = vector.broadcast %cst_6 : f32 to vector<1x18x8xf32>
    %c0_7 = arith.constant 0 : index
    %c0_8 = arith.constant 0 : index
    %c0_9 = arith.constant 0 : index
    %11 = vector.load %arg7[%c0_7, %c0_8, %c0_9] : memref<18x18x8xf32, #tpu.memory_space<vmem>>, vector<1x18x8xf32>
    tpu.vector_store %arg7[%c0_7, %c0_8, %c0_9], %10 {strides = array<i32>} : memref<18x18x8xf32, #tpu.memory_space<vmem>>, vector<1x18x8xf32>,
    %cst_10 = arith.constant 0.000000e+00 : f32
    %12 = vector.broadcast %cst_10 : f32 to vector<1x18x8xf32>
    %c17 = arith.constant 17 : index
    %c0_11 = arith.constant 0 : index
    %c0_12 = arith.constant 0 : index
    %13 = vector.load %arg7[%c17, %c0_11, %c0_12] : memref<18x18x8xf32, #tpu.memory_space<vmem>>, vector<1x18x8xf32>
    tpu.vector_store %arg7[%c17, %c0_11, %c0_12], %12 {strides = array<i32>} : memref<18x18x8xf32, #tpu.memory_space<vmem>>, vector<1x18x8xf32>,
    %cst_13 = arith.constant 0.000000e+00 : f32
    %14 = vector.broadcast %cst_13 : f32 to vector<18x1x8xf32>
    %c0_14 = arith.constant 0 : index
    %c0_15 = arith.constant 0 : index
    %c0_16 = arith.constant 0 : index
    %15 = vector.load %arg7[%c0_14, %c0_15, %c0_16] : memref<18x18x8xf32, #tpu.memory_space<vmem>>, vector<18x1x8xf32>
    tpu.vector_store %arg7[%c0_14, %c0_15, %c0_16], %14 {strides = array<i32>} : memref<18x18x8xf32, #tpu.memory_space<vmem>>, vector<18x1x8xf32>,
    %cst_17 = arith.constant 0.000000e+00 : f32
    %16 = vector.broadcast %cst_17 : f32 to vector<18x1x8xf32>
    %c0_18 = arith.constant 0 : index
    %c17_19 = arith.constant 17 : index
    %c0_20 = arith.constant 0 : index
    %17 = vector.load %arg7[%c0_18, %c17_19, %c0_20] : memref<18x18x8xf32, #tpu.memory_space<vmem>>, vector<18x1x8xf32>
    tpu.vector_store %arg7[%c0_18, %c17_19, %c0_20], %16 {strides = array<i32>} : memref<18x18x8xf32, #tpu.memory_space<vmem>>, vector<18x1x8xf32>,
    %18 = vector.shape_cast %9 : vector<256x8xf32> to vector<16x16x8xf32>
    %c1 = arith.constant 1 : index
    %c1_21 = arith.constant 1 : index
    %c0_22 = arith.constant 0 : index
    %19 = vector.load %arg7[%c1, %c1_21, %c0_22] : memref<18x18x8xf32, #tpu.memory_space<vmem>>, vector<16x16x8xf32>
    tpu.vector_store %arg7[%c1, %c1_21, %c0_22], %18 {strides = array<i32>} : memref<18x18x8xf32, #tpu.memory_space<vmem>>, vector<16x16x8xf32>,
    %c0_23 = arith.constant 0 : index
    %c0_24 = arith.constant 0 : index
    %c0_25 = arith.constant 0 : index
    %20 = vector.load %arg7[%c0_23, %c0_24, %c0_25] : memref<18x18x8xf32, #tpu.memory_space<vmem>>, vector<18x18x8xf32>
    %21 = vector.extract_strided_slice %20 {offsets = [0, 0, 0], sizes = [16, 16, 8], strides = [1, 1, 1]} : vector<18x18x8xf32> to vector<16x16x8xf32>
    %22 = vector.shape_cast %21 : vector<16x16x8xf32> to vector<256x8xf32>
    %23 = arith.truncf %22 : vector<256x8xf32> to vector<256x8xbf16>
    %c0_26 = arith.constant 0 : index
    %c0_27 = arith.constant 0 : index
    %24 = vector.load %arg8[%c0_26, %c0_27] : memref<256x72xbf16, #tpu.memory_space<vmem>>, vector<256x8xbf16>
    tpu.vector_store %arg8[%c0_26, %c0_27], %23 {strides = array<i32>} : memref<256x72xbf16, #tpu.memory_space<vmem>>, vector<256x8xbf16>,
    %25 = vector.extract_strided_slice %20 {offsets = [0, 1, 0], sizes = [16, 16, 8], strides = [1, 1, 1]} : vector<18x18x8xf32> to vector<16x16x8xf32>
    %26 = vector.shape_cast %25 : vector<16x16x8xf32> to vector<256x8xf32>
    %27 = arith.truncf %26 : vector<256x8xf32> to vector<256x8xbf16>
    %c0_28 = arith.constant 0 : index
    %c8 = arith.constant 8 : index
    %28 = vector.load %arg8[%c0_28, %c8] : memref<256x72xbf16, #tpu.memory_space<vmem>>, vector<256x8xbf16>
    tpu.vector_store %arg8[%c0_28, %c8], %27 {strides = array<i32>} : memref<256x72xbf16, #tpu.memory_space<vmem>>, vector<256x8xbf16>,
    %29 = vector.extract_strided_slice %20 {offsets = [0, 2, 0], sizes = [16, 16, 8], strides = [1, 1, 1]} : vector<18x18x8xf32> to vector<16x16x8xf32>
    %30 = vector.shape_cast %29 : vector<16x16x8xf32> to vector<256x8xf32>
    %31 = arith.truncf %30 : vector<256x8xf32> to vector<256x8xbf16>
    %c0_29 = arith.constant 0 : index
    %c16 = arith.constant 16 : index
    %32 = vector.load %arg8[%c0_29, %c16] : memref<256x72xbf16, #tpu.memory_space<vmem>>, vector<256x8xbf16>
    tpu.vector_store %arg8[%c0_29, %c16], %31 {strides = array<i32>} : memref<256x72xbf16, #tpu.memory_space<vmem>>, vector<256x8xbf16>,
    %33 = vector.extract_strided_slice %20 {offsets = [1, 0, 0], sizes = [16, 16, 8], strides = [1, 1, 1]} : vector<18x18x8xf32> to vector<16x16x8xf32>
    %34 = vector.shape_cast %33 : vector<16x16x8xf32> to vector<256x8xf32>
    %35 = arith.truncf %34 : vector<256x8xf32> to vector<256x8xbf16>
    %c0_30 = arith.constant 0 : index
    %c24 = arith.constant 24 : index
    %36 = vector.load %arg8[%c0_30, %c24] : memref<256x72xbf16, #tpu.memory_space<vmem>>, vector<256x8xbf16>
    tpu.vector_store %arg8[%c0_30, %c24], %35 {strides = array<i32>} : memref<256x72xbf16, #tpu.memory_space<vmem>>, vector<256x8xbf16>,
    %37 = vector.extract_strided_slice %20 {offsets = [1, 1, 0], sizes = [16, 16, 8], strides = [1, 1, 1]} : vector<18x18x8xf32> to vector<16x16x8xf32>
    %38 = vector.shape_cast %37 : vector<16x16x8xf32> to vector<256x8xf32>
    %39 = arith.truncf %38 : vector<256x8xf32> to vector<256x8xbf16>
    %c0_31 = arith.constant 0 : index
    %c32 = arith.constant 32 : index
    %40 = vector.load %arg8[%c0_31, %c32] : memref<256x72xbf16, #tpu.memory_space<vmem>>, vector<256x8xbf16>
    tpu.vector_store %arg8[%c0_31, %c32], %39 {strides = array<i32>} : memref<256x72xbf16, #tpu.memory_space<vmem>>, vector<256x8xbf16>,
    %41 = vector.extract_strided_slice %20 {offsets = [1, 2, 0], sizes = [16, 16, 8], strides = [1, 1, 1]} : vector<18x18x8xf32> to vector<16x16x8xf32>
    %42 = vector.shape_cast %41 : vector<16x16x8xf32> to vector<256x8xf32>
    %43 = arith.truncf %42 : vector<256x8xf32> to vector<256x8xbf16>
    %c0_32 = arith.constant 0 : index
    %c40 = arith.constant 40 : index
    %44 = vector.load %arg8[%c0_32, %c40] : memref<256x72xbf16, #tpu.memory_space<vmem>>, vector<256x8xbf16>
    tpu.vector_store %arg8[%c0_32, %c40], %43 {strides = array<i32>} : memref<256x72xbf16, #tpu.memory_space<vmem>>, vector<256x8xbf16>,
    %45 = vector.extract_strided_slice %20 {offsets = [2, 0, 0], sizes = [16, 16, 8], strides = [1, 1, 1]} : vector<18x18x8xf32> to vector<16x16x8xf32>
    %46 = vector.shape_cast %45 : vector<16x16x8xf32> to vector<256x8xf32>
    %47 = arith.truncf %46 : vector<256x8xf32> to vector<256x8xbf16>
    %c0_33 = arith.constant 0 : index
    %c48 = arith.constant 48 : index
    %48 = vector.load %arg8[%c0_33, %c48] : memref<256x72xbf16, #tpu.memory_space<vmem>>, vector<256x8xbf16>
    tpu.vector_store %arg8[%c0_33, %c48], %47 {strides = array<i32>} : memref<256x72xbf16, #tpu.memory_space<vmem>>, vector<256x8xbf16>,
    %49 = vector.extract_strided_slice %20 {offsets = [2, 1, 0], sizes = [16, 16, 8], strides = [1, 1, 1]} : vector<18x18x8xf32> to vector<16x16x8xf32>
    %50 = vector.shape_cast %49 : vector<16x16x8xf32> to vector<256x8xf32>
    %51 = arith.truncf %50 : vector<256x8xf32> to vector<256x8xbf16>
    %c0_34 = arith.constant 0 : index
    %c56 = arith.constant 56 : index
    %52 = vector.load %arg8[%c0_34, %c56] : memref<256x72xbf16, #tpu.memory_space<vmem>>, vector<256x8xbf16>
    tpu.vector_store %arg8[%c0_34, %c56], %51 {strides = array<i32>} : memref<256x72xbf16, #tpu.memory_space<vmem>>, vector<256x8xbf16>,
    %53 = vector.extract_strided_slice %20 {offsets = [2, 2, 0], sizes = [16, 16, 8], strides = [1, 1, 1]} : vector<18x18x8xf32> to vector<16x16x8xf32>
    %54 = vector.shape_cast %53 : vector<16x16x8xf32> to vector<256x8xf32>
    %55 = arith.truncf %54 : vector<256x8xf32> to vector<256x8xbf16>
    %c0_35 = arith.constant 0 : index
    %c64 = arith.constant 64 : index
    %56 = vector.load %arg8[%c0_35, %c64] : memref<256x72xbf16, #tpu.memory_space<vmem>>, vector<256x8xbf16>
    tpu.vector_store %arg8[%c0_35, %c64], %55 {strides = array<i32>} : memref<256x72xbf16, #tpu.memory_space<vmem>>, vector<256x8xbf16>,
    %c0_36 = arith.constant 0 : index
    %c0_37 = arith.constant 0 : index
    %57 = vector.load %arg8[%c0_36, %c0_37] : memref<256x72xbf16, #tpu.memory_space<vmem>>, vector<256x72xbf16>
    %c0_38 = arith.constant 0 : index
    %c0_39 = arith.constant 0 : index
    %58 = vector.load %arg2[%c0_38, %c0_39] : memref<72x8xbf16, #tpu.memory_space<vmem>>, vector<72x8xbf16>
    %cst_40 = arith.constant dense<0.000000e+00> : vector<256x8xf32>
    %59 = tpu.matmul %57, %58, %cst_40 {dimension_numbers = #tpu.dot_dimension_numbers<[1], [0], [0], [1], [0, 0, 1, 1], [], []>} : vector<256x72xbf16>, vector<72x8xbf16>, vector<256x8xf32> -> vector<256x8xf32>
    %c0_41 = arith.constant 0 : index
    %c0_42 = arith.constant 0 : index
    %c0_43 = arith.constant 0 : index
    %60 = vector.load %arg5[%c0_41, %c0_42, %c0_43] : memref<1x256x8xf32, #tpu.memory_space<vmem>>, vector<1x256x8xf32>
    %61 = vector.shape_cast %60 : vector<1x256x8xf32> to vector<256x8xf32>
    %62 = vector.shape_cast %59 : vector<256x8xf32> to vector<1x256x8xf32>
    tpu.vector_store %arg5[%c0_41, %c0_42, %c0_43], %62 {strides = array<i32>} : memref<1x256x8xf32, #tpu.memory_space<vmem>>, vector<1x256x8xf32>,
    %cst_44 = arith.constant dense<0.000000e+00> : vector<8xf32>
    %63 = vector.multi_reduction <add>, %59, %cst_44 [0] : vector<256x8xf32> to vector<8xf32>
    %64 = vector.shape_cast %63 : vector<8xf32> to vector<1x8xf32>
    %c0_45 = arith.constant 0 : index
    %c0_46 = arith.constant 0 : index
    %c0_47 = arith.constant 0 : index
    %65 = vector.load %arg6[%c0_45, %c0_46, %c0_47] : memref<1x2x8xf32, #tpu.memory_space<vmem>>, vector<1x1x8xf32>
    %66 = vector.shape_cast %65 : vector<1x1x8xf32> to vector<1x8xf32>
    %67 = vector.shape_cast %64 : vector<1x8xf32> to vector<1x1x8xf32>
    tpu.vector_store %arg6[%c0_45, %c0_46, %c0_47], %67 {strides = array<i32>} : memref<1x2x8xf32, #tpu.memory_space<vmem>>, vector<1x1x8xf32>,
    %68 = arith.mulf %59, %59 : vector<256x8xf32>
    %cst_48 = arith.constant dense<0.000000e+00> : vector<8xf32>
    %69 = vector.multi_reduction <add>, %68, %cst_48 [0] : vector<256x8xf32> to vector<8xf32>
    %70 = vector.shape_cast %69 : vector<8xf32> to vector<1x8xf32>
    %c0_49 = arith.constant 0 : index
    %c1_50 = arith.constant 1 : index
    %c0_51 = arith.constant 0 : index
    %71 = vector.load %arg6[%c0_49, %c1_50, %c0_51] : memref<1x2x8xf32, #tpu.memory_space<vmem>>, vector<1x1x8xf32>
    %72 = vector.shape_cast %71 : vector<1x1x8xf32> to vector<1x8xf32>
    %73 = vector.shape_cast %70 : vector<1x8xf32> to vector<1x1x8xf32>
    tpu.vector_store %arg6[%c0_49, %c1_50, %c0_51], %73 {strides = array<i32>} : memref<1x2x8xf32, #tpu.memory_space<vmem>>, vector<1x1x8xf32>,
    return
  }
  func.func @transform_0(%arg0: i32) -> (i32, i32, i32) {
    %c0_i32 = arith.constant 0 : i32
    %c0_i32_0 = arith.constant 0 : i32
    %c0_i32_1 = arith.constant 0 : i32
    return %arg0, %c0_i32, %c0_i32_0 : i32, i32, i32
  }
  func.func @transform_1(%arg0: i32) -> (i32, i32) {
    %c0_i32 = arith.constant 0 : i32
    %c0_i32_0 = arith.constant 0 : i32
    %c0_i32_1 = arith.constant 0 : i32
    return %c0_i32, %c0_i32_0 : i32, i32
  }
  func.func @transform_2(%arg0: i32) -> (i32, i32) {
    %c0_i32 = arith.constant 0 : i32
    %c0_i32_0 = arith.constant 0 : i32
    %c0_i32_1 = arith.constant 0 : i32
    return %c0_i32, %c0_i32_0 : i32, i32
  }
  func.func @transform_3(%arg0: i32) -> (i32, i32) {
    %c0_i32 = arith.constant 0 : i32
    %c0_i32_0 = arith.constant 0 : i32
    %c0_i32_1 = arith.constant 0 : i32
    return %c0_i32, %c0_i32_0 : i32, i32
  }
  func.func @transform_4(%arg0: i32) -> (i32, i32, i32) {
    %c0_i32 = arith.constant 0 : i32
    %c0_i32_0 = arith.constant 0 : i32
    %c0_i32_1 = arith.constant 0 : i32
    return %arg0, %c0_i32, %c0_i32_0 : i32, i32, i32
  }
  func.func @transform_5(%arg0: i32) -> (i32, i32, i32) {
    %c0_i32 = arith.constant 0 : i32
    %c0_i32_0 = arith.constant 0 : i32
    %c0_i32_1 = arith.constant 0 : i32
    return %arg0, %c0_i32, %c0_i32_0 : i32, i32, i32
  }
}

module attributes {stable_mosaic.version = 11 : i64} {
  func.func @_bn2_relu_kernel(%arg0: i32, %arg1: memref<1x16x128xf32, #tpu.memory_space<vmem>>, %arg2: memref<1x128xf32, #tpu.memory_space<vmem>>, %arg3: memref<1x128xf32, #tpu.memory_space<vmem>>, %arg4: memref<1x16x128xf32, #tpu.memory_space<vmem>>) attributes {dimension_semantics = [#tpu.dimension_semantics<parallel>], iteration_bounds = array<i64: 2>, scalar_prefetch = 0 : i64, scratch_operands = 0 : i64, tpu.core_type = #tpu.core_type<tc>, window_params = [{transform_indices = @transform_0, window_bounds = array<i64: 1, 16, 128>}, {pipeline_mode = #tpu.pipeline_mode<synchronous>, transform_indices = @transform_1, window_bounds = array<i64: 1, 128>}, {pipeline_mode = #tpu.pipeline_mode<synchronous>, transform_indices = @transform_2, window_bounds = array<i64: 1, 128>}, {transform_indices = @transform_3, window_bounds = array<i64: 1, 16, 128>}]} {
    %c0 = arith.constant 0 : index
    %c0_0 = arith.constant 0 : index
    %c0_1 = arith.constant 0 : index
    %0 = vector.load %arg1[%c0, %c0_0, %c0_1] : memref<1x16x128xf32, #tpu.memory_space<vmem>>, vector<1x16x128xf32>
    %1 = vector.shape_cast %0 : vector<1x16x128xf32> to vector<16x128xf32>
    %c0_2 = arith.constant 0 : index
    %c0_3 = arith.constant 0 : index
    %2 = vector.load %arg2[%c0_2, %c0_3] : memref<1x128xf32, #tpu.memory_space<vmem>>, vector<1x128xf32>
    %3 = vector.broadcast %2 : vector<1x128xf32> to vector<16x128xf32>
    %4 = arith.mulf %1, %3 : vector<16x128xf32>
    %c0_4 = arith.constant 0 : index
    %c0_5 = arith.constant 0 : index
    %5 = vector.load %arg3[%c0_4, %c0_5] : memref<1x128xf32, #tpu.memory_space<vmem>>, vector<1x128xf32>
    %6 = vector.broadcast %5 : vector<1x128xf32> to vector<16x128xf32>
    %7 = arith.addf %4, %6 : vector<16x128xf32>
    %cst = arith.constant 0.000000e+00 : f32
    %8 = vector.broadcast %cst : f32 to vector<16x128xf32>
    %9 = arith.maximumf %7, %8 : vector<16x128xf32>
    %c0_6 = arith.constant 0 : index
    %c0_7 = arith.constant 0 : index
    %c0_8 = arith.constant 0 : index
    %10 = vector.load %arg4[%c0_6, %c0_7, %c0_8] : memref<1x16x128xf32, #tpu.memory_space<vmem>>, vector<1x16x128xf32>
    %11 = vector.shape_cast %10 : vector<1x16x128xf32> to vector<16x128xf32>
    %12 = vector.shape_cast %9 : vector<16x128xf32> to vector<1x16x128xf32>
    tpu.vector_store %arg4[%c0_6, %c0_7, %c0_8], %12 {strides = array<i32>} : memref<1x16x128xf32, #tpu.memory_space<vmem>>, vector<1x16x128xf32>,
    return
  }
  func.func @transform_0(%arg0: i32) -> (i32, i32, i32) {
    %c0_i32 = arith.constant 0 : i32
    %c0_i32_0 = arith.constant 0 : i32
    %c0_i32_1 = arith.constant 0 : i32
    return %arg0, %c0_i32, %c0_i32_0 : i32, i32, i32
  }
  func.func @transform_1(%arg0: i32) -> (i32, i32) {
    %c0_i32 = arith.constant 0 : i32
    %c0_i32_0 = arith.constant 0 : i32
    %c0_i32_1 = arith.constant 0 : i32
    return %c0_i32, %c0_i32_0 : i32, i32
  }
  func.func @transform_2(%arg0: i32) -> (i32, i32) {
    %c0_i32 = arith.constant 0 : i32
    %c0_i32_0 = arith.constant 0 : i32
    %c0_i32_1 = arith.constant 0 : i32
    return %c0_i32, %c0_i32_0 : i32, i32
  }
  func.func @transform_3(%arg0: i32) -> (i32, i32, i32) {
    %c0_i32 = arith.constant 0 : i32
    %c0_i32_0 = arith.constant 0 : i32
    %c0_i32_1 = arith.constant 0 : i32
    return %arg0, %c0_i32, %c0_i32_0 : i32, i32, i32
  }
}

</mosaic_0001>

<llo_original>
// kernel: plain_block_forward.5
$region0: #{plain_block_forward.5}
  #allocation0 [shape = 'u32[]', space=smem, size = 0x4, offset = 0x4, fixed_abs, tag = 'smem constant byte address 0x4 - core index']
  #allocation1 [shape = 'u32[144,128]{1,0:T(1,128)}', space=vmem, size = 0x12000, scoped, tag = 'internal scratch']
  %s0 = inlined_call_operand.vmem [shape: f32[2,16,128], index: 0, kind: input, shape index: {}]
  %s1 = inlined_call_operand.vmem [shape: f32[1,128], index: 1, kind: input, shape index: {}]
  %s2 = inlined_call_operand.vmem [shape: f32[1,128], index: 2, kind: input, shape index: {}]
  %s3 = inlined_call_operand.vmem [shape: f32[2,16,128], index: 3, kind: output, shape index: {}]
  %s4 = sld [smem:[#allocation0]]
  $region45: #{plain_block_forward.5} parent=0
    _
  %s6 = ssub.s32 1, %s4
  %s7 = scalar_select 0, %s6, %s4
  loop: start=0, step=1, limit=4
  $region2: #{plain_block_forward.5} parent=0 // loop_pre_header
    _
  $region3: #{plain_block_forward.5} parent=0 // loop_header
    %s9 = sphi 0, %s13
    %p10 = scmp.ge.s32.totalorder %s9, 4
    %s19 = sphi 0, %s21
    %s22 = sphi 0, %s19
    %s23 = sphi 0, %s22
    %s39 = sphi 0, %s23
    %s43 = sphi 0, %s43
    %s45 = sphi 0, %s43
    %s46 = sphi 0, %s45
    %s60 = sphi 0, %s46
    %s64 = sphi 0, %s64
    %s66 = sphi 0, %s64
    %s67 = sphi 0, %s66
    %s81 = sphi 0, %s67
    %s87 = sphi 0, %s89
    %s90 = sphi 0, %s87
    %s91 = sphi 0, %s90
    %s107 = sphi 0, %s91
  $region4: #{plain_block_forward.5} parent=0 // loop_header_branch
    %12 = sbr.rel (%p10) target = $region8
  $region5: #{plain_block_forward.5} parent=0 // loop_body
    %s14 = ssub.s32 %s9, 1
    %s15 = ssub.s32 %s9, 2
    %s16 = sadd.s32 %s9, 1
    %s17 = ssub.s32 %s9, %s16
    %p18 = scmp.eq.s32.totalorder %s17, 0
    %s20 = sadd.s32 %s19, 1
    %s21 = scalar_select %p18, %s19, %s20
    %p24 = pneg %p18
    %p25 = scmp.eq.s32.totalorder %s9, 1
    %p26 = por %p24, %p25
    %p27 = scmp.ne.s32.totalorder %s19, %s22
    %p28 = scmp.eq.s32.totalorder %s9, 0
    %p29 = por %p27, %p28
    %p30 = scmp.ne.s32.totalorder %s19, %s22
    %p31 = scmp.eq.s32.totalorder %s14, 1
    %p32 = por %p30, %p31
    %p33 = scmp.ne.s32.totalorder %s22, %s23
    %p34 = scmp.eq.s32.totalorder %s14, 0
    %p35 = por %p33, %p34
    %p36 = scmp.ne.s32.totalorder %s22, %s23
    %p37 = scmp.eq.s32.totalorder %s15, 1
    %p38 = por %p36, %p37
    %p40 = scmp.ne.s32.totalorder %s23, %s39
    %p41 = scmp.eq.s32.totalorder %s15, 0
    %p42 = por %p40, %p41
    %s44 = sadd.s32 %s43, 1
    %p47 = scmp.eq.s32.totalorder %s9, 1
    %p48 = scmp.ne.s32.totalorder %s43, %s45
    %p49 = scmp.eq.s32.totalorder %s9, 0
    %p50 = por %p48, %p49
    %p51 = scmp.ne.s32.totalorder %s43, %s45
    %p52 = scmp.eq.s32.totalorder %s14, 1
    %p53 = por %p51, %p52
    %p54 = scmp.ne.s32.totalorder %s45, %s46
    %p55 = scmp.eq.s32.totalorder %s14, 0
    %p56 = por %p54, %p55
    %p57 = scmp.ne.s32.totalorder %s45, %s46
    %p58 = scmp.eq.s32.totalorder %s15, 1
    %p59 = por %p57, %p58
    %p61 = scmp.ne.s32.totalorder %s46, %s60
    %p62 = scmp.eq.s32.totalorder %s15, 0
    %p63 = por %p61, %p62
    %s65 = sadd.s32 %s64, 1
    %p68 = scmp.eq.s32.totalorder %s9, 1
    %p69 = scmp.ne.s32.totalorder %s64, %s66
    %p70 = scmp.eq.s32.totalorder %s9, 0
    %p71 = por %p69, %p70
    %p72 = scmp.ne.s32.totalorder %s64, %s66
    %p73 = scmp.eq.s32.totalorder %s14, 1
    %p74 = por %p72, %p73
    %p75 = scmp.ne.s32.totalorder %s66, %s67
    %p76 = scmp.eq.s32.totalorder %s14, 0
    %p77 = por %p75, %p76
    %p78 = scmp.ne.s32.totalorder %s66, %s67
    %p79 = scmp.eq.s32.totalorder %s15, 1
    %p80 = por %p78, %p79
    %p82 = scmp.ne.s32.totalorder %s67, %s81
    %p83 = scmp.eq.s32.totalorder %s15, 0
    %p84 = por %p82, %p83
    %s85 = ssub.s32 %s9, %s16
    %p86 = scmp.eq.s32.totalorder %s85, 0
    %s88 = sadd.s32 %s87, 1
    %s89 = scalar_select %p86, %s87, %s88
    %p92 = pneg %p86
    %p93 = scmp.eq.s32.totalorder %s9, 1
    %p94 = por %p92, %p93
    %p95 = scmp.ne.s32.totalorder %s87, %s90
    %p96 = scmp.eq.s32.totalorder %s9, 0
    %p97 = por %p95, %p96
    %p98 = scmp.ne.s32.totalorder %s87, %s90
    %p99 = scmp.eq.s32.totalorder %s14, 1
    %p100 = por %p98, %p99
    %p101 = scmp.ne.s32.totalorder %s90, %s91
    %p102 = scmp.eq.s32.totalorder %s14, 0
    %p103 = por %p101, %p102
    %p104 = scmp.ne.s32.totalorder %s90, %s91
    %p105 = scmp.eq.s32.totalorder %s15, 1
    %p106 = por %p104, %p105
    %p108 = scmp.ne.s32.totalorder %s91, %s107
    %p109 = scmp.eq.s32.totalorder %s15, 0
    %p110 = por %p108, %p109
    %p111 = scmp.le.s32.totalorder 1, %s9
    %p112 = scmp.lt.s32.totalorder %s9, 3
    %p113 = pnand %p111, %p112
    %p114 = pneg %p113
    // Predicated region
    $region9: #{plain_block_forward.5} parent=5 // pred_check
      _
    $region10: #{plain_block_forward.5} parent=5 // pred_check_branch
      %116 = sbr.rel (%p113) target = $region12
    $region11: #{plain_block_forward.5} parent=5 // pred_region
      %s117 = ssub.s32 %s9, 1
      // Predicated region
      $region13: #{plain_block_forward.5} parent=11 // pred_check
        %p118 = pneg %p56
      $region14: #{plain_block_forward.5} parent=11 // pred_check_branch
        %120 = sbr.rel (%p118) target = $region16
      $region15: #{plain_block_forward.5} parent=11 // pred_region
        _
      $region16: #{plain_block_forward.5} parent=11 // pred_fallthru
        _
      // Predicated region
      $region17: #{plain_block_forward.5} parent=11 // pred_check
        %p121 = pneg %p77
      $region18: #{plain_block_forward.5} parent=11 // pred_check_branch
        %123 = sbr.rel (%p121) target = $region20
      $region19: #{plain_block_forward.5} parent=11 // pred_region
        _
      $region20: #{plain_block_forward.5} parent=11 // pred_fallthru
        _
    $region12: #{plain_block_forward.5} parent=5 // pred_fallthru
      _
    %p124 = scmp.lt.s32.totalorder %s9, 2
    // Predicated region
    $region21: #{plain_block_forward.5} parent=5 // pred_check
      %p125 = pneg %p124
    $region22: #{plain_block_forward.5} parent=5 // pred_check_branch
      %127 = sbr.rel (%p125) target = $region24
    $region23: #{plain_block_forward.5} parent=5 // pred_region
      // Predicated region
      $region25: #{plain_block_forward.5} parent=23 // pred_check
        %p128 = pneg %p29
      $region26: #{plain_block_forward.5} parent=23 // pred_check_branch
        %130 = sbr.rel (%p128) target = $region28
      $region27: #{plain_block_forward.5} parent=23 // pred_region
        %p131 = scmp.lt.s32.totalorder %s9, 1
        %s132 = scalar_select %p131, %s9, 1
        %s133 = smul.addr %s132, 2
        %s134 = smul.addr %s133, 8
        %s135 = scalar_lea.vmem %s0, %s134
      $region28: #{plain_block_forward.5} parent=23 // pred_fallthru
        _
    $region24: #{plain_block_forward.5} parent=5 // pred_fallthru
      _
    %p136 = scmp.le.s32.totalorder 1, %s9
    %p137 = scmp.lt.s32.totalorder %s9, 3
    %p138 = pnand %p136, %p137
    %p139 = pneg %p138
    // Predicated region
    $region29: #{plain_block_forward.5} parent=5 // pred_check
      _
    $region30: #{plain_block_forward.5} parent=5 // pred_check_branch
      %141 = sbr.rel (%p138) target = $region32
    $region31: #{plain_block_forward.5} parent=5 // pred_region
      %s142 = ssub.s32 %s9, 1
      %p143 = scmp.lt.s32.totalorder %s14, 1
      %s144 = scalar_select %p143, %s14, 1
      %s145 = smul.addr %s144, 2
      %s146 = smul.addr %s145, 8
      %s147 = scalar_lea.vmem %s0, %s146
      %p148 = pneg %p35
      %p149 = pneg %p32
      %p150 = pneg %p56
      %p151 = pneg %p53
      %p152 = pneg %p77
      %p153 = pneg %p74
      %p154 = pneg %p103
      %p155 = pneg %p100
      %p156 = scmp.lt.s32.totalorder %s14, 1
      %s157 = scalar_select %p156, %s14, 1
      %s158 = smul.addr %s157, 2
      %s159 = smul.addr %s158, 8
      %s160 = scalar_lea.vmem %s3, %s159
      %p161 = scmp.lt.s32.totalorder %s14, 1
      %s162 = scalar_select %p161, %s14, 1
      %s163 = smul.addr %s162, 2
      %s164 = smul.addr %s163, 8
      %s165 = scalar_lea.vmem %s0, %s164
      %p166 = scmp.lt.s32.totalorder %s14, 1
      %s167 = scalar_select %p166, %s14, 1
      %s168 = smul.addr %s167, 2
      %s169 = smul.addr %s168, 8
      %s170 = scalar_lea.vmem %s3, %s169
      %v171 = vld [vmem:[%s165] sm:$0xff]
      %v172 = vld [vmem:[%s165 + $0x8] sm:$0xff]
      %v173 = vld [vmem:[%s1] sm:$0x1]
      %v175 = vlaneseq
      %v176 = vshrl.u32 %v175, 7
      %v177 = vsub.s32 0, %v176
      %v178 = vrot.slane %v173, %v177
      %v180 = vmul.f32 %v171, %v178
      %v181 = vmul.f32 %v172, %v178
      %v182 = vld [vmem:[%s2] sm:$0x1]
      %v184 = vlaneseq
      %v185 = vshrl.u32 %v184, 7
      %v186 = vsub.s32 0, %v185
      %v187 = vrot.slane %v182, %v186
      %v189 = vadd.f32 %v180, %v187
      %v190 = vadd.f32 %v181, %v187
      %v191 = vmax.f32 %v189, 0.0
      %v192 = vmax.f32 %v190, 0.0
      %193 = vst [vmem:[%s170] sm:$0xff] %v191
      %194 = vst [vmem:[%s170 + $0x8] sm:$0xff] %v192
      %p195 = scmp.lt.s32.totalorder %s14, 1
      %s196 = scalar_select %p195, %s14, 1
      %s197 = smul.addr %s196, 2
      %s198 = smul.addr %s197, 8
      %s199 = scalar_lea.vmem %s3, %s198
      // Predicated region
      $region33: #{plain_block_forward.5} parent=31 // pred_check
        %p200 = pneg %p100
      $region34: #{plain_block_forward.5} parent=31 // pred_check_branch
        %202 = sbr.rel (%p200) target = $region36
      $region35: #{plain_block_forward.5} parent=31 // pred_region
        _
      $region36: #{plain_block_forward.5} parent=31 // pred_fallthru
        _
    $region32: #{plain_block_forward.5} parent=5 // pred_fallthru
      _
    %p203 = scmp.le.s32.totalorder 2, %s9
    // Predicated region
    $region37: #{plain_block_forward.5} parent=5 // pred_check
      %p204 = pneg %p203
    $region38: #{plain_block_forward.5} parent=5 // pred_check_branch
      %206 = sbr.rel (%p204) target = $region40
    $region39: #{plain_block_forward.5} parent=5 // pred_region
      %s207 = ssub.s32 %s9, 2
      // Predicated region
      $region41: #{plain_block_forward.5} parent=39 // pred_check
        %p208 = pneg %p106
      $region42: #{plain_block_forward.5} parent=39 // pred_check_branch
        %210 = sbr.rel (%p208) target = $region44
      $region43: #{plain_block_forward.5} parent=39 // pred_region
        %p211 = scmp.lt.s32.totalorder %s15, 1
        %s212 = scalar_select %p211, %s15, 1
        %s213 = smul.addr %s212, 2
        %s214 = smul.addr %s213, 8
        %s215 = scalar_lea.vmem %s3, %s214
      $region44: #{plain_block_forward.5} parent=39 // pred_fallthru
        _
    $region40: #{plain_block_forward.5} parent=5 // pred_fallthru
      _
  $region6: #{plain_block_forward.5} parent=0 // loop_footer
    %s13 = sadd.s32 1, %s9
  $region7: #{plain_block_forward.5} parent=0 // loop_footer_branch
    %8 = sbr.rel target = $region3
  $region8: #{plain_block_forward.5} parent=0 // loop_exit
    _

// kernel: plain_block_forward.3
$region0: #{plain_block_forward.3}
  #allocation0 [shape = 'u32[]', space=smem, size = 0x4, offset = 0x4, fixed_abs, tag = 'smem constant byte address 0x4 - core index']
  #allocation1 [shape = 'u32[144,128]{1,0:T(1,128)}', space=vmem, size = 0x12000, scoped, tag = 'internal scratch']
  #allocation2 [shape = 'bf16[256,36]{1,0:T(16,128)(2,1)}', space=vmem, size = 0x10000, scoped, tag = 'scratch operand']
  %s0 = inlined_call_operand.vmem [shape: f32[2,18,18,4], index: 0, kind: input, shape index: {}]
  %s1 = inlined_call_operand.vmem [shape: bf16[36,8], index: 1, kind: input, shape index: {}]
  %s2 = inlined_call_operand.vmem [shape: f32[2,256,8], index: 2, kind: output, shape index: {0}]
  %s3 = inlined_call_operand.vmem [shape: f32[2,2,8], index: 3, kind: output, shape index: {1}]
  %4 = xla_tuple %s2, %s3
  %s5 = sld [smem:[#allocation0]]
  $region49: #{plain_block_forward.3} parent=0
    _
  %s7 = ssub.s32 1, %s5
  %s8 = scalar_select 0, %s7, %s5
  loop: start=0, step=1, limit=4
  $region2: #{plain_block_forward.3} parent=0 // loop_pre_header
    _
  $region3: #{plain_block_forward.3} parent=0 // loop_header
    %s10 = sphi 0, %s14
    %p11 = scmp.ge.s32.totalorder %s10, 4
    %s20 = sphi 0, %s22
    %s23 = sphi 0, %s20
    %s24 = sphi 0, %s23
    %s40 = sphi 0, %s24
    %s44 = sphi 0, %s44
    %s46 = sphi 0, %s44
    %s47 = sphi 0, %s46
    %s61 = sphi 0, %s47
    %s67 = sphi 0, %s69
    %s70 = sphi 0, %s67
    %s71 = sphi 0, %s70
    %s87 = sphi 0, %s71
    %s93 = sphi 0, %s95
    %s96 = sphi 0, %s93
    %s97 = sphi 0, %s96
    %s113 = sphi 0, %s97
  $region4: #{plain_block_forward.3} parent=0 // loop_header_branch
    %13 = sbr.rel (%p11) target = $region8
  $region5: #{plain_block_forward.3} parent=0 // loop_body
    %s15 = ssub.s32 %s10, 1
    %s16 = ssub.s32 %s10, 2
    %s17 = sadd.s32 %s10, 1
    %s18 = ssub.s32 %s10, %s17
    %p19 = scmp.eq.s32.totalorder %s18, 0
    %s21 = sadd.s32 %s20, 1
    %s22 = scalar_select %p19, %s20, %s21
    %p25 = pneg %p19
    %p26 = scmp.eq.s32.totalorder %s10, 1
    %p27 = por %p25, %p26
    %p28 = scmp.ne.s32.totalorder %s20, %s23
    %p29 = scmp.eq.s32.totalorder %s10, 0
    %p30 = por %p28, %p29
    %p31 = scmp.ne.s32.totalorder %s20, %s23
    %p32 = scmp.eq.s32.totalorder %s15, 1
    %p33 = por %p31, %p32
    %p34 = scmp.ne.s32.totalorder %s23, %s24
    %p35 = scmp.eq.s32.totalorder %s15, 0
    %p36 = por %p34, %p35
    %p37 = scmp.ne.s32.totalorder %s23, %s24
    %p38 = scmp.eq.s32.totalorder %s16, 1
    %p39 = por %p37, %p38
    %p41 = scmp.ne.s32.totalorder %s24, %s40
    %p42 = scmp.eq.s32.totalorder %s16, 0
    %p43 = por %p41, %p42
    %s45 = sadd.s32 %s44, 1
    %p48 = scmp.eq.s32.totalorder %s10, 1
    %p49 = scmp.ne.s32.totalorder %s44, %s46
    %p50 = scmp.eq.s32.totalorder %s10, 0
    %p51 = por %p49, %p50
    %p52 = scmp.ne.s32.totalorder %s44, %s46
    %p53 = scmp.eq.s32.totalorder %s15, 1
    %p54 = por %p52, %p53
    %p55 = scmp.ne.s32.totalorder %s46, %s47
    %p56 = scmp.eq.s32.totalorder %s15, 0
    %p57 = por %p55, %p56
    %p58 = scmp.ne.s32.totalorder %s46, %s47
    %p59 = scmp.eq.s32.totalorder %s16, 1
    %p60 = por %p58, %p59
    %p62 = scmp.ne.s32.totalorder %s47, %s61
    %p63 = scmp.eq.s32.totalorder %s16, 0
    %p64 = por %p62, %p63
    %s65 = ssub.s32 %s10, %s17
    %p66 = scmp.eq.s32.totalorder %s65, 0
    %s68 = sadd.s32 %s67, 1
    %s69 = scalar_select %p66, %s67, %s68
    %p72 = pneg %p66
    %p73 = scmp.eq.s32.totalorder %s10, 1
    %p74 = por %p72, %p73
    %p75 = scmp.ne.s32.totalorder %s67, %s70
    %p76 = scmp.eq.s32.totalorder %s10, 0
    %p77 = por %p75, %p76
    %p78 = scmp.ne.s32.totalorder %s67, %s70
    %p79 = scmp.eq.s32.totalorder %s15, 1
    %p80 = por %p78, %p79
    %p81 = scmp.ne.s32.totalorder %s70, %s71
    %p82 = scmp.eq.s32.totalorder %s15, 0
    %p83 = por %p81, %p82
    %p84 = scmp.ne.s32.totalorder %s70, %s71
    %p85 = scmp.eq.s32.totalorder %s16, 1
    %p86 = por %p84, %p85
    %p88 = scmp.ne.s32.totalorder %s71, %s87
    %p89 = scmp.eq.s32.totalorder %s16, 0
    %p90 = por %p88, %p89
    %s91 = ssub.s32 %s10, %s17
    %p92 = scmp.eq.s32.totalorder %s91, 0
    %s94 = sadd.s32 %s93, 1
    %s95 = scalar_select %p92, %s93, %s94
    %p98 = pneg %p92
    %p99 = scmp.eq.s32.totalorder %s10, 1
    %p100 = por %p98, %p99
    %p101 = scmp.ne.s32.totalorder %s93, %s96
    %p102 = scmp.eq.s32.totalorder %s10, 0
    %p103 = por %p101, %p102
    %p104 = scmp.ne.s32.totalorder %s93, %s96
    %p105 = scmp.eq.s32.totalorder %s15, 1
    %p106 = por %p104, %p105
    %p107 = scmp.ne.s32.totalorder %s96, %s97
    %p108 = scmp.eq.s32.totalorder %s15, 0
    %p109 = por %p107, %p108
    %p110 = scmp.ne.s32.totalorder %s96, %s97
    %p111 = scmp.eq.s32.totalorder %s16, 1
    %p112 = por %p110, %p111
    %p114 = scmp.ne.s32.totalorder %s97, %s113
    %p115 = scmp.eq.s32.totalorder %s16, 0
    %p116 = por %p114, %p115
    %p117 = scmp.le.s32.totalorder 1, %s10
    %p118 = scmp.lt.s32.totalorder %s10, 3
    %p119 = pnand %p117, %p118
    %p120 = pneg %p119
    // Predicated region
    $region9: #{plain_block_forward.3} parent=5 // pred_check
      _
    $region10: #{plain_block_forward.3} parent=5 // pred_check_branch
      %122 = sbr.rel (%p119) target = $region12
    $region11: #{plain_block_forward.3} parent=5 // pred_region
      %s123 = ssub.s32 %s10, 1
      // Predicated region
      $region13: #{plain_block_forward.3} parent=11 // pred_check
        %p124 = pneg %p57
      $region14: #{plain_block_forward.3} parent=11 // pred_check_branch
        %126 = sbr.rel (%p124) target = $region16
      $region15: #{plain_block_forward.3} parent=11 // pred_region
        _
      $region16: #{plain_block_forward.3} parent=11 // pred_fallthru
        _
    $region12: #{plain_block_forward.3} parent=5 // pred_fallthru
      _
    %p127 = scmp.lt.s32.totalorder %s10, 2
    // Predicated region
    $region17: #{plain_block_forward.3} parent=5 // pred_check
      %p128 = pneg %p127
    $region18: #{plain_block_forward.3} parent=5 // pred_check_branch
      %130 = sbr.rel (%p128) target = $region20
    $region19: #{plain_block_forward.3} parent=5 // pred_region
      // Predicated region
      $region21: #{plain_block_forward.3} parent=19 // pred_check
        %p131 = pneg %p30
      $region22: #{plain_block_forward.3} parent=19 // pred_check_branch
        %133 = sbr.rel (%p131) target = $region24
      $region23: #{plain_block_forward.3} parent=19 // pred_region
        %p134 = scmp.lt.s32.totalorder %s10, 1
        %s135 = scalar_select %p134, %s10, 1
        %s136 = smul.addr %s135, 54
        %s137 = smul.addr %s136, 8
        %s138 = scalar_lea.vmem %s0, %s137
      $region24: #{plain_block_forward.3} parent=19 // pred_fallthru
        _
    $region20: #{plain_block_forward.3} parent=5 // pred_fallthru
      _
    %p139 = scmp.le.s32.totalorder 1, %s10
    %p140 = scmp.lt.s32.totalorder %s10, 3
    %p141 = pnand %p139, %p140
    %p142 = pneg %p141
    // Predicated region
    $region25: #{plain_block_forward.3} parent=5 // pred_check
      _
    $region26: #{plain_block_forward.3} parent=5 // pred_check_branch
      %144 = sbr.rel (%p141) target = $region28
    $region27: #{plain_block_forward.3} parent=5 // pred_region
      %s145 = ssub.s32 %s10, 1
      %p146 = scmp.lt.s32.totalorder %s15, 1
      %s147 = scalar_select %p146, %s15, 1
      %s148 = smul.addr %s147, 54
      %s149 = smul.addr %s148, 8
      %s150 = scalar_lea.vmem %s0, %s149
      %p151 = pneg %p36
      %p152 = pneg %p33
      %p153 = pneg %p57
      %p154 = pneg %p54
      %p155 = pneg %p83
      %p156 = pneg %p80
      %p157 = scmp.lt.s32.totalorder %s15, 1
      %s158 = scalar_select %p157, %s15, 1
      %s159 = smul.addr %s158, 32
      %s160 = smul.addr %s159, 8
      %s161 = scalar_lea.vmem %s2, %s160
      %p162 = pneg %p109
      %p163 = pneg %p106
      %p164 = scmp.lt.s32.totalorder %s15, 1
      %s165 = scalar_select %p164, %s15, 1
      %s166 = smul.addr %s165, 2
      %s167 = scalar_lea.vmem %s3, %s166
      %p168 = scmp.lt.s32.totalorder %s15, 1
      %s169 = scalar_select %p168, %s15, 1
      %s170 = smul.addr %s169, 54
      %s171 = smul.addr %s170, 8
      %s172 = scalar_lea.vmem %s0, %s171
      %p173 = scmp.lt.s32.totalorder %s15, 1
      %s174 = scalar_select %p173, %s15, 1
      %s175 = smul.addr %s174, 32
      %s176 = smul.addr %s175, 8
      %s177 = scalar_lea.vmem %s2, %s176
      %p178 = scmp.lt.s32.totalorder %s15, 1
      %s179 = scalar_select %p178, %s15, 1
      %s180 = smul.addr %s179, 2
      %s181 = scalar_lea.vmem %s3, %s180
      %v183 = vld [vmem:[%s172] sm:$0xff]
      %v184 = vld [vmem:[%s172 + $0x8] sm:$0xff]
      %v185 = vld [vmem:[%s172 + $0x10] sm:$0x3]
      %v186 = vld [vmem:[%s172 + $0x18] sm:$0xff]
      %v187 = vld [vmem:[%s172 + $0x20] sm:$0xff]
      %v188 = vld [vmem:[%s172 + $0x28] sm:$0x3]
      %v189 = vld [vmem:[%s172 + $0x30] sm:$0xff]
      %v190 = vld [vmem:[%s172 + $0x38] sm:$0xff]
      %v191 = vld [vmem:[%s172 + $0x40] sm:$0x3]
      %v192 = vld [vmem:[%s172 + $0x48] sm:$0xff]
      %v193 = vld [vmem:[%s172 + $0x50] sm:$0xff]
      %v194 = vld [vmem:[%s172 + $0x58] sm:$0x3]
      %v195 = vld [vmem:[%s172 + $0x60] sm:$0xff]
      %v196 = vld [vmem:[%s172 + $0x68] sm:$0xff]
      %v197 = vld [vmem:[%s172 + $0x70] sm:$0x3]
      %v198 = vld [vmem:[%s172 + $0x78] sm:$0xff]
      %v199 = vld [vmem:[%s172 + $0x80] sm:$0xff]
      %v200 = vld [vmem:[%s172 + $0x88] sm:$0x3]
      %v201 = vld [vmem:[%s172 + $0x90] sm:$0xff]
      %v202 = vld [vmem:[%s172 + $0x98] sm:$0xff]
      %v203 = vld [vmem:[%s172 + $0xa0] sm:$0x3]
      %v204 = vld [vmem:[%s172 + $0xa8] sm:$0xff]
      %v205 = vld [vmem:[%s172 + $0xb0] sm:$0xff]
      %v206 = vld [vmem:[%s172 + $0xb8] sm:$0x3]
      %v207 = vld [vmem:[%s172 + $0xc0] sm:$0xff]
      %v208 = vld [vmem:[%s172 + $0xc8] sm:$0xff]
      %v209 = vld [vmem:[%s172 + $0xd0] sm:$0x3]
      %v210 = vld [vmem:[%s172 + $0xd8] sm:$0xff]
      %v211 = vld [vmem:[%s172 + $0xe0] sm:$0xff]
      %v212 = vld [vmem:[%s172 + $0xe8] sm:$0x3]
      %v213 = vld [vmem:[%s172 + $0xf0] sm:$0xff]
      %v214 = vld [vmem:[%s172 + $0xf8] sm:$0xff]
      %v215 = vld [vmem:[%s172 + $0x100] sm:$0x3]
      %v216 = vld [vmem:[%s172 + $0x108] sm:$0xff]
      %v217 = vld [vmem:[%s172 + $0x110] sm:$0xff]
      %v218 = vld [vmem:[%s172 + $0x118] sm:$0x3]
      %v219 = vld [vmem:[%s172 + $0x120] sm:$0xff]
      %v220 = vld [vmem:[%s172 + $0x128] sm:$0xff]
      %v221 = vld [vmem:[%s172 + $0x130] sm:$0x3]
      %v222 = vld [vmem:[%s172 + $0x138] sm:$0xff]
      %v223 = vld [vmem:[%s172 + $0x140] sm:$0xff]
      %v224 = vld [vmem:[%s172 + $0x148] sm:$0x3]
      %v225 = vld [vmem:[%s172 + $0x150] sm:$0xff]
      %v226 = vld [vmem:[%s172 + $0x158] sm:$0xff]
      %v227 = vld [vmem:[%s172 + $0x160] sm:$0x3]
      %v228 = vld [vmem:[%s172 + $0x168] sm:$0xff]
      %v229 = vld [vmem:[%s172 + $0x170] sm:$0xff]
      %v230 = vld [vmem:[%s172 + $0x178] sm:$0x3]
      %v231 = vld [vmem:[%s172 + $0x180] sm:$0xff]
      %v232 = vld [vmem:[%s172 + $0x188] sm:$0xff]
      %v233 = vld [vmem:[%s172 + $0x190] sm:$0x3]
      %v234 = vld [vmem:[%s172 + $0x198] sm:$0xff]
      %v235 = vld [vmem:[%s172 + $0x1a0] sm:$0xff]
      %v236 = vld [vmem:[%s172 + $0x1a8] sm:$0x3]
      %v237 = vpack.c.bf16 %v184, %v183
      %v238 = vpack.c.bf16 %v187, %v186
      %v239 = vpack.c.bf16 %v190, %v189
      %v240 = vpack.c.bf16 %v193, %v192
      %v241 = vpack.c.bf16 %v196, %v195
      %v242 = vpack.c.bf16 %v199, %v198
      %v243 = vpack.c.bf16 %v202, %v201
      %v244 = vpack.c.bf16 %v205, %v204
      %v245 = vpack.c.bf16 %v208, %v207
      %v246 = vpack.c.bf16 %v211, %v210
      %v247 = vpack.c.bf16 %v214, %v213
      %v248 = vpack.c.bf16 %v217, %v216
      %v249 = vpack.c.bf16 %v220, %v219
      %v250 = vpack.c.bf16 %v223, %v222
      %v251 = vpack.c.bf16 %v226, %v225
      %v252 = vpack.c.bf16 %v229, %v228
      %vm253 = vcmask 31744
      %254 = vst.msk [vmem:[#allocation2] sm:$0xff] %vm253, %v237
      %255 = vst.msk [vmem:[#allocation2 + $0x8] sm:$0xff] %vm253, %v238
      %256 = vst.msk [vmem:[#allocation2 + $0x10] sm:$0xff] %vm253, %v239
      %257 = vst.msk [vmem:[#allocation2 + $0x18] sm:$0xff] %vm253, %v240
      %258 = vst.msk [vmem:[#allocation2 + $0x20] sm:$0xff] %vm253, %v241
      %259 = vst.msk [vmem:[#allocation2 + $0x28] sm:$0xff] %vm253, %v242
      %260 = vst.msk [vmem:[#allocation2 + $0x30] sm:$0xff] %vm253, %v243
      %261 = vst.msk [vmem:[#allocation2 + $0x38] sm:$0xff] %vm253, %v244
      %262 = vst.msk [vmem:[#allocation2 + $0x40] sm:$0xff] %vm253, %v245
      %263 = vst.msk [vmem:[#allocation2 + $0x48] sm:$0xff] %vm253, %v246
      %264 = vst.msk [vmem:[#allocation2 + $0x50] sm:$0xff] %vm253, %v247
      %265 = vst.msk [vmem:[#allocation2 + $0x58] sm:$0xff] %vm253, %v248
      %266 = vst.msk [vmem:[#allocation2 + $0x60] sm:$0xff] %vm253, %v249
      %267 = vst.msk [vmem:[#allocation2 + $0x68] sm:$0xff] %vm253, %v250
      %268 = vst.msk [vmem:[#allocation2 + $0x70] sm:$0xff] %vm253, %v251
      %269 = vst.msk [vmem:[#allocation2 + $0x78] sm:$0xff] %vm253, %v252
      %vm318 = vcmask 1046528
      %v319 = vrot.slane %v183, 1
      %v320 = vrot.slane %v184, 1
      %v321 = vsel %vm318, %v319, %v320
      %v322 = vrot.slane %v185, 1
      %v323 = vsel %vm318, %v320, %v322
      %v324 = vrot.slane %v186, 1
      %v325 = vrot.slane %v187, 1
      %v326 = vsel %vm318, %v324, %v325
      %v327 = vrot.slane %v188, 1
      %v328 = vsel %vm318, %v325, %v327
      %v329 = vrot.slane %v189, 1
      %v330 = vrot.slane %v190, 1
      %v331 = vsel %vm318, %v329, %v330
      %v332 = vrot.slane %v191, 1
      %v333 = vsel %vm318, %v330, %v332
      %v334 = vrot.slane %v192, 1
      %v335 = vrot.slane %v193, 1
      %v336 = vsel %vm318, %v334, %v335
      %v337 = vrot.slane %v194, 1
      %v338 = vsel %vm318, %v335, %v337
      %v339 = vrot.slane %v195, 1
      %v340 = vrot.slane %v196, 1
      %v341 = vsel %vm318, %v339, %v340
      %v342 = vrot.slane %v197, 1
      %v343 = vsel %vm318, %v340, %v342
      %v344 = vrot.slane %v198, 1
      %v345 = vrot.slane %v199, 1
      %v346 = vsel %vm318, %v344, %v345
      %v347 = vrot.slane %v200, 1
      %v348 = vsel %vm318, %v345, %v347
      %v349 = vrot.slane %v201, 1
      %v350 = vrot.slane %v202, 1
      %v351 = vsel %vm318, %v349, %v350
      %v352 = vrot.slane %v203, 1
      %v353 = vsel %vm318, %v350, %v352
      %v354 = vrot.slane %v204, 1
      %v355 = vrot.slane %v205, 1
      %v356 = vsel %vm318, %v354, %v355
      %v357 = vrot.slane %v206, 1
      %v358 = vsel %vm318, %v355, %v357
      %v359 = vrot.slane %v207, 1
      %v360 = vrot.slane %v208, 1
      %v361 = vsel %vm318, %v359, %v360
      %v362 = vrot.slane %v209, 1
      %v363 = vsel %vm318, %v360, %v362
      %v364 = vrot.slane %v210, 1
      %v365 = vrot.slane %v211, 1
      %v366 = vsel %vm318, %v364, %v365
      %v367 = vrot.slane %v212, 1
      %v368 = vsel %vm318, %v365, %v367
      %v369 = vrot.slane %v213, 1
      %v370 = vrot.slane %v214, 1
      %v371 = vsel %vm318, %v369, %v370
      %v372 = vrot.slane %v215, 1
      %v373 = vsel %vm318, %v370, %v372
      %v374 = vrot.slane %v216, 1
      %v375 = vrot.slane %v217, 1
      %v376 = vsel %vm318, %v374, %v375
      %v377 = vrot.slane %v218, 1
      %v378 = vsel %vm318, %v375, %v377
      %v379 = vrot.slane %v219, 1
      %v380 = vrot.slane %v220, 1
      %v381 = vsel %vm318, %v379, %v380
      %v382 = vrot.slane %v221, 1
      %v383 = vsel %vm318, %v380, %v382
      %v384 = vrot.slane %v222, 1
      %v385 = vrot.slane %v223, 1
      %v386 = vsel %vm318, %v384, %v385
      %v387 = vrot.slane %v224, 1
      %v388 = vsel %vm318, %v385, %v387
      %v389 = vrot.slane %v225, 1
      %v390 = vrot.slane %v226, 1
      %v391 = vsel %vm318, %v389, %v390
      %v392 = vrot.slane %v227, 1
      %v393 = vsel %vm318, %v390, %v392
      %v394 = vrot.slane %v228, 1
      %v395 = vrot.slane %v229, 1
      %v396 = vsel %vm318, %v394, %v395
      %v397 = vrot.slane %v230, 1
      %v398 = vsel %vm318, %v395, %v397
      %v431 = vpack.c.bf16 %v323, %v321
      %v432 = vpack.c.bf16 %v328, %v326
      %v433 = vpack.c.bf16 %v333, %v331
      %v434 = vpack.c.bf16 %v338, %v336
      %v435 = vpack.c.bf16 %v343, %v341
      %v436 = vpack.c.bf16 %v348, %v346
      %v437 = vpack.c.bf16 %v353, %v351
      %v438 = vpack.c.bf16 %v358, %v356
      %v439 = vpack.c.bf16 %v363, %v361
      %v440 = vpack.c.bf16 %v368, %v366
      %v441 = vpack.c.bf16 %v373, %v371
      %v442 = vpack.c.bf16 %v378, %v376
      %v443 = vpack.c.bf16 %v383, %v381
      %v444 = vpack.c.bf16 %v388, %v386
      %v445 = vpack.c.bf16 %v393, %v391
      %v446 = vpack.c.bf16 %v398, %v396
      %463 = vrot.lane.b32.xlu0 %v431, 4
      %v464 = vpop.permute.xlu0 %463
      %465 = vrot.lane.b32.xlu0 %v432, 4
      %v466 = vpop.permute.xlu0 %465
      %467 = vrot.lane.b32.xlu0 %v433, 4
      %v468 = vpop.permute.xlu0 %467
      %469 = vrot.lane.b32.xlu0 %v434, 4
      %v470 = vpop.permute.xlu0 %469
      %471 = vrot.lane.b32.xlu0 %v435, 4
      %v472 = vpop.permute.xlu0 %471
      %473 = vrot.lane.b32.xlu0 %v436, 4
      %v474 = vpop.permute.xlu0 %473
      %475 = vrot.lane.b32.xlu0 %v437, 4
      %v476 = vpop.permute.xlu0 %475
      %477 = vrot.lane.b32.xlu0 %v438, 4
      %v478 = vpop.permute.xlu0 %477
      %479 = vrot.lane.b32.xlu0 %v439, 4
      %v480 = vpop.permute.xlu0 %479
      %481 = vrot.lane.b32.xlu0 %v440, 4
      %v482 = vpop.permute.xlu0 %481
      %483 = vrot.lane.b32.xlu0 %v441, 4
      %v484 = vpop.permute.xlu0 %483
      %485 = vrot.lane.b32.xlu0 %v442, 4
      %v486 = vpop.permute.xlu0 %485
      %487 = vrot.lane.b32.xlu0 %v443, 4
      %v488 = vpop.permute.xlu0 %487
      %489 = vrot.lane.b32.xlu0 %v444, 4
      %v490 = vpop.permute.xlu0 %489
      %491 = vrot.lane.b32.xlu0 %v445, 4
      %v492 = vpop.permute.xlu0 %491
      %493 = vrot.lane.b32.xlu0 %v446, 4
      %v494 = vpop.permute.xlu0 %493
      %vm511 = vcmask 64544
      %512 = vst.msk [vmem:[#allocation2] sm:$0xff] %vm511, %v464
      %513 = vst.msk [vmem:[#allocation2 + $0x8] sm:$0xff] %vm511, %v466
      %514 = vst.msk [vmem:[#allocation2 + $0x10] sm:$0xff] %vm511, %v468
      %515 = vst.msk [vmem:[#allocation2 + $0x18] sm:$0xff] %vm511, %v470
      %516 = vst.msk [vmem:[#allocation2 + $0x20] sm:$0xff] %vm511, %v472
      %517 = vst.msk [vmem:[#allocation2 + $0x28] sm:$0xff] %vm511, %v474
      %518 = vst.msk [vmem:[#allocation2 + $0x30] sm:$0xff] %vm511, %v476
      %519 = vst.msk [vmem:[#allocation2 + $0x38] sm:$0xff] %vm511, %v478
      %520 = vst.msk [vmem:[#allocation2 + $0x40] sm:$0xff] %vm511, %v480
      %521 = vst.msk [vmem:[#allocation2 + $0x48] sm:$0xff] %vm511, %v482
      %522 = vst.msk [vmem:[#allocation2 + $0x50] sm:$0xff] %vm511, %v484
      %523 = vst.msk [vmem:[#allocation2 + $0x58] sm:$0xff] %vm511, %v486
      %524 = vst.msk [vmem:[#allocation2 + $0x60] sm:$0xff] %vm511, %v488
      %525 = vst.msk [vmem:[#allocation2 + $0x68] sm:$0xff] %vm511, %v490
      %526 = vst.msk [vmem:[#allocation2 + $0x70] sm:$0xff] %vm511, %v492
      %527 = vst.msk [vmem:[#allocation2 + $0x78] sm:$0xff] %vm511, %v494
      %vm528 = vcmask 1045504
      %v529 = vrot.slane %v183, 2
      %v530 = vrot.slane %v184, 2
      %v531 = vsel %vm528, %v529, %v530
      %v532 = vrot.slane %v185, 2
      %v533 = vsel %vm528, %v530, %v532
      %v534 = vrot.slane %v186, 2
      %v535 = vrot.slane %v187, 2
      %v536 = vsel %vm528, %v534, %v535
      %v537 = vrot.slane %v188, 2
      %v538 = vsel %vm528, %v535, %v537
      %v539 = vrot.slane %v189, 2
      %v540 = vrot.slane %v190, 2
      %v541 = vsel %vm528, %v539, %v540
      %v542 = vrot.slane %v191, 2
      %v543 = vsel %vm528, %v540, %v542
      %v544 = vrot.slane %v192, 2
      %v545 = vrot.slane %v193, 2
      %v546 = vsel %vm528, %v544, %v545
      %v547 = vrot.slane %v194, 2
      %v548 = vsel %vm528, %v545, %v547
      %v549 = vrot.slane %v195, 2
      %v550 = vrot.slane %v196, 2
      %v551 = vsel %vm528, %v549, %v550
      %v552 = vrot.slane %v197, 2
      %v553 = vsel %vm528, %v550, %v552
      %v554 = vrot.slane %v198, 2
      %v555 = vrot.slane %v199, 2
      %v556 = vsel %vm528, %v554, %v555
      %v557 = vrot.slane %v200, 2
      %v558 = vsel %vm528, %v555, %v557
      %v559 = vrot.slane %v201, 2
      %v560 = vrot.slane %v202, 2
      %v561 = vsel %vm528, %v559, %v560
      %v562 = vrot.slane %v203, 2
      %v563 = vsel %vm528, %v560, %v562
      %v564 = vrot.slane %v204, 2
      %v565 = vrot.slane %v205, 2
      %v566 = vsel %vm528, %v564, %v565
      %v567 = vrot.slane %v206, 2
      %v568 = vsel %vm528, %v565, %v567
      %v569 = vrot.slane %v207, 2
      %v570 = vrot.slane %v208, 2
      %v571 = vsel %vm528, %v569, %v570
      %v572 = vrot.slane %v209, 2
      %v573 = vsel %vm528, %v570, %v572
      %v574 = vrot.slane %v210, 2
      %v575 = vrot.slane %v211, 2
      %v576 = vsel %vm528, %v574, %v575
      %v577 = vrot.slane %v212, 2
      %v578 = vsel %vm528, %v575, %v577
      %v579 = vrot.slane %v213, 2
      %v580 = vrot.slane %v214, 2
      %v581 = vsel %vm528, %v579, %v580
      %v582 = vrot.slane %v215, 2
      %v583 = vsel %vm528, %v580, %v582
      %v584 = vrot.slane %v216, 2
      %v585 = vrot.slane %v217, 2
      %v586 = vsel %vm528, %v584, %v585
      %v587 = vrot.slane %v218, 2
      %v588 = vsel %vm528, %v585, %v587
      %v589 = vrot.slane %v219, 2
      %v590 = vrot.slane %v220, 2
      %v591 = vsel %vm528, %v589, %v590
      %v592 = vrot.slane %v221, 2
      %v593 = vsel %vm528, %v590, %v592
      %v594 = vrot.slane %v222, 2
      %v595 = vrot.slane %v223, 2
      %v596 = vsel %vm528, %v594, %v595
      %v597 = vrot.slane %v224, 2
      %v598 = vsel %vm528, %v595, %v597
      %v599 = vrot.slane %v225, 2
      %v600 = vrot.slane %v226, 2
      %v601 = vsel %vm528, %v599, %v600
      %v602 = vrot.slane %v227, 2
      %v603 = vsel %vm528, %v600, %v602
      %v604 = vrot.slane %v228, 2
      %v605 = vrot.slane %v229, 2
      %v606 = vsel %vm528, %v604, %v605
      %v607 = vrot.slane %v230, 2
      %v608 = vsel %vm528, %v605, %v607
      %v641 = vpack.c.bf16 %v533, %v531
      %v642 = vpack.c.bf16 %v538, %v536
      %v643 = vpack.c.bf16 %v543, %v541
      %v644 = vpack.c.bf16 %v548, %v546
      %v645 = vpack.c.bf16 %v553, %v551
      %v646 = vpack.c.bf16 %v558, %v556
      %v647 = vpack.c.bf16 %v563, %v561
      %v648 = vpack.c.bf16 %v568, %v566
      %v649 = vpack.c.bf16 %v573, %v571
      %v650 = vpack.c.bf16 %v578, %v576
      %v651 = vpack.c.bf16 %v583, %v581
      %v652 = vpack.c.bf16 %v588, %v586
      %v653 = vpack.c.bf16 %v593, %v591
      %v654 = vpack.c.bf16 %v598, %v596
      %v655 = vpack.c.bf16 %v603, %v601
      %v656 = vpack.c.bf16 %v608, %v606
      %673 = vrot.lane.b32.xlu0 %v641, 8
      %v674 = vpop.permute.xlu0 %673
      %675 = vrot.lane.b32.xlu0 %v642, 8
      %v676 = vpop.permute.xlu0 %675
      %677 = vrot.lane.b32.xlu0 %v643, 8
      %v678 = vpop.permute.xlu0 %677
      %679 = vrot.lane.b32.xlu0 %v644, 8
      %v680 = vpop.permute.xlu0 %679
      %681 = vrot.lane.b32.xlu0 %v645, 8
      %v682 = vpop.permute.xlu0 %681
      %683 = vrot.lane.b32.xlu0 %v646, 8
      %v684 = vpop.permute.xlu0 %683
      %685 = vrot.lane.b32.xlu0 %v647, 8
      %v686 = vpop.permute.xlu0 %685
      %687 = vrot.lane.b32.xlu0 %v648, 8
      %v688 = vpop.permute.xlu0 %687
      %689 = vrot.lane.b32.xlu0 %v649, 8
      %v690 = vpop.permute.xlu0 %689
      %691 = vrot.lane.b32.xlu0 %v650, 8
      %v692 = vpop.permute.xlu0 %691
      %693 = vrot.lane.b32.xlu0 %v651, 8
      %v694 = vpop.permute.xlu0 %693
      %695 = vrot.lane.b32.xlu0 %v652, 8
      %v696 = vpop.permute.xlu0 %695
      %697 = vrot.lane.b32.xlu0 %v653, 8
      %v698 = vpop.permute.xlu0 %697
      %699 = vrot.lane.b32.xlu0 %v654, 8
      %v700 = vpop.permute.xlu0 %699
      %701 = vrot.lane.b32.xlu0 %v655, 8
      %v702 = vpop.permute.xlu0 %701
      %703 = vrot.lane.b32.xlu0 %v656, 8
      %v704 = vpop.permute.xlu0 %703
      %vm721 = vcmask 97344
      %722 = vst.msk [vmem:[#allocation2] sm:$0xff] %vm721, %v674
      %723 = vst.msk [vmem:[#allocation2 + $0x8] sm:$0xff] %vm721, %v676
      %724 = vst.msk [vmem:[#allocation2 + $0x10] sm:$0xff] %vm721, %v678
      %725 = vst.msk [vmem:[#allocation2 + $0x18] sm:$0xff] %vm721, %v680
      %726 = vst.msk [vmem:[#allocation2 + $0x20] sm:$0xff] %vm721, %v682
      %727 = vst.msk [vmem:[#allocation2 + $0x28] sm:$0xff] %vm721, %v684
      %728 = vst.msk [vmem:[#allocation2 + $0x30] sm:$0xff] %vm721, %v686
      %729 = vst.msk [vmem:[#allocation2 + $0x38] sm:$0xff] %vm721, %v688
      %730 = vst.msk [vmem:[#allocation2 + $0x40] sm:$0xff] %vm721, %v690
      %731 = vst.msk [vmem:[#allocation2 + $0x48] sm:$0xff] %vm721, %v692
      %732 = vst.msk [vmem:[#allocation2 + $0x50] sm:$0xff] %vm721, %v694
      %733 = vst.msk [vmem:[#allocation2 + $0x58] sm:$0xff] %vm721, %v696
      %734 = vst.msk [vmem:[#allocation2 + $0x60] sm:$0xff] %vm721, %v698
      %735 = vst.msk [vmem:[#allocation2 + $0x68] sm:$0xff] %vm721, %v700
      %736 = vst.msk [vmem:[#allocation2 + $0x70] sm:$0xff] %vm721, %v702
      %737 = vst.msk [vmem:[#allocation2 + $0x78] sm:$0xff] %vm721, %v704
      %v738 = vpack.c.bf16 %v232, %v231
      %755 = vrot.lane.b32.xlu0 %v238, 12
      %v756 = vpop.permute.xlu0 %755
      %757 = vrot.lane.b32.xlu0 %v239, 12
      %v758 = vpop.permute.xlu0 %757
      %759 = vrot.lane.b32.xlu0 %v240, 12
      %v760 = vpop.permute.xlu0 %759
      %761 = vrot.lane.b32.xlu0 %v241, 12
      %v762 = vpop.permute.xlu0 %761
      %763 = vrot.lane.b32.xlu0 %v242, 12
      %v764 = vpop.permute.xlu0 %763
      %765 = vrot.lane.b32.xlu0 %v243, 12
      %v766 = vpop.permute.xlu0 %765
      %767 = vrot.lane.b32.xlu0 %v244, 12
      %v768 = vpop.permute.xlu0 %767
      %769 = vrot.lane.b32.xlu0 %v245, 12
      %v770 = vpop.permute.xlu0 %769
      %771 = vrot.lane.b32.xlu0 %v246, 12
      %v772 = vpop.permute.xlu0 %771
      %773 = vrot.lane.b32.xlu0 %v247, 12
      %v774 = vpop.permute.xlu0 %773
      %775 = vrot.lane.b32.xlu0 %v248, 12
      %v776 = vpop.permute.xlu0 %775
      %777 = vrot.lane.b32.xlu0 %v249, 12
      %v778 = vpop.permute.xlu0 %777
      %779 = vrot.lane.b32.xlu0 %v250, 12
      %v780 = vpop.permute.xlu0 %779
      %781 = vrot.lane.b32.xlu0 %v251, 12
      %v782 = vpop.permute.xlu0 %781
      %783 = vrot.lane.b32.xlu0 %v252, 12
      %v784 = vpop.permute.xlu0 %783
      %785 = vrot.lane.b32.xlu0 %v738, 12
      %v786 = vpop.permute.xlu0 %785
      %vm803 = vcmask 130144
      %804 = vst.msk [vmem:[#allocation2] sm:$0xff] %vm803, %v756
      %805 = vst.msk [vmem:[#allocation2 + $0x8] sm:$0xff] %vm803, %v758
      %806 = vst.msk [vmem:[#allocation2 + $0x10] sm:$0xff] %vm803, %v760
      %807 = vst.msk [vmem:[#allocation2 + $0x18] sm:$0xff] %vm803, %v762
      %808 = vst.msk [vmem:[#allocation2 + $0x20] sm:$0xff] %vm803, %v764
      %809 = vst.msk [vmem:[#allocation2 + $0x28] sm:$0xff] %vm803, %v766
      %810 = vst.msk [vmem:[#allocation2 + $0x30] sm:$0xff] %vm803, %v768
      %811 = vst.msk [vmem:[#allocation2 + $0x38] sm:$0xff] %vm803, %v770
      %812 = vst.msk [vmem:[#allocation2 + $0x40] sm:$0xff] %vm803, %v772
      %813 = vst.msk [vmem:[#allocation2 + $0x48] sm:$0xff] %vm803, %v774
      %814 = vst.msk [vmem:[#allocation2 + $0x50] sm:$0xff] %vm803, %v776
      %815 = vst.msk [vmem:[#allocation2 + $0x58] sm:$0xff] %vm803, %v778
      %816 = vst.msk [vmem:[#allocation2 + $0x60] sm:$0xff] %vm803, %v780
      %817 = vst.msk [vmem:[#allocation2 + $0x68] sm:$0xff] %vm803, %v782
      %818 = vst.msk [vmem:[#allocation2 + $0x70] sm:$0xff] %vm803, %v784
      %819 = vst.msk [vmem:[#allocation2 + $0x78] sm:$0xff] %vm803, %v786
      %v823 = vrot.slane %v231, 1
      %v824 = vrot.slane %v232, 1
      %v825 = vsel %vm318, %v823, %v824
      %v826 = vrot.slane %v233, 1
      %v827 = vsel %vm318, %v824, %v826
      %v830 = vpack.c.bf16 %v827, %v825
      %832 = vrot.lane.b32.xlu0 %v432, 16
      %v833 = vpop.permute.xlu0 %832
      %834 = vrot.lane.b32.xlu0 %v433, 16
      %v835 = vpop.permute.xlu0 %834
      %836 = vrot.lane.b32.xlu0 %v434, 16
      %v837 = vpop.permute.xlu0 %836
      %838 = vrot.lane.b32.xlu0 %v435, 16
      %v839 = vpop.permute.xlu0 %838
      %840 = vrot.lane.b32.xlu0 %v436, 16
      %v841 = vpop.permute.xlu0 %840
      %842 = vrot.lane.b32.xlu0 %v437, 16
      %v843 = vpop.permute.xlu0 %842
      %844 = vrot.lane.b32.xlu0 %v438, 16
      %v845 = vpop.permute.xlu0 %844
      %846 = vrot.lane.b32.xlu0 %v439, 16
      %v847 = vpop.permute.xlu0 %846
      %848 = vrot.lane.b32.xlu0 %v440, 16
      %v849 = vpop.permute.xlu0 %848
      %850 = vrot.lane.b32.xlu0 %v441, 16
      %v851 = vpop.permute.xlu0 %850
      %852 = vrot.lane.b32.xlu0 %v442, 16
      %v853 = vpop.permute.xlu0 %852
      %854 = vrot.lane.b32.xlu0 %v443, 16
      %v855 = vpop.permute.xlu0 %854
      %856 = vrot.lane.b32.xlu0 %v444, 16
      %v857 = vpop.permute.xlu0 %856
      %858 = vrot.lane.b32.xlu0 %v445, 16
      %v859 = vpop.permute.xlu0 %858
      %860 = vrot.lane.b32.xlu0 %v446, 16
      %v861 = vpop.permute.xlu0 %860
      %862 = vrot.lane.b32.xlu0 %v830, 16
      %v863 = vpop.permute.xlu0 %862
      %vm880 = vcmask 162944
      %881 = vst.msk [vmem:[#allocation2] sm:$0xff] %vm880, %v833
      %882 = vst.msk [vmem:[#allocation2 + $0x8] sm:$0xff] %vm880, %v835
      %883 = vst.msk [vmem:[#allocation2 + $0x10] sm:$0xff] %vm880, %v837
      %884 = vst.msk [vmem:[#allocation2 + $0x18] sm:$0xff] %vm880, %v839
      %885 = vst.msk [vmem:[#allocation2 + $0x20] sm:$0xff] %vm880, %v841
      %886 = vst.msk [vmem:[#allocation2 + $0x28] sm:$0xff] %vm880, %v843
      %887 = vst.msk [vmem:[#allocation2 + $0x30] sm:$0xff] %vm880, %v845
      %888 = vst.msk [vmem:[#allocation2 + $0x38] sm:$0xff] %vm880, %v847
      %889 = vst.msk [vmem:[#allocation2 + $0x40] sm:$0xff] %vm880, %v849
      %890 = vst.msk [vmem:[#allocation2 + $0x48] sm:$0xff] %vm880, %v851
      %891 = vst.msk [vmem:[#allocation2 + $0x50] sm:$0xff] %vm880, %v853
      %892 = vst.msk [vmem:[#allocation2 + $0x58] sm:$0xff] %vm880, %v855
      %893 = vst.msk [vmem:[#allocation2 + $0x60] sm:$0xff] %vm880, %v857
      %894 = vst.msk [vmem:[#allocation2 + $0x68] sm:$0xff] %vm880, %v859
      %895 = vst.msk [vmem:[#allocation2 + $0x70] sm:$0xff] %vm880, %v861
      %896 = vst.msk [vmem:[#allocation2 + $0x78] sm:$0xff] %vm880, %v863
      %v897 = vrot.slane %v231, 2
      %v898 = vrot.slane %v232, 2
      %v899 = vsel %vm528, %v897, %v898
      %v900 = vrot.slane %v233, 2
      %v901 = vsel %vm528, %v898, %v900
      %v904 = vpack.c.bf16 %v901, %v899
      %906 = vrot.lane.b32.xlu0 %v642, 20
      %v907 = vpop.permute.xlu0 %906
      %908 = vrot.lane.b32.xlu0 %v643, 20
      %v909 = vpop.permute.xlu0 %908
      %910 = vrot.lane.b32.xlu0 %v644, 20
      %v911 = vpop.permute.xlu0 %910
      %912 = vrot.lane.b32.xlu0 %v645, 20
      %v913 = vpop.permute.xlu0 %912
      %914 = vrot.lane.b32.xlu0 %v646, 20
      %v915 = vpop.permute.xlu0 %914
      %916 = vrot.lane.b32.xlu0 %v647, 20
      %v917 = vpop.permute.xlu0 %916
      %918 = vrot.lane.b32.xlu0 %v648, 20
      %v919 = vpop.permute.xlu0 %918
      %920 = vrot.lane.b32.xlu0 %v649, 20
      %v921 = vpop.permute.xlu0 %920
      %922 = vrot.lane.b32.xlu0 %v650, 20
      %v923 = vpop.permute.xlu0 %922
      %924 = vrot.lane.b32.xlu0 %v651, 20
      %v925 = vpop.permute.xlu0 %924
      %926 = vrot.lane.b32.xlu0 %v652, 20
      %v927 = vpop.permute.xlu0 %926
      %928 = vrot.lane.b32.xlu0 %v653, 20
      %v929 = vpop.permute.xlu0 %928
      %930 = vrot.lane.b32.xlu0 %v654, 20
      %v931 = vpop.permute.xlu0 %930
      %932 = vrot.lane.b32.xlu0 %v655, 20
      %v933 = vpop.permute.xlu0 %932
      %934 = vrot.lane.b32.xlu0 %v656, 20
      %v935 = vpop.permute.xlu0 %934
      %936 = vrot.lane.b32.xlu0 %v904, 20
      %v937 = vpop.permute.xlu0 %936
      %vm954 = vcmask 195744
      %955 = vst.msk [vmem:[#allocation2] sm:$0xff] %vm954, %v907
      %956 = vst.msk [vmem:[#allocation2 + $0x8] sm:$0xff] %vm954, %v909
      %957 = vst.msk [vmem:[#allocation2 + $0x10] sm:$0xff] %vm954, %v911
      %958 = vst.msk [vmem:[#allocation2 + $0x18] sm:$0xff] %vm954, %v913
      %959 = vst.msk [vmem:[#allocation2 + $0x20] sm:$0xff] %vm954, %v915
      %960 = vst.msk [vmem:[#allocation2 + $0x28] sm:$0xff] %vm954, %v917
      %961 = vst.msk [vmem:[#allocation2 + $0x30] sm:$0xff] %vm954, %v919
      %962 = vst.msk [vmem:[#allocation2 + $0x38] sm:$0xff] %vm954, %v921
      %963 = vst.msk [vmem:[#allocation2 + $0x40] sm:$0xff] %vm954, %v923
      %964 = vst.msk [vmem:[#allocation2 + $0x48] sm:$0xff] %vm954, %v925
      %965 = vst.msk [vmem:[#allocation2 + $0x50] sm:$0xff] %vm954, %v927
      %966 = vst.msk [vmem:[#allocation2 + $0x58] sm:$0xff] %vm954, %v929
      %967 = vst.msk [vmem:[#allocation2 + $0x60] sm:$0xff] %vm954, %v931
      %968 = vst.msk [vmem:[#allocation2 + $0x68] sm:$0xff] %vm954, %v933
      %969 = vst.msk [vmem:[#allocation2 + $0x70] sm:$0xff] %vm954, %v935
      %970 = vst.msk [vmem:[#allocation2 + $0x78] sm:$0xff] %vm954, %v937
      %v971 = vpack.c.bf16 %v235, %v234
      %973 = vrot.lane.b32.xlu0 %v239, 24
      %v974 = vpop.permute.xlu0 %973
      %975 = vrot.lane.b32.xlu0 %v240, 24
      %v976 = vpop.permute.xlu0 %975
      %977 = vrot.lane.b32.xlu0 %v241, 24
      %v978 = vpop.permute.xlu0 %977
      %979 = vrot.lane.b32.xlu0 %v242, 24
      %v980 = vpop.permute.xlu0 %979
      %981 = vrot.lane.b32.xlu0 %v243, 24
      %v982 = vpop.permute.xlu0 %981
      %983 = vrot.lane.b32.xlu0 %v244, 24
      %v984 = vpop.permute.xlu0 %983
      %985 = vrot.lane.b32.xlu0 %v245, 24
      %v986 = vpop.permute.xlu0 %985
      %987 = vrot.lane.b32.xlu0 %v246, 24
      %v988 = vpop.permute.xlu0 %987
      %989 = vrot.lane.b32.xlu0 %v247, 24
      %v990 = vpop.permute.xlu0 %989
      %991 = vrot.lane.b32.xlu0 %v248, 24
      %v992 = vpop.permute.xlu0 %991
      %993 = vrot.lane.b32.xlu0 %v249, 24
      %v994 = vpop.permute.xlu0 %993
      %995 = vrot.lane.b32.xlu0 %v250, 24
      %v996 = vpop.permute.xlu0 %995
      %997 = vrot.lane.b32.xlu0 %v251, 24
      %v998 = vpop.permute.xlu0 %997
      %999 = vrot.lane.b32.xlu0 %v252, 24
      %v1000 = vpop.permute.xlu0 %999
      %1001 = vrot.lane.b32.xlu0 %v738, 24
      %v1002 = vpop.permute.xlu0 %1001
      %1003 = vrot.lane.b32.xlu0 %v971, 24
      %v1004 = vpop.permute.xlu0 %1003
      %vm1021 = vcmask 228544
      %1022 = vst.msk [vmem:[#allocation2] sm:$0xff] %vm1021, %v974
      %1023 = vst.msk [vmem:[#allocation2 + $0x8] sm:$0xff] %vm1021, %v976
      %1024 = vst.msk [vmem:[#allocation2 + $0x10] sm:$0xff] %vm1021, %v978
      %1025 = vst.msk [vmem:[#allocation2 + $0x18] sm:$0xff] %vm1021, %v980
      %1026 = vst.msk [vmem:[#allocation2 + $0x20] sm:$0xff] %vm1021, %v982
      %1027 = vst.msk [vmem:[#allocation2 + $0x28] sm:$0xff] %vm1021, %v984
      %1028 = vst.msk [vmem:[#allocation2 + $0x30] sm:$0xff] %vm1021, %v986
      %1029 = vst.msk [vmem:[#allocation2 + $0x38] sm:$0xff] %vm1021, %v988
      %1030 = vst.msk [vmem:[#allocation2 + $0x40] sm:$0xff] %vm1021, %v990
      %1031 = vst.msk [vmem:[#allocation2 + $0x48] sm:$0xff] %vm1021, %v992
      %1032 = vst.msk [vmem:[#allocation2 + $0x50] sm:$0xff] %vm1021, %v994
      %1033 = vst.msk [vmem:[#allocation2 + $0x58] sm:$0xff] %vm1021, %v996
      %1034 = vst.msk [vmem:[#allocation2 + $0x60] sm:$0xff] %vm1021, %v998
      %1035 = vst.msk [vmem:[#allocation2 + $0x68] sm:$0xff] %vm1021, %v1000
      %1036 = vst.msk [vmem:[#allocation2 + $0x70] sm:$0xff] %vm1021, %v1002
      %1037 = vst.msk [vmem:[#allocation2 + $0x78] sm:$0xff] %vm1021, %v1004
      %v1041 = vrot.slane %v234, 1
      %v1042 = vrot.slane %v235, 1
      %v1043 = vsel %vm318, %v1041, %v1042
      %v1044 = vrot.slane %v236, 1
      %v1045 = vsel %vm318, %v1042, %v1044
      %v1048 = vpack.c.bf16 %v1045, %v1043
      %1050 = vrot.lane.b32.xlu0 %v433, 28
      %v1051 = vpop.permute.xlu0 %1050
      %1052 = vrot.lane.b32.xlu0 %v434, 28
      %v1053 = vpop.permute.xlu0 %1052
      %1054 = vrot.lane.b32.xlu0 %v435, 28
      %v1055 = vpop.permute.xlu0 %1054
      %1056 = vrot.lane.b32.xlu0 %v436, 28
      %v1057 = vpop.permute.xlu0 %1056
      %1058 = vrot.lane.b32.xlu0 %v437, 28
      %v1059 = vpop.permute.xlu0 %1058
      %1060 = vrot.lane.b32.xlu0 %v438, 28
      %v1061 = vpop.permute.xlu0 %1060
      %1062 = vrot.lane.b32.xlu0 %v439, 28
      %v1063 = vpop.permute.xlu0 %1062
      %1064 = vrot.lane.b32.xlu0 %v440, 28
      %v1065 = vpop.permute.xlu0 %1064
      %1066 = vrot.lane.b32.xlu0 %v441, 28
      %v1067 = vpop.permute.xlu0 %1066
      %1068 = vrot.lane.b32.xlu0 %v442, 28
      %v1069 = vpop.permute.xlu0 %1068
      %1070 = vrot.lane.b32.xlu0 %v443, 28
      %v1071 = vpop.permute.xlu0 %1070
      %1072 = vrot.lane.b32.xlu0 %v444, 28
      %v1073 = vpop.permute.xlu0 %1072
      %1074 = vrot.lane.b32.xlu0 %v445, 28
      %v1075 = vpop.permute.xlu0 %1074
      %1076 = vrot.lane.b32.xlu0 %v446, 28
      %v1077 = vpop.permute.xlu0 %1076
      %1078 = vrot.lane.b32.xlu0 %v830, 28
      %v1079 = vpop.permute.xlu0 %1078
      %1080 = vrot.lane.b32.xlu0 %v1048, 28
      %v1081 = vpop.permute.xlu0 %1080
      %vm1098 = vcmask 261344
      %1099 = vst.msk [vmem:[#allocation2] sm:$0xff] %vm1098, %v1051
      %1100 = vst.msk [vmem:[#allocation2 + $0x8] sm:$0xff] %vm1098, %v1053
      %1101 = vst.msk [vmem:[#allocation2 + $0x10] sm:$0xff] %vm1098, %v1055
      %1102 = vst.msk [vmem:[#allocation2 + $0x18] sm:$0xff] %vm1098, %v1057
      %1103 = vst.msk [vmem:[#allocation2 + $0x20] sm:$0xff] %vm1098, %v1059
      %1104 = vst.msk [vmem:[#allocation2 + $0x28] sm:$0xff] %vm1098, %v1061
      %1105 = vst.msk [vmem:[#allocation2 + $0x30] sm:$0xff] %vm1098, %v1063
      %1106 = vst.msk [vmem:[#allocation2 + $0x38] sm:$0xff] %vm1098, %v1065
      %1107 = vst.msk [vmem:[#allocation2 + $0x40] sm:$0xff] %vm1098, %v1067
      %1108 = vst.msk [vmem:[#allocation2 + $0x48] sm:$0xff] %vm1098, %v1069
      %1109 = vst.msk [vmem:[#allocation2 + $0x50] sm:$0xff] %vm1098, %v1071
      %1110 = vst.msk [vmem:[#allocation2 + $0x58] sm:$0xff] %vm1098, %v1073
      %1111 = vst.msk [vmem:[#allocation2 + $0x60] sm:$0xff] %vm1098, %v1075
      %1112 = vst.msk [vmem:[#allocation2 + $0x68] sm:$0xff] %vm1098, %v1077
      %1113 = vst.msk [vmem:[#allocation2 + $0x70] sm:$0xff] %vm1098, %v1079
      %1114 = vst.msk [vmem:[#allocation2 + $0x78] sm:$0xff] %vm1098, %v1081
      %v1115 = vrot.slane %v234, 2
      %v1116 = vrot.slane %v235, 2
      %v1117 = vsel %vm528, %v1115, %v1116
      %v1118 = vrot.slane %v236, 2
      %v1119 = vsel %vm528, %v1116, %v1118
      %v1122 = vpack.c.bf16 %v1119, %v1117
      %1124 = vrot.lane.b32.xlu0 %v643, 32
      %v1125 = vpop.permute.xlu0 %1124
      %1126 = vrot.lane.b32.xlu0 %v644, 32
      %v1127 = vpop.permute.xlu0 %1126
      %1128 = vrot.lane.b32.xlu0 %v645, 32
      %v1129 = vpop.permute.xlu0 %1128
      %1130 = vrot.lane.b32.xlu0 %v646, 32
      %v1131 = vpop.permute.xlu0 %1130
      %1132 = vrot.lane.b32.xlu0 %v647, 32
      %v1133 = vpop.permute.xlu0 %1132
      %1134 = vrot.lane.b32.xlu0 %v648, 32
      %v1135 = vpop.permute.xlu0 %1134
      %1136 = vrot.lane.b32.xlu0 %v649, 32
      %v1137 = vpop.permute.xlu0 %1136
      %1138 = vrot.lane.b32.xlu0 %v650, 32
      %v1139 = vpop.permute.xlu0 %1138
      %1140 = vrot.lane.b32.xlu0 %v651, 32
      %v1141 = vpop.permute.xlu0 %1140
      %1142 = vrot.lane.b32.xlu0 %v652, 32
      %v1143 = vpop.permute.xlu0 %1142
      %1144 = vrot.lane.b32.xlu0 %v653, 32
      %v1145 = vpop.permute.xlu0 %1144
      %1146 = vrot.lane.b32.xlu0 %v654, 32
      %v1147 = vpop.permute.xlu0 %1146
      %1148 = vrot.lane.b32.xlu0 %v655, 32
      %v1149 = vpop.permute.xlu0 %1148
      %1150 = vrot.lane.b32.xlu0 %v656, 32
      %v1151 = vpop.permute.xlu0 %1150
      %1152 = vrot.lane.b32.xlu0 %v904, 32
      %v1153 = vpop.permute.xlu0 %1152
      %1154 = vrot.lane.b32.xlu0 %v1122, 32
      %v1155 = vpop.permute.xlu0 %1154
      %vm1172 = vcmask 294144
      %1173 = vst.msk [vmem:[#allocation2] sm:$0xff] %vm1172, %v1125
      %1174 = vst.msk [vmem:[#allocation2 + $0x8] sm:$0xff] %vm1172, %v1127
      %1175 = vst.msk [vmem:[#allocation2 + $0x10] sm:$0xff] %vm1172, %v1129
      %1176 = vst.msk [vmem:[#allocation2 + $0x18] sm:$0xff] %vm1172, %v1131
      %1177 = vst.msk [vmem:[#allocation2 + $0x20] sm:$0xff] %vm1172, %v1133
      %1178 = vst.msk [vmem:[#allocation2 + $0x28] sm:$0xff] %vm1172, %v1135
      %1179 = vst.msk [vmem:[#allocation2 + $0x30] sm:$0xff] %vm1172, %v1137
      %1180 = vst.msk [vmem:[#allocation2 + $0x38] sm:$0xff] %vm1172, %v1139
      %1181 = vst.msk [vmem:[#allocation2 + $0x40] sm:$0xff] %vm1172, %v1141
      %1182 = vst.msk [vmem:[#allocation2 + $0x48] sm:$0xff] %vm1172, %v1143
      %1183 = vst.msk [vmem:[#allocation2 + $0x50] sm:$0xff] %vm1172, %v1145
      %1184 = vst.msk [vmem:[#allocation2 + $0x58] sm:$0xff] %vm1172, %v1147
      %1185 = vst.msk [vmem:[#allocation2 + $0x60] sm:$0xff] %vm1172, %v1149
      %1186 = vst.msk [vmem:[#allocation2 + $0x68] sm:$0xff] %vm1172, %v1151
      %1187 = vst.msk [vmem:[#allocation2 + $0x70] sm:$0xff] %vm1172, %v1153
      %1188 = vst.msk [vmem:[#allocation2 + $0x78] sm:$0xff] %vm1172, %v1155
      %v1189 = vld [vmem:[#allocation2] sm:$0xff]
      %v1190 = vld [vmem:[#allocation2 + $0x8] sm:$0xff]
      %v1191 = vld [vmem:[#allocation2 + $0x10] sm:$0xff]
      %v1192 = vld [vmem:[#allocation2 + $0x18] sm:$0xff]
      %v1193 = vld [vmem:[#allocation2 + $0x20] sm:$0xff]
      %v1194 = vld [vmem:[#allocation2 + $0x28] sm:$0xff]
      %v1195 = vld [vmem:[#allocation2 + $0x30] sm:$0xff]
      %v1196 = vld [vmem:[#allocation2 + $0x38] sm:$0xff]
      %v1197 = vld [vmem:[#allocation2 + $0x40] sm:$0xff]
      %v1198 = vld [vmem:[#allocation2 + $0x48] sm:$0xff]
      %v1199 = vld [vmem:[#allocation2 + $0x50] sm:$0xff]
      %v1200 = vld [vmem:[#allocation2 + $0x58] sm:$0xff]
      %v1201 = vld [vmem:[#allocation2 + $0x60] sm:$0xff]
      %v1202 = vld [vmem:[#allocation2 + $0x68] sm:$0xff]
      %v1203 = vld [vmem:[#allocation2 + $0x70] sm:$0xff]
      %v1204 = vld [vmem:[#allocation2 + $0x78] sm:$0xff]
      %v1205 = vld [vmem:[%s1] sm:$0xf]
      %v1206 = vld [vmem:[%s1 + $0x4] sm:$0xf]
      %v1207 = vld [vmem:[%s1 + $0x8] sm:$0xf]
      %v1208 = vld [vmem:[%s1 + $0xc] sm:$0xf]
      %v1209 = vld [vmem:[%s1 + $0x10] sm:$0x3]
      %v1215 = vunpack.c.l.b16 %v1205
      %v1216 = vunpack.c.l.b16 %v1206
      %v1217 = vunpack.c.l.b16 %v1207
      %v1218 = vunpack.c.l.b16 %v1208
      %v1219 = vunpack.c.l.b16 %v1209
      %v1220 = vpack.c.b16 %v1216, %v1215
      %v1221 = vpack.c.b16 %v1218, %v1217
      %v1222 = vpack.c.b16 %v1219, %v1219
      %vm1225 = vcmask 293888
      %v1227 = vsel %vm1225, %v1189, 0
      %v1230 = vsel %vm1225, %v1190, 0
      %v1233 = vsel %vm1225, %v1191, 0
      %v1236 = vsel %vm1225, %v1192, 0
      %v1239 = vsel %vm1225, %v1193, 0
      %v1242 = vsel %vm1225, %v1194, 0
      %v1245 = vsel %vm1225, %v1195, 0
      %v1248 = vsel %vm1225, %v1196, 0
      %v1251 = vsel %vm1225, %v1197, 0
      %v1254 = vsel %vm1225, %v1198, 0
      %v1257 = vsel %vm1225, %v1199, 0
      %v1260 = vsel %vm1225, %v1200, 0
      %v1263 = vsel %vm1225, %v1201, 0
      %v1266 = vsel %vm1225, %v1202, 0
      %v1269 = vsel %vm1225, %v1203, 0
      %v1272 = vsel %vm1225, %v1204, 0
      %vm1274 = vcmask 1041408
      %v1276 = vsel %vm1274, %v1222, 0
      %1278 = vmatprep.subr.bf16.mxu0 0
      %1279 = vmatpush1.bf16.msra.mxu0 %v1220
      %1280 = vmatprep.subr.bf16.mxu0 0
      %1281 = vmatpush1.bf16.msra.mxu0 %v1221
      %1282 = vmatprep.subr.bf16.mxu0 0
      %1283 = vmatpush1.bf16.msra.mxu0 %v1276
      %1284 = vmatprep.subr.bf16.mxu0 0
      %1285 = vmatpush1.bf16.msra.mxu0 0
      %1286 = vmatprep.subr.bf16.mxu0 0
      %1287 = vmatpush1.bf16.msra.mxu0 0
      %1288 = vmatprep.subr.bf16.mxu0 0
      %1289 = vmatpush1.bf16.msra.mxu0 0
      %1290 = vmatprep.subr.bf16.mxu0 0
      %1291 = vmatpush1.bf16.msra.mxu0 0
      %1292 = vmatprep.subr.bf16.mxu0 0
      %1293 = vmatpush1.bf16.msra.mxu0 0
      %1294 = vmatprep.subr.bf16.mxu0 0
      %1295 = vmatpush1.bf16.msra.mxu0 0
      %1296 = vmatprep.subr.bf16.mxu0 0
      %1297 = vmatpush1.bf16.msra.mxu0 0
      %1298 = vmatprep.subr.bf16.mxu0 0
      %1299 = vmatpush1.bf16.msra.mxu0 0
      %1300 = vmatprep.subr.bf16.mxu0 0
      %1301 = vmatpush1.bf16.msra.mxu0 0
      %1302 = vmatprep.subr.bf16.mxu0 0
      %1303 = vmatpush1.bf16.msra.mxu0 0
      %1304 = vmatprep.subr.bf16.mxu0 0
      %1305 = vmatpush1.bf16.msra.mxu0 0
      %1306 = vmatprep.subr.bf16.mxu0 0
      %1307 = vmatpush1.bf16.msra.mxu0 0
      %1308 = vmatprep.subr.bf16.mxu0 0
      %1309 = vmatpush1.bf16.msra.mxu0 0
      %1310 = vmatprep.mubr.bf16.mxu0 0
      %1311 = vmatmul.mubr.bf16.gmra.mrb[0].mxu0 %v1227
      %v1312 = vpop.f32.mrb[0].mxu0
      %v1313 = vadd.f32 0.0, %v1312
      %v1314 = vpop.f32.mrb[0].mxu0
      %v1315 = vpop.f32.mrb[0].mxu0
      %v1316 = vadd.f32 0.0, %v1315
      %v1317 = vpop.f32.mrb[0].mxu0
      %1318 = vmatprep.mubr.bf16.mxu0 0
      %1319 = vmatmul.mubr.bf16.gmra.mrb[0].mxu0 %v1230
      %v1320 = vpop.f32.mrb[0].mxu0
      %v1321 = vadd.f32 0.0, %v1320
      %v1322 = vpop.f32.mrb[0].mxu0
      %v1323 = vpop.f32.mrb[0].mxu0
      %v1324 = vadd.f32 0.0, %v1323
      %v1325 = vpop.f32.mrb[0].mxu0
      %1326 = vmatprep.mubr.bf16.mxu0 0
      %1327 = vmatmul.mubr.bf16.gmra.mrb[0].mxu0 %v1233
      %v1328 = vpop.f32.mrb[0].mxu0
      %v1329 = vadd.f32 0.0, %v1328
      %v1330 = vpop.f32.mrb[0].mxu0
      %v1331 = vpop.f32.mrb[0].mxu0
      %v1332 = vadd.f32 0.0, %v1331
      %v1333 = vpop.f32.mrb[0].mxu0
      %1334 = vmatprep.mubr.bf16.mxu0 0
      %1335 = vmatmul.mubr.bf16.gmra.mrb[0].mxu0 %v1236
      %v1336 = vpop.f32.mrb[0].mxu0
      %v1337 = vadd.f32 0.0, %v1336
      %v1338 = vpop.f32.mrb[0].mxu0
      %v1339 = vpop.f32.mrb[0].mxu0
      %v1340 = vadd.f32 0.0, %v1339
      %v1341 = vpop.f32.mrb[0].mxu0
      %1342 = vmatprep.mubr.bf16.mxu0 0
      %1343 = vmatmul.mubr.bf16.gmra.mrb[0].mxu0 %v1239
      %v1344 = vpop.f32.mrb[0].mxu0
      %v1345 = vadd.f32 0.0, %v1344
      %v1346 = vpop.f32.mrb[0].mxu0
      %v1347 = vpop.f32.mrb[0].mxu0
      %v1348 = vadd.f32 0.0, %v1347
      %v1349 = vpop.f32.mrb[0].mxu0
      %1350 = vmatprep.mubr.bf16.mxu0 0
      %1351 = vmatmul.mubr.bf16.gmra.mrb[0].mxu0 %v1242
      %v1352 = vpop.f32.mrb[0].mxu0
      %v1353 = vadd.f32 0.0, %v1352
      %v1354 = vpop.f32.mrb[0].mxu0
      %v1355 = vpop.f32.mrb[0].mxu0
      %v1356 = vadd.f32 0.0, %v1355
      %v1357 = vpop.f32.mrb[0].mxu0
      %1358 = vmatprep.mubr.bf16.mxu0 0
      %1359 = vmatmul.mubr.bf16.gmra.mrb[0].mxu0 %v1245
      %v1360 = vpop.f32.mrb[0].mxu0
      %v1361 = vadd.f32 0.0, %v1360
      %v1362 = vpop.f32.mrb[0].mxu0
      %v1363 = vpop.f32.mrb[0].mxu0
      %v1364 = vadd.f32 0.0, %v1363
      %v1365 = vpop.f32.mrb[0].mxu0
      %1366 = vmatprep.mubr.bf16.mxu0 0
      %1367 = vmatmul.mubr.bf16.gmra.mrb[0].mxu0 %v1248
      %v1368 = vpop.f32.mrb[0].mxu0
      %v1369 = vadd.f32 0.0, %v1368
      %v1370 = vpop.f32.mrb[0].mxu0
      %v1371 = vpop.f32.mrb[0].mxu0
      %v1372 = vadd.f32 0.0, %v1371
      %v1373 = vpop.f32.mrb[0].mxu0
      %1374 = vmatprep.mubr.bf16.mxu0 0
      %1375 = vmatmul.mubr.bf16.gmra.mrb[0].mxu0 %v1251
      %v1376 = vpop.f32.mrb[0].mxu0
      %v1377 = vadd.f32 0.0, %v1376
      %v1378 = vpop.f32.mrb[0].mxu0
      %v1379 = vpop.f32.mrb[0].mxu0
      %v1380 = vadd.f32 0.0, %v1379
      %v1381 = vpop.f32.mrb[0].mxu0
      %1382 = vmatprep.mubr.bf16.mxu0 0
      %1383 = vmatmul.mubr.bf16.gmra.mrb[0].mxu0 %v1254
      %v1384 = vpop.f32.mrb[0].mxu0
      %v1385 = vadd.f32 0.0, %v1384
      %v1386 = vpop.f32.mrb[0].mxu0
      %v1387 = vpop.f32.mrb[0].mxu0
      %v1388 = vadd.f32 0.0, %v1387
      %v1389 = vpop.f32.mrb[0].mxu0
      %1390 = vmatprep.mubr.bf16.mxu0 0
      %1391 = vmatmul.mubr.bf16.gmra.mrb[0].mxu0 %v1257
      %v1392 = vpop.f32.mrb[0].mxu0
      %v1393 = vadd.f32 0.0, %v1392
      %v1394 = vpop.f32.mrb[0].mxu0
      %v1395 = vpop.f32.mrb[0].mxu0
      %v1396 = vadd.f32 0.0, %v1395
      %v1397 = vpop.f32.mrb[0].mxu0
      %1398 = vmatprep.mubr.bf16.mxu0 0
      %1399 = vmatmul.mubr.bf16.gmra.mrb[0].mxu0 %v1260
      %v1400 = vpop.f32.mrb[0].mxu0
      %v1401 = vadd.f32 0.0, %v1400
      %v1402 = vpop.f32.mrb[0].mxu0
      %v1403 = vpop.f32.mrb[0].mxu0
      %v1404 = vadd.f32 0.0, %v1403
      %v1405 = vpop.f32.mrb[0].mxu0
      %1406 = vmatprep.mubr.bf16.mxu0 0
      %1407 = vmatmul.mubr.bf16.gmra.mrb[0].mxu0 %v1263
      %v1408 = vpop.f32.mrb[0].mxu0
      %v1409 = vadd.f32 0.0, %v1408
      %v1410 = vpop.f32.mrb[0].mxu0
      %v1411 = vpop.f32.mrb[0].mxu0
      %v1412 = vadd.f32 0.0, %v1411
      %v1413 = vpop.f32.mrb[0].mxu0
      %1414 = vmatprep.mubr.bf16.mxu0 0
      %1415 = vmatmul.mubr.bf16.gmra.mrb[0].mxu0 %v1266
      %v1416 = vpop.f32.mrb[0].mxu0
      %v1417 = vadd.f32 0.0, %v1416
      %v1418 = vpop.f32.mrb[0].mxu0
      %v1419 = vpop.f32.mrb[0].mxu0
      %v1420 = vadd.f32 0.0, %v1419
      %v1421 = vpop.f32.mrb[0].mxu0
      %1422 = vmatprep.mubr.bf16.mxu0 0
      %1423 = vmatmul.mubr.bf16.gmra.mrb[0].mxu0 %v1269
      %v1424 = vpop.f32.mrb[0].mxu0
      %v1425 = vadd.f32 0.0, %v1424
      %v1426 = vpop.f32.mrb[0].mxu0
      %v1427 = vpop.f32.mrb[0].mxu0
      %v1428 = vadd.f32 0.0, %v1427
      %v1429 = vpop.f32.mrb[0].mxu0
      %1430 = vmatprep.mubr.bf16.mxu0 0
      %1431 = vmatmul.mubr.bf16.gmra.mrb[0].mxu0 %v1272
      %v1432 = vpop.f32.mrb[0].mxu0
      %v1433 = vadd.f32 0.0, %v1432
      %v1434 = vpop.f32.mrb[0].mxu0
      %v1435 = vpop.f32.mrb[0].mxu0
      %v1436 = vadd.f32 0.0, %v1435
      %v1437 = vpop.f32.mrb[0].mxu0
      %1438 = vdwg.mxu0
      %vm1439 = vcmask 64512
      %1440 = vst.msk [vmem:[%s177] sm:$0xff] %vm1439, %v1313
      %1441 = vst.msk [vmem:[%s177 + $0x8] sm:$0xff] %vm1439, %v1316
      %1442 = vst.msk [vmem:[%s177 + $0x10] sm:$0xff] %vm1439, %v1321
      %1443 = vst.msk [vmem:[%s177 + $0x18] sm:$0xff] %vm1439, %v1324
      %1444 = vst.msk [vmem:[%s177 + $0x20] sm:$0xff] %vm1439, %v1329
      %1445 = vst.msk [vmem:[%s177 + $0x28] sm:$0xff] %vm1439, %v1332
      %1446 = vst.msk [vmem:[%s177 + $0x30] sm:$0xff] %vm1439, %v1337
      %1447 = vst.msk [vmem:[%s177 + $0x38] sm:$0xff] %vm1439, %v1340
      %1448 = vst.msk [vmem:[%s177 + $0x40] sm:$0xff] %vm1439, %v1345
      %1449 = vst.msk [vmem:[%s177 + $0x48] sm:$0xff] %vm1439, %v1348
      %1450 = vst.msk [vmem:[%s177 + $0x50] sm:$0xff] %vm1439, %v1353
      %1451 = vst.msk [vmem:[%s177 + $0x58] sm:$0xff] %vm1439, %v1356
      %1452 = vst.msk [vmem:[%s177 + $0x60] sm:$0xff] %vm1439, %v1361
      %1453 = vst.msk [vmem:[%s177 + $0x68] sm:$0xff] %vm1439, %v1364
      %1454 = vst.msk [vmem:[%s177 + $0x70] sm:$0xff] %vm1439, %v1369
      %1455 = vst.msk [vmem:[%s177 + $0x78] sm:$0xff] %vm1439, %v1372
      %1456 = vst.msk [vmem:[%s177 + $0x80] sm:$0xff] %vm1439, %v1377
      %1457 = vst.msk [vmem:[%s177 + $0x88] sm:$0xff] %vm1439, %v1380
      %1458 = vst.msk [vmem:[%s177 + $0x90] sm:$0xff] %vm1439, %v1385
      %1459 = vst.msk [vmem:[%s177 + $0x98] sm:$0xff] %vm1439, %v1388
      %1460 = vst.msk [vmem:[%s177 + $0xa0] sm:$0xff] %vm1439, %v1393
      %1461 = vst.msk [vmem:[%s177 + $0xa8] sm:$0xff] %vm1439, %v1396
      %1462 = vst.msk [vmem:[%s177 + $0xb0] sm:$0xff] %vm1439, %v1401
      %1463 = vst.msk [vmem:[%s177 + $0xb8] sm:$0xff] %vm1439, %v1404
      %1464 = vst.msk [vmem:[%s177 + $0xc0] sm:$0xff] %vm1439, %v1409
      %1465 = vst.msk [vmem:[%s177 + $0xc8] sm:$0xff] %vm1439, %v1412
      %1466 = vst.msk [vmem:[%s177 + $0xd0] sm:$0xff] %vm1439, %v1417
      %1467 = vst.msk [vmem:[%s177 + $0xd8] sm:$0xff] %vm1439, %v1420
      %1468 = vst.msk [vmem:[%s177 + $0xe0] sm:$0xff] %vm1439, %v1425
      %1469 = vst.msk [vmem:[%s177 + $0xe8] sm:$0xff] %vm1439, %v1428
      %1470 = vst.msk [vmem:[%s177 + $0xf0] sm:$0xff] %vm1439, %v1433
      %1471 = vst.msk [vmem:[%s177 + $0xf8] sm:$0xff] %vm1439, %v1436
      %v1472 = vsel %vm1439, %v1313, 0.0
      %v1473 = vsel %vm1439, %v1316, 0.0
      %v1474 = vadd.f32 %v1472, %v1473
      %v1475 = vsel %vm1439, %v1321, 0.0
      %v1476 = vadd.f32 %v1474, %v1475
      %v1477 = vsel %vm1439, %v1324, 0.0
      %v1478 = vadd.f32 %v1476, %v1477
      %v1479 = vsel %vm1439, %v1329, 0.0
      %v1480 = vadd.f32 %v1478, %v1479
      %v1481 = vsel %vm1439, %v1332, 0.0
      %v1482 = vadd.f32 %v1480, %v1481
      %v1483 = vsel %vm1439, %v1337, 0.0
      %v1484 = vadd.f32 %v1482, %v1483
      %v1485 = vsel %vm1439, %v1340, 0.0
      %v1486 = vadd.f32 %v1484, %v1485
      %v1487 = vsel %vm1439, %v1345, 0.0
      %v1488 = vadd.f32 %v1486, %v1487
      %v1489 = vsel %vm1439, %v1348, 0.0
      %v1490 = vadd.f32 %v1488, %v1489
      %v1491 = vsel %vm1439, %v1353, 0.0
      %v1492 = vadd.f32 %v1490, %v1491
      %v1493 = vsel %vm1439, %v1356, 0.0
      %v1494 = vadd.f32 %v1492, %v1493
      %v1495 = vsel %vm1439, %v1361, 0.0
      %v1496 = vadd.f32 %v1494, %v1495
      %v1497 = vsel %vm1439, %v1364, 0.0
      %v1498 = vadd.f32 %v1496, %v1497
      %v1499 = vsel %vm1439, %v1369, 0.0
      %v1500 = vadd.f32 %v1498, %v1499
      %v1501 = vsel %vm1439, %v1372, 0.0
      %v1502 = vadd.f32 %v1500, %v1501
      %v1503 = vsel %vm1439, %v1377, 0.0
      %v1504 = vadd.f32 %v1502, %v1503
      %v1505 = vsel %vm1439, %v1380, 0.0
      %v1506 = vadd.f32 %v1504, %v1505
      %v1507 = vsel %vm1439, %v1385, 0.0
      %v1508 = vadd.f32 %v1506, %v1507
      %v1509 = vsel %vm1439, %v1388, 0.0
      %v1510 = vadd.f32 %v1508, %v1509
      %v1511 = vsel %vm1439, %v1393, 0.0
      %v1512 = vadd.f32 %v1510, %v1511
      %v1513 = vsel %vm1439, %v1396, 0.0
      %v1514 = vadd.f32 %v1512, %v1513
      %v1515 = vsel %vm1439, %v1401, 0.0
      %v1516 = vadd.f32 %v1514, %v1515
      %v1517 = vsel %vm1439, %v1404, 0.0
      %v1518 = vadd.f32 %v1516, %v1517
      %v1519 = vsel %vm1439, %v1409, 0.0
      %v1520 = vadd.f32 %v1518, %v1519
      %v1521 = vsel %vm1439, %v1412, 0.0
      %v1522 = vadd.f32 %v1520, %v1521
      %v1523 = vsel %vm1439, %v1417, 0.0
      %v1524 = vadd.f32 %v1522, %v1523
      %v1525 = vsel %vm1439, %v1420, 0.0
      %v1526 = vadd.f32 %v1524, %v1525
      %v1527 = vsel %vm1439, %v1425, 0.0
      %v1528 = vadd.f32 %v1526, %v1527
      %v1529 = vsel %vm1439, %v1428, 0.0
      %v1530 = vadd.f32 %v1528, %v1529
      %v1531 = vsel %vm1439, %v1433, 0.0
      %v1532 = vadd.f32 %v1530, %v1531
      %v1533 = vsel %vm1439, %v1436, 0.0
      %v1534 = vadd.f32 %v1532, %v1533
      %v1535 = vrot.slane %v1534, 4
      %v1536 = vadd.f32 %v1534, %v1535
      %v1537 = vrot.slane %v1536, 2
      %v1538 = vadd.f32 %v1536, %v1537
      %v1539 = vrot.slane %v1538, 1
      %v1540 = vadd.f32 %v1538, %v1539
      %vm1541 = vcmask 57344
      %1542 = vst.msk [vmem:[%s181] sm:$0x1] %vm1541, %v1540
      %v1543 = vmul.f32 %v1313, %v1313
      %v1544 = vmul.f32 %v1316, %v1316
      %v1545 = vmul.f32 %v1321, %v1321
      %v1546 = vmul.f32 %v1324, %v1324
      %v1547 = vmul.f32 %v1329, %v1329
      %v1548 = vmul.f32 %v1332, %v1332
      %v1549 = vmul.f32 %v1337, %v1337
      %v1550 = vmul.f32 %v1340, %v1340
      %v1551 = vmul.f32 %v1345, %v1345
      %v1552 = vmul.f32 %v1348, %v1348
      %v1553 = vmul.f32 %v1353, %v1353
      %v1554 = vmul.f32 %v1356, %v1356
      %v1555 = vmul.f32 %v1361, %v1361
      %v1556 = vmul.f32 %v1364, %v1364
      %v1557 = vmul.f32 %v1369, %v1369
      %v1558 = vmul.f32 %v1372, %v1372
      %v1559 = vmul.f32 %v1377, %v1377
      %v1560 = vmul.f32 %v1380, %v1380
      %v1561 = vmul.f32 %v1385, %v1385
      %v1562 = vmul.f32 %v1388, %v1388
      %v1563 = vmul.f32 %v1393, %v1393
      %v1564 = vmul.f32 %v1396, %v1396
      %v1565 = vmul.f32 %v1401, %v1401
      %v1566 = vmul.f32 %v1404, %v1404
      %v1567 = vmul.f32 %v1409, %v1409
      %v1568 = vmul.f32 %v1412, %v1412
      %v1569 = vmul.f32 %v1417, %v1417
      %v1570 = vmul.f32 %v1420, %v1420
      %v1571 = vmul.f32 %v1425, %v1425
      %v1572 = vmul.f32 %v1428, %v1428
      %v1573 = vmul.f32 %v1433, %v1433
      %v1574 = vmul.f32 %v1436, %v1436
      %v1575 = vsel %vm1439, %v1543, 0.0
      %v1576 = vsel %vm1439, %v1544, 0.0
      %v1577 = vadd.f32 %v1575, %v1576
      %v1578 = vsel %vm1439, %v1545, 0.0
      %v1579 = vadd.f32 %v1577, %v1578
      %v1580 = vsel %vm1439, %v1546, 0.0
      %v1581 = vadd.f32 %v1579, %v1580
      %v1582 = vsel %vm1439, %v1547, 0.0
      %v1583 = vadd.f32 %v1581, %v1582
      %v1584 = vsel %vm1439, %v1548, 0.0
      %v1585 = vadd.f32 %v1583, %v1584
      %v1586 = vsel %vm1439, %v1549, 0.0
      %v1587 = vadd.f32 %v1585, %v1586
      %v1588 = vsel %vm1439, %v1550, 0.0
      %v1589 = vadd.f32 %v1587, %v1588
      %v1590 = vsel %vm1439, %v1551, 0.0
      %v1591 = vadd.f32 %v1589, %v1590
      %v1592 = vsel %vm1439, %v1552, 0.0
      %v1593 = vadd.f32 %v1591, %v1592
      %v1594 = vsel %vm1439, %v1553, 0.0
      %v1595 = vadd.f32 %v1593, %v1594
      %v1596 = vsel %vm1439, %v1554, 0.0
      %v1597 = vadd.f32 %v1595, %v1596
      %v1598 = vsel %vm1439, %v1555, 0.0
      %v1599 = vadd.f32 %v1597, %v1598
      %v1600 = vsel %vm1439, %v1556, 0.0
      %v1601 = vadd.f32 %v1599, %v1600
      %v1602 = vsel %vm1439, %v1557, 0.0
      %v1603 = vadd.f32 %v1601, %v1602
      %v1604 = vsel %vm1439, %v1558, 0.0
      %v1605 = vadd.f32 %v1603, %v1604
      %v1606 = vsel %vm1439, %v1559, 0.0
      %v1607 = vadd.f32 %v1605, %v1606
      %v1608 = vsel %vm1439, %v1560, 0.0
      %v1609 = vadd.f32 %v1607, %v1608
      %v1610 = vsel %vm1439, %v1561, 0.0
      %v1611 = vadd.f32 %v1609, %v1610
      %v1612 = vsel %vm1439, %v1562, 0.0
      %v1613 = vadd.f32 %v1611, %v1612
      %v1614 = vsel %vm1439, %v1563, 0.0
      %v1615 = vadd.f32 %v1613, %v1614
      %v1616 = vsel %vm1439, %v1564, 0.0
      %v1617 = vadd.f32 %v1615, %v1616
      %v1618 = vsel %vm1439, %v1565, 0.0
      %v1619 = vadd.f32 %v1617, %v1618
      %v1620 = vsel %vm1439, %v1566, 0.0
      %v1621 = vadd.f32 %v1619, %v1620
      %v1622 = vsel %vm1439, %v1567, 0.0
      %v1623 = vadd.f32 %v1621, %v1622
      %v1624 = vsel %vm1439, %v1568, 0.0
      %v1625 = vadd.f32 %v1623, %v1624
      %v1626 = vsel %vm1439, %v1569, 0.0
      %v1627 = vadd.f32 %v1625, %v1626
      %v1628 = vsel %vm1439, %v1570, 0.0
      %v1629 = vadd.f32 %v1627, %v1628
      %v1630 = vsel %vm1439, %v1571, 0.0
      %v1631 = vadd.f32 %v1629, %v1630
      %v1632 = vsel %vm1439, %v1572, 0.0
      %v1633 = vadd.f32 %v1631, %v1632
      %v1634 = vsel %vm1439, %v1573, 0.0
      %v1635 = vadd.f32 %v1633, %v1634
      %v1636 = vsel %vm1439, %v1574, 0.0
      %v1637 = vadd.f32 %v1635, %v1636
      %v1638 = vrot.slane %v1637, 4
      %v1639 = vadd.f32 %v1637, %v1638
      %v1640 = vrot.slane %v1639, 2
      %v1641 = vadd.f32 %v1639, %v1640
      %v1642 = vrot.slane %v1641, 1
      %v1643 = vadd.f32 %v1641, %v1642
      %1644 = vst.msk [vmem:[%s181 + $0x1] sm:$0x1] %vm1541, %v1643
      %p1645 = scmp.lt.s32.totalorder %s15, 1
      %s1646 = scalar_select %p1645, %s15, 1
      %s1647 = smul.addr %s1646, 32
      %s1648 = smul.addr %s1647, 8
      %s1649 = scalar_lea.vmem %s2, %s1648
      %p1650 = scmp.lt.s32.totalorder %s15, 1
      %s1651 = scalar_select %p1650, %s15, 1
      %s1652 = smul.addr %s1651, 2
      %s1653 = scalar_lea.vmem %s3, %s1652
      // Predicated region
      $region29: #{plain_block_forward.3} parent=27 // pred_check
        %p1654 = pneg %p80
      $region30: #{plain_block_forward.3} parent=27 // pred_check_branch
        %1656 = sbr.rel (%p1654) target = $region32
      $region31: #{plain_block_forward.3} parent=27 // pred_region
        _
      $region32: #{plain_block_forward.3} parent=27 // pred_fallthru
        _
      // Predicated region
      $region33: #{plain_block_forward.3} parent=27 // pred_check
        %p1657 = pneg %p106
      $region34: #{plain_block_forward.3} parent=27 // pred_check_branch
        %1659 = sbr.rel (%p1657) target = $region36
      $region35: #{plain_block_forward.3} parent=27 // pred_region
        _
      $region36: #{plain_block_forward.3} parent=27 // pred_fallthru
        _
    $region28: #{plain_block_forward.3} parent=5 // pred_fallthru
      _
    %p1660 = scmp.le.s32.totalorder 2, %s10
    // Predicated region
    $region37: #{plain_block_forward.3} parent=5 // pred_check
      %p1661 = pneg %p1660
    $region38: #{plain_block_forward.3} parent=5 // pred_check_branch
      %1663 = sbr.rel (%p1661) target = $region40
    $region39: #{plain_block_forward.3} parent=5 // pred_region
      %s1664 = ssub.s32 %s10, 2
      // Predicated region
      $region41: #{plain_block_forward.3} parent=39 // pred_check
        %p1665 = pneg %p86
      $region42: #{plain_block_forward.3} parent=39 // pred_check_branch
        %1667 = sbr.rel (%p1665) target = $region44
      $region43: #{plain_block_forward.3} parent=39 // pred_region
        %p1668 = scmp.lt.s32.totalorder %s16, 1
        %s1669 = scalar_select %p1668, %s16, 1
        %s1670 = smul.addr %s1669, 32
        %s1671 = smul.addr %s1670, 8
        %s1672 = scalar_lea.vmem %s2, %s1671
      $region44: #{plain_block_forward.3} parent=39 // pred_fallthru
        _
      // Predicated region
      $region45: #{plain_block_forward.3} parent=39 // pred_check
        %p1673 = pneg %p112
      $region46: #{plain_block_forward.3} parent=39 // pred_check_branch
        %1675 = sbr.rel (%p1673) target = $region48
      $region47: #{plain_block_forward.3} parent=39 // pred_region
        %p1676 = scmp.lt.s32.totalorder %s16, 1
        %s1677 = scalar_select %p1676, %s16, 1
        %s1678 = smul.addr %s1677, 2
        %s1679 = scalar_lea.vmem %s3, %s1678
      $region48: #{plain_block_forward.3} parent=39 // pred_fallthru
        _
    $region40: #{plain_block_forward.3} parent=5 // pred_fallthru
      _
  $region6: #{plain_block_forward.3} parent=0 // loop_footer
    %s14 = sadd.s32 1, %s10
  $region7: #{plain_block_forward.3} parent=0 // loop_footer_branch
    %9 = sbr.rel target = $region3
  $region8: #{plain_block_forward.3} parent=0 // loop_exit
    _

// kernel: plain_block_forward.4
$region0: #{plain_block_forward.4}
  #allocation0 [shape = 'u32[]', space=smem, size = 0x4, offset = 0x4, fixed_abs, tag = 'smem constant byte address 0x4 - core index']
  #allocation1 [shape = 'u32[144,128]{1,0:T(1,128)}', space=vmem, size = 0x12000, scoped, tag = 'internal scratch']
  #allocation2 [shape = 'f32[18,18,8]{2,1,0:T(8,128)}', space=vmem, size = 0x36000, scoped, tag = 'scratch operand']
  #allocation3 [shape = 'bf16[256,72]{1,0:T(16,128)(2,1)}', space=vmem, size = 0x10000, scoped, tag = 'scratch operand']
  %s0 = inlined_call_operand.vmem [shape: f32[2,256,8], index: 0, kind: input, shape index: {}]
  %s1 = inlined_call_operand.vmem [shape: bf16[72,8], index: 1, kind: input, shape index: {}]
  %s2 = inlined_call_operand.vmem [shape: f32[1,8], index: 2, kind: input, shape index: {}]
  %s3 = inlined_call_operand.vmem [shape: f32[1,8], index: 3, kind: input, shape index: {}]
  %s4 = inlined_call_operand.vmem [shape: f32[2,256,8], index: 4, kind: output, shape index: {0}]
  %s5 = inlined_call_operand.vmem [shape: f32[2,2,8], index: 5, kind: output, shape index: {1}]
  %6 = xla_tuple %s4, %s5
  %s7 = sld [smem:[#allocation0]]
  $region57: #{plain_block_forward.4} parent=0
    _
  %s9 = ssub.s32 1, %s7
  %s10 = scalar_select 0, %s9, %s7
  loop: start=0, step=1, limit=4
  $region2: #{plain_block_forward.4} parent=0 // loop_pre_header
    _
  $region3: #{plain_block_forward.4} parent=0 // loop_header
    %s12 = sphi 0, %s16
    %p13 = scmp.ge.s32.totalorder %s12, 4
    %s22 = sphi 0, %s24
    %s25 = sphi 0, %s22
    %s26 = sphi 0, %s25
    %s42 = sphi 0, %s26
    %s46 = sphi 0, %s46
    %s48 = sphi 0, %s46
    %s49 = sphi 0, %s48
    %s63 = sphi 0, %s49
    %s67 = sphi 0, %s67
    %s69 = sphi 0, %s67
    %s70 = sphi 0, %s69
    %s84 = sphi 0, %s70
    %s88 = sphi 0, %s88
    %s90 = sphi 0, %s88
    %s91 = sphi 0, %s90
    %s105 = sphi 0, %s91
    %s111 = sphi 0, %s113
    %s114 = sphi 0, %s111
    %s115 = sphi 0, %s114
    %s131 = sphi 0, %s115
    %s137 = sphi 0, %s139
    %s140 = sphi 0, %s137
    %s141 = sphi 0, %s140
    %s157 = sphi 0, %s141
  $region4: #{plain_block_forward.4} parent=0 // loop_header_branch
    %15 = sbr.rel (%p13) target = $region8
  $region5: #{plain_block_forward.4} parent=0 // loop_body
    %s17 = ssub.s32 %s12, 1
    %s18 = ssub.s32 %s12, 2
    %s19 = sadd.s32 %s12, 1
    %s20 = ssub.s32 %s12, %s19
    %p21 = scmp.eq.s32.totalorder %s20, 0
    %s23 = sadd.s32 %s22, 1
    %s24 = scalar_select %p21, %s22, %s23
    %p27 = pneg %p21
    %p28 = scmp.eq.s32.totalorder %s12, 1
    %p29 = por %p27, %p28
    %p30 = scmp.ne.s32.totalorder %s22, %s25
    %p31 = scmp.eq.s32.totalorder %s12, 0
    %p32 = por %p30, %p31
    %p33 = scmp.ne.s32.totalorder %s22, %s25
    %p34 = scmp.eq.s32.totalorder %s17, 1
    %p35 = por %p33, %p34
    %p36 = scmp.ne.s32.totalorder %s25, %s26
    %p37 = scmp.eq.s32.totalorder %s17, 0
    %p38 = por %p36, %p37
    %p39 = scmp.ne.s32.totalorder %s25, %s26
    %p40 = scmp.eq.s32.totalorder %s18, 1
    %p41 = por %p39, %p40
    %p43 = scmp.ne.s32.totalorder %s26, %s42
    %p44 = scmp.eq.s32.totalorder %s18, 0
    %p45 = por %p43, %p44
    %s47 = sadd.s32 %s46, 1
    %p50 = scmp.eq.s32.totalorder %s12, 1
    %p51 = scmp.ne.s32.totalorder %s46, %s48
    %p52 = scmp.eq.s32.totalorder %s12, 0
    %p53 = por %p51, %p52
    %p54 = scmp.ne.s32.totalorder %s46, %s48
    %p55 = scmp.eq.s32.totalorder %s17, 1
    %p56 = por %p54, %p55
    %p57 = scmp.ne.s32.totalorder %s48, %s49
    %p58 = scmp.eq.s32.totalorder %s17, 0
    %p59 = por %p57, %p58
    %p60 = scmp.ne.s32.totalorder %s48, %s49
    %p61 = scmp.eq.s32.totalorder %s18, 1
    %p62 = por %p60, %p61
    %p64 = scmp.ne.s32.totalorder %s49, %s63
    %p65 = scmp.eq.s32.totalorder %s18, 0
    %p66 = por %p64, %p65
    %s68 = sadd.s32 %s67, 1
    %p71 = scmp.eq.s32.totalorder %s12, 1
    %p72 = scmp.ne.s32.totalorder %s67, %s69
    %p73 = scmp.eq.s32.totalorder %s12, 0
    %p74 = por %p72, %p73
    %p75 = scmp.ne.s32.totalorder %s67, %s69
    %p76 = scmp.eq.s32.totalorder %s17, 1
    %p77 = por %p75, %p76
    %p78 = scmp.ne.s32.totalorder %s69, %s70
    %p79 = scmp.eq.s32.totalorder %s17, 0
    %p80 = por %p78, %p79
    %p81 = scmp.ne.s32.totalorder %s69, %s70
    %p82 = scmp.eq.s32.totalorder %s18, 1
    %p83 = por %p81, %p82
    %p85 = scmp.ne.s32.totalorder %s70, %s84
    %p86 = scmp.eq.s32.totalorder %s18, 0
    %p87 = por %p85, %p86
    %s89 = sadd.s32 %s88, 1
    %p92 = scmp.eq.s32.totalorder %s12, 1
    %p93 = scmp.ne.s32.totalorder %s88, %s90
    %p94 = scmp.eq.s32.totalorder %s12, 0
    %p95 = por %p93, %p94
    %p96 = scmp.ne.s32.totalorder %s88, %s90
    %p97 = scmp.eq.s32.totalorder %s17, 1
    %p98 = por %p96, %p97
    %p99 = scmp.ne.s32.totalorder %s90, %s91
    %p100 = scmp.eq.s32.totalorder %s17, 0
    %p101 = por %p99, %p100
    %p102 = scmp.ne.s32.totalorder %s90, %s91
    %p103 = scmp.eq.s32.totalorder %s18, 1
    %p104 = por %p102, %p103
    %p106 = scmp.ne.s32.totalorder %s91, %s105
    %p107 = scmp.eq.s32.totalorder %s18, 0
    %p108 = por %p106, %p107
    %s109 = ssub.s32 %s12, %s19
    %p110 = scmp.eq.s32.totalorder %s109, 0
    %s112 = sadd.s32 %s111, 1
    %s113 = scalar_select %p110, %s111, %s112
    %p116 = pneg %p110
    %p117 = scmp.eq.s32.totalorder %s12, 1
    %p118 = por %p116, %p117
    %p119 = scmp.ne.s32.totalorder %s111, %s114
    %p120 = scmp.eq.s32.totalorder %s12, 0
    %p121 = por %p119, %p120
    %p122 = scmp.ne.s32.totalorder %s111, %s114
    %p123 = scmp.eq.s32.totalorder %s17, 1
    %p124 = por %p122, %p123
    %p125 = scmp.ne.s32.totalorder %s114, %s115
    %p126 = scmp.eq.s32.totalorder %s17, 0
    %p127 = por %p125, %p126
    %p128 = scmp.ne.s32.totalorder %s114, %s115
    %p129 = scmp.eq.s32.totalorder %s18, 1
    %p130 = por %p128, %p129
    %p132 = scmp.ne.s32.totalorder %s115, %s131
    %p133 = scmp.eq.s32.totalorder %s18, 0
    %p134 = por %p132, %p133
    %s135 = ssub.s32 %s12, %s19
    %p136 = scmp.eq.s32.totalorder %s135, 0
    %s138 = sadd.s32 %s137, 1
    %s139 = scalar_select %p136, %s137, %s138
    %p142 = pneg %p136
    %p143 = scmp.eq.s32.totalorder %s12, 1
    %p144 = por %p142, %p143
    %p145 = scmp.ne.s32.totalorder %s137, %s140
    %p146 = scmp.eq.s32.totalorder %s12, 0
    %p147 = por %p145, %p146
    %p148 = scmp.ne.s32.totalorder %s137, %s140
    %p149 = scmp.eq.s32.totalorder %s17, 1
    %p150 = por %p148, %p149
    %p151 = scmp.ne.s32.totalorder %s140, %s141
    %p152 = scmp.eq.s32.totalorder %s17, 0
    %p153 = por %p151, %p152
    %p154 = scmp.ne.s32.totalorder %s140, %s141
    %p155 = scmp.eq.s32.totalorder %s18, 1
    %p156 = por %p154, %p155
    %p158 = scmp.ne.s32.totalorder %s141, %s157
    %p159 = scmp.eq.s32.totalorder %s18, 0
    %p160 = por %p158, %p159
    %p161 = scmp.le.s32.totalorder 1, %s12
    %p162 = scmp.lt.s32.totalorder %s12, 3
    %p163 = pnand %p161, %p162
    %p164 = pneg %p163
    // Predicated region
    $region9: #{plain_block_forward.4} parent=5 // pred_check
      _
    $region10: #{plain_block_forward.4} parent=5 // pred_check_branch
      %166 = sbr.rel (%p163) target = $region12
    $region11: #{plain_block_forward.4} parent=5 // pred_region
      %s167 = ssub.s32 %s12, 1
      // Predicated region
      $region13: #{plain_block_forward.4} parent=11 // pred_check
        %p168 = pneg %p59
      $region14: #{plain_block_forward.4} parent=11 // pred_check_branch
        %170 = sbr.rel (%p168) target = $region16
      $region15: #{plain_block_forward.4} parent=11 // pred_region
        _
      $region16: #{plain_block_forward.4} parent=11 // pred_fallthru
        _
      // Predicated region
      $region17: #{plain_block_forward.4} parent=11 // pred_check
        %p171 = pneg %p80
      $region18: #{plain_block_forward.4} parent=11 // pred_check_branch
        %173 = sbr.rel (%p171) target = $region20
      $region19: #{plain_block_forward.4} parent=11 // pred_region
        _
      $region20: #{plain_block_forward.4} parent=11 // pred_fallthru
        _
      // Predicated region
      $region21: #{plain_block_forward.4} parent=11 // pred_check
        %p174 = pneg %p101
      $region22: #{plain_block_forward.4} parent=11 // pred_check_branch
        %176 = sbr.rel (%p174) target = $region24
      $region23: #{plain_block_forward.4} parent=11 // pred_region
        _
      $region24: #{plain_block_forward.4} parent=11 // pred_fallthru
        _
    $region12: #{plain_block_forward.4} parent=5 // pred_fallthru
      _
    %p177 = scmp.lt.s32.totalorder %s12, 2
    // Predicated region
    $region25: #{plain_block_forward.4} parent=5 // pred_check
      %p178 = pneg %p177
    $region26: #{plain_block_forward.4} parent=5 // pred_check_branch
      %180 = sbr.rel (%p178) target = $region28
    $region27: #{plain_block_forward.4} parent=5 // pred_region
      // Predicated region
      $region29: #{plain_block_forward.4} parent=27 // pred_check
        %p181 = pneg %p32
      $region30: #{plain_block_forward.4} parent=27 // pred_check_branch
        %183 = sbr.rel (%p181) target = $region32
      $region31: #{plain_block_forward.4} parent=27 // pred_region
        %p184 = scmp.lt.s32.totalorder %s12, 1
        %s185 = scalar_select %p184, %s12, 1
        %s186 = smul.addr %s185, 32
        %s187 = smul.addr %s186, 8
        %s188 = scalar_lea.vmem %s0, %s187
      $region32: #{plain_block_forward.4} parent=27 // pred_fallthru
        _
    $region28: #{plain_block_forward.4} parent=5 // pred_fallthru
      _
    %p189 = scmp.le.s32.totalorder 1, %s12
    %p190 = scmp.lt.s32.totalorder %s12, 3
    %p191 = pnand %p189, %p190
    %p192 = pneg %p191
    // Predicated region
    $region33: #{plain_block_forward.4} parent=5 // pred_check
      _
    $region34: #{plain_block_forward.4} parent=5 // pred_check_branch
      %194 = sbr.rel (%p191) target = $region36
    $region35: #{plain_block_forward.4} parent=5 // pred_region
      %s195 = ssub.s32 %s12, 1
      %p196 = scmp.lt.s32.totalorder %s17, 1
      %s197 = scalar_select %p196, %s17, 1
      %s198 = smul.addr %s197, 32
      %s199 = smul.addr %s198, 8
      %s200 = scalar_lea.vmem %s0, %s199
      %p201 = pneg %p38
      %p202 = pneg %p35
      %p203 = pneg %p59
      %p204 = pneg %p56
      %p205 = pneg %p80
      %p206 = pneg %p77
      %p207 = pneg %p101
      %p208 = pneg %p98
      %p209 = pneg %p127
      %p210 = pneg %p124
      %p211 = scmp.lt.s32.totalorder %s17, 1
      %s212 = scalar_select %p211, %s17, 1
      %s213 = smul.addr %s212, 32
      %s214 = smul.addr %s213, 8
      %s215 = scalar_lea.vmem %s4, %s214
      %p216 = pneg %p153
      %p217 = pneg %p150
      %p218 = scmp.lt.s32.totalorder %s17, 1
      %s219 = scalar_select %p218, %s17, 1
      %s220 = smul.addr %s219, 2
      %s221 = scalar_lea.vmem %s5, %s220
      %p222 = scmp.lt.s32.totalorder %s17, 1
      %s223 = scalar_select %p222, %s17, 1
      %s224 = smul.addr %s223, 32
      %s225 = smul.addr %s224, 8
      %s226 = scalar_lea.vmem %s0, %s225
      %p227 = scmp.lt.s32.totalorder %s17, 1
      %s228 = scalar_select %p227, %s17, 1
      %s229 = smul.addr %s228, 32
      %s230 = smul.addr %s229, 8
      %s231 = scalar_lea.vmem %s4, %s230
      %p232 = scmp.lt.s32.totalorder %s17, 1
      %s233 = scalar_select %p232, %s17, 1
      %s234 = smul.addr %s233, 2
      %s235 = scalar_lea.vmem %s5, %s234
      %v237 = vld [vmem:[%s226] sm:$0xff]
      %v238 = vld [vmem:[%s226 + $0x8] sm:$0xff]
      %v239 = vld [vmem:[%s226 + $0x10] sm:$0xff]
      %v240 = vld [vmem:[%s226 + $0x18] sm:$0xff]
      %v241 = vld [vmem:[%s226 + $0x20] sm:$0xff]
      %v242 = vld [vmem:[%s226 + $0x28] sm:$0xff]
      %v243 = vld [vmem:[%s226 + $0x30] sm:$0xff]
      %v244 = vld [vmem:[%s226 + $0x38] sm:$0xff]
      %v245 = vld [vmem:[%s226 + $0x40] sm:$0xff]
      %v246 = vld [vmem:[%s226 + $0x48] sm:$0xff]
      %v247 = vld [vmem:[%s226 + $0x50] sm:$0xff]
      %v248 = vld [vmem:[%s226 + $0x58] sm:$0xff]
      %v249 = vld [vmem:[%s226 + $0x60] sm:$0xff]
      %v250 = vld [vmem:[%s226 + $0x68] sm:$0xff]
      %v251 = vld [vmem:[%s226 + $0x70] sm:$0xff]
      %v252 = vld [vmem:[%s226 + $0x78] sm:$0xff]
      %v253 = vld [vmem:[%s226 + $0x80] sm:$0xff]
      %v254 = vld [vmem:[%s226 + $0x88] sm:$0xff]
      %v255 = vld [vmem:[%s226 + $0x90] sm:$0xff]
      %v256 = vld [vmem:[%s226 + $0x98] sm:$0xff]
      %v257 = vld [vmem:[%s226 + $0xa0] sm:$0xff]
      %v258 = vld [vmem:[%s226 + $0xa8] sm:$0xff]
      %v259 = vld [vmem:[%s226 + $0xb0] sm:$0xff]
      %v260 = vld [vmem:[%s226 + $0xb8] sm:$0xff]
      %v261 = vld [vmem:[%s226 + $0xc0] sm:$0xff]
      %v262 = vld [vmem:[%s226 + $0xc8] sm:$0xff]
      %v263 = vld [vmem:[%s226 + $0xd0] sm:$0xff]
      %v264 = vld [vmem:[%s226 + $0xd8] sm:$0xff]
      %v265 = vld [vmem:[%s226 + $0xe0] sm:$0xff]
      %v266 = vld [vmem:[%s226 + $0xe8] sm:$0xff]
      %v267 = vld [vmem:[%s226 + $0xf0] sm:$0xff]
      %v268 = vld [vmem:[%s226 + $0xf8] sm:$0xff]
      %v269 = vld [vmem:[%s2] sm:$0x1]
      %v271 = vlaneseq
      %v272 = vshrl.u32 %v271, 7
      %v273 = vsub.s32 0, %v272
      %v274 = vrot.slane %v269, %v273
      %v276 = vmul.f32 %v237, %v274
      %v277 = vmul.f32 %v238, %v274
      %v278 = vmul.f32 %v239, %v274
      %v279 = vmul.f32 %v240, %v274
      %v280 = vmul.f32 %v241, %v274
      %v281 = vmul.f32 %v242, %v274
      %v282 = vmul.f32 %v243, %v274
      %v283 = vmul.f32 %v244, %v274
      %v284 = vmul.f32 %v245, %v274
      %v285 = vmul.f32 %v246, %v274
      %v286 = vmul.f32 %v247, %v274
      %v287 = vmul.f32 %v248, %v274
      %v288 = vmul.f32 %v249, %v274
      %v289 = vmul.f32 %v250, %v274
      %v290 = vmul.f32 %v251, %v274
      %v291 = vmul.f32 %v252, %v274
      %v292 = vmul.f32 %v253, %v274
      %v293 = vmul.f32 %v254, %v274
      %v294 = vmul.f32 %v255, %v274
      %v295 = vmul.f32 %v256, %v274
      %v296 = vmul.f32 %v257, %v274
      %v297 = vmul.f32 %v258, %v274
      %v298 = vmul.f32 %v259, %v274
      %v299 = vmul.f32 %v260, %v274
      %v300 = vmul.f32 %v261, %v274
      %v301 = vmul.f32 %v262, %v274
      %v302 = vmul.f32 %v263, %v274
      %v303 = vmul.f32 %v264, %v274
      %v304 = vmul.f32 %v265, %v274
      %v305 = vmul.f32 %v266, %v274
      %v306 = vmul.f32 %v267, %v274
      %v307 = vmul.f32 %v268, %v274
      %v308 = vld [vmem:[%s3] sm:$0x1]
      %v310 = vlaneseq
      %v311 = vshrl.u32 %v310, 7
      %v312 = vsub.s32 0, %v311
      %v313 = vrot.slane %v308, %v312
      %v315 = vadd.f32 %v276, %v313
      %v316 = vadd.f32 %v277, %v313
      %v317 = vadd.f32 %v278, %v313
      %v318 = vadd.f32 %v279, %v313
      %v319 = vadd.f32 %v280, %v313
      %v320 = vadd.f32 %v281, %v313
      %v321 = vadd.f32 %v282, %v313
      %v322 = vadd.f32 %v283, %v313
      %v323 = vadd.f32 %v284, %v313
      %v324 = vadd.f32 %v285, %v313
      %v325 = vadd.f32 %v286, %v313
      %v326 = vadd.f32 %v287, %v313
      %v327 = vadd.f32 %v288, %v313
      %v328 = vadd.f32 %v289, %v313
      %v329 = vadd.f32 %v290, %v313
      %v330 = vadd.f32 %v291, %v313
      %v331 = vadd.f32 %v292, %v313
      %v332 = vadd.f32 %v293, %v313
      %v333 = vadd.f32 %v294, %v313
      %v334 = vadd.f32 %v295, %v313
      %v335 = vadd.f32 %v296, %v313
      %v336 = vadd.f32 %v297, %v313
      %v337 = vadd.f32 %v298, %v313
      %v338 = vadd.f32 %v299, %v313
      %v339 = vadd.f32 %v300, %v313
      %v340 = vadd.f32 %v301, %v313
      %v341 = vadd.f32 %v302, %v313
      %v342 = vadd.f32 %v303, %v313
      %v343 = vadd.f32 %v304, %v313
      %v344 = vadd.f32 %v305, %v313
      %v345 = vadd.f32 %v306, %v313
      %v346 = vadd.f32 %v307, %v313
      %v347 = vmax.f32 %v315, 0.0
      %v348 = vmax.f32 %v316, 0.0
      %v349 = vmax.f32 %v317, 0.0
      %v350 = vmax.f32 %v318, 0.0
      %v351 = vmax.f32 %v319, 0.0
      %v352 = vmax.f32 %v320, 0.0
      %v353 = vmax.f32 %v321, 0.0
      %v354 = vmax.f32 %v322, 0.0
      %v355 = vmax.f32 %v323, 0.0
      %v356 = vmax.f32 %v324, 0.0
      %v357 = vmax.f32 %v325, 0.0
      %v358 = vmax.f32 %v326, 0.0
      %v359 = vmax.f32 %v327, 0.0
      %v360 = vmax.f32 %v328, 0.0
      %v361 = vmax.f32 %v329, 0.0
      %v362 = vmax.f32 %v330, 0.0
      %v363 = vmax.f32 %v331, 0.0
      %v364 = vmax.f32 %v332, 0.0
      %v365 = vmax.f32 %v333, 0.0
      %v366 = vmax.f32 %v334, 0.0
      %v367 = vmax.f32 %v335, 0.0
      %v368 = vmax.f32 %v336, 0.0
      %v369 = vmax.f32 %v337, 0.0
      %v370 = vmax.f32 %v338, 0.0
      %v371 = vmax.f32 %v339, 0.0
      %v372 = vmax.f32 %v340, 0.0
      %v373 = vmax.f32 %v341, 0.0
      %v374 = vmax.f32 %v342, 0.0
      %v375 = vmax.f32 %v343, 0.0
      %v376 = vmax.f32 %v344, 0.0
      %v377 = vmax.f32 %v345, 0.0
      %v378 = vmax.f32 %v346, 0.0
      %vm379 = vcmask 64512
      %380 = vst.msk [vmem:[#allocation2] sm:$0xff] %vm379, 0.0
      %381 = vst.msk [vmem:[#allocation2 + $0x8] sm:$0xff] %vm379, 0.0
      %vm382 = vcmask 58368
      %383 = vst.msk [vmem:[#allocation2 + $0x10] sm:$0x3] %vm382, 0.0
      %s384 = scalar_lea.vmem [#allocation2], 408
      %385 = vst.msk [vmem:[%s384] sm:$0xff] %vm379, 0.0
      %386 = vst.msk [vmem:[%s384 + $0x8] sm:$0xff] %vm379, 0.0
      %387 = vst.msk [vmem:[%s384 + $0x10] sm:$0x3] %vm382, 0.0
      %vm388 = vcmask 57344
      %389 = vst.msk [vmem:[#allocation2] sm:$0x1] %vm388, 0.0
      %390 = vst.msk [vmem:[#allocation2 + $0x18] sm:$0x1] %vm388, 0.0
      %391 = vst.msk [vmem:[#allocation2 + $0x30] sm:$0x1] %vm388, 0.0
      %392 = vst.msk [vmem:[#allocation2 + $0x48] sm:$0x1] %vm388, 0.0
      %393 = vst.msk [vmem:[#allocation2 + $0x60] sm:$0x1] %vm388, 0.0
      %394 = vst.msk [vmem:[#allocation2 + $0x78] sm:$0x1] %vm388, 0.0
      %395 = vst.msk [vmem:[#allocation2 + $0x90] sm:$0x1] %vm388, 0.0
      %396 = vst.msk [vmem:[#allocation2 + $0xa8] sm:$0x1] %vm388, 0.0
      %397 = vst.msk [vmem:[#allocation2 + $0xc0] sm:$0x1] %vm388, 0.0
      %398 = vst.msk [vmem:[#allocation2 + $0xd8] sm:$0x1] %vm388, 0.0
      %399 = vst.msk [vmem:[#allocation2 + $0xf0] sm:$0x1] %vm388, 0.0
      %400 = vst.msk [vmem:[#allocation2 + $0x108] sm:$0x1] %vm388, 0.0
      %401 = vst.msk [vmem:[#allocation2 + $0x120] sm:$0x1] %vm388, 0.0
      %402 = vst.msk [vmem:[#allocation2 + $0x138] sm:$0x1] %vm388, 0.0
      %403 = vst.msk [vmem:[#allocation2 + $0x150] sm:$0x1] %vm388, 0.0
      %404 = vst.msk [vmem:[#allocation2 + $0x168] sm:$0x1] %vm388, 0.0
      %405 = vst.msk [vmem:[#allocation2 + $0x180] sm:$0x1] %vm388, 0.0
      %406 = vst.msk [vmem:[#allocation2 + $0x198] sm:$0x1] %vm388, 0.0
      %407 = vst.msk [vmem:[#allocation2 + $0x11] sm:$0x1] %vm388, 0.0
      %408 = vst.msk [vmem:[#allocation2 + $0x29] sm:$0x1] %vm388, 0.0
      %409 = vst.msk [vmem:[#allocation2 + $0x41] sm:$0x1] %vm388, 0.0
      %410 = vst.msk [vmem:[#allocation2 + $0x59] sm:$0x1] %vm388, 0.0
      %411 = vst.msk [vmem:[#allocation2 + $0x71] sm:$0x1] %vm388, 0.0
      %412 = vst.msk [vmem:[#allocation2 + $0x89] sm:$0x1] %vm388, 0.0
      %413 = vst.msk [vmem:[#allocation2 + $0xa1] sm:$0x1] %vm388, 0.0
      %414 = vst.msk [vmem:[#allocation2 + $0xb9] sm:$0x1] %vm388, 0.0
      %415 = vst.msk [vmem:[#allocation2 + $0xd1] sm:$0x1] %vm388, 0.0
      %416 = vst.msk [vmem:[#allocation2 + $0xe9] sm:$0x1] %vm388, 0.0
      %417 = vst.msk [vmem:[#allocation2 + $0x101] sm:$0x1] %vm388, 0.0
      %418 = vst.msk [vmem:[#allocation2 + $0x119] sm:$0x1] %vm388, 0.0
      %419 = vst.msk [vmem:[#allocation2 + $0x131] sm:$0x1] %vm388, 0.0
      %420 = vst.msk [vmem:[#allocation2 + $0x149] sm:$0x1] %vm388, 0.0
      %421 = vst.msk [vmem:[#allocation2 + $0x161] sm:$0x1] %vm388, 0.0
      %422 = vst.msk [vmem:[#allocation2 + $0x179] sm:$0x1] %vm388, 0.0
      %423 = vst.msk [vmem:[#allocation2 + $0x191] sm:$0x1] %vm388, 0.0
      %424 = vst.msk [vmem:[#allocation2 + $0x1a9] sm:$0x1] %vm388, 0.0
      %s425 = scalar_lea.vmem [#allocation2], 24
      %426 = vst.msk [vmem:[%s425 + $0x1] sm:$0xff] %vm379, %v347
      %427 = vst.msk [vmem:[%s425 + $0x9] sm:$0xff] %vm379, %v348
      %428 = vst.msk [vmem:[%s425 + $0x19] sm:$0xff] %vm379, %v349
      %429 = vst.msk [vmem:[%s425 + $0x21] sm:$0xff] %vm379, %v350
      %430 = vst.msk [vmem:[%s425 + $0x31] sm:$0xff] %vm379, %v351
      %431 = vst.msk [vmem:[%s425 + $0x39] sm:$0xff] %vm379, %v352
      %432 = vst.msk [vmem:[%s425 + $0x49] sm:$0xff] %vm379, %v353
      %433 = vst.msk [vmem:[%s425 + $0x51] sm:$0xff] %vm379, %v354
      %434 = vst.msk [vmem:[%s425 + $0x61] sm:$0xff] %vm379, %v355
      %435 = vst.msk [vmem:[%s425 + $0x69] sm:$0xff] %vm379, %v356
      %436 = vst.msk [vmem:[%s425 + $0x79] sm:$0xff] %vm379, %v357
      %437 = vst.msk [vmem:[%s425 + $0x81] sm:$0xff] %vm379, %v358
      %438 = vst.msk [vmem:[%s425 + $0x91] sm:$0xff] %vm379, %v359
      %439 = vst.msk [vmem:[%s425 + $0x99] sm:$0xff] %vm379, %v360
      %440 = vst.msk [vmem:[%s425 + $0xa9] sm:$0xff] %vm379, %v361
      %441 = vst.msk [vmem:[%s425 + $0xb1] sm:$0xff] %vm379, %v362
      %442 = vst.msk [vmem:[%s425 + $0xc1] sm:$0xff] %vm379, %v363
      %443 = vst.msk [vmem:[%s425 + $0xc9] sm:$0xff] %vm379, %v364
      %444 = vst.msk [vmem:[%s425 + $0xd9] sm:$0xff] %vm379, %v365
      %445 = vst.msk [vmem:[%s425 + $0xe1] sm:$0xff] %vm379, %v366
      %446 = vst.msk [vmem:[%s425 + $0xf1] sm:$0xff] %vm379, %v367
      %447 = vst.msk [vmem:[%s425 + $0xf9] sm:$0xff] %vm379, %v368
      %448 = vst.msk [vmem:[%s425 + $0x109] sm:$0xff] %vm379, %v369
      %449 = vst.msk [vmem:[%s425 + $0x111] sm:$0xff] %vm379, %v370
      %450 = vst.msk [vmem:[%s425 + $0x121] sm:$0xff] %vm379, %v371
      %451 = vst.msk [vmem:[%s425 + $0x129] sm:$0xff] %vm379, %v372
      %452 = vst.msk [vmem:[%s425 + $0x139] sm:$0xff] %vm379, %v373
      %453 = vst.msk [vmem:[%s425 + $0x141] sm:$0xff] %vm379, %v374
      %454 = vst.msk [vmem:[%s425 + $0x151] sm:$0xff] %vm379, %v375
      %455 = vst.msk [vmem:[%s425 + $0x159] sm:$0xff] %vm379, %v376
      %456 = vst.msk [vmem:[%s425 + $0x169] sm:$0xff] %vm379, %v377
      %457 = vst.msk [vmem:[%s425 + $0x171] sm:$0xff] %vm379, %v378
      %v458 = vld [vmem:[#allocation2] sm:$0xff]
      %v459 = vld [vmem:[#allocation2 + $0x8] sm:$0xff]
      %v460 = vld [vmem:[#allocation2 + $0x10] sm:$0x3]
      %v461 = vld [vmem:[#allocation2 + $0x18] sm:$0xff]
      %v462 = vld [vmem:[#allocation2 + $0x20] sm:$0xff]
      %v463 = vld [vmem:[#allocation2 + $0x28] sm:$0x3]
      %v464 = vld [vmem:[#allocation2 + $0x30] sm:$0xff]
      %v465 = vld [vmem:[#allocation2 + $0x38] sm:$0xff]
      %v466 = vld [vmem:[#allocation2 + $0x40] sm:$0x3]
      %v467 = vld [vmem:[#allocation2 + $0x48] sm:$0xff]
      %v468 = vld [vmem:[#allocation2 + $0x50] sm:$0xff]
      %v469 = vld [vmem:[#allocation2 + $0x58] sm:$0x3]
      %v470 = vld [vmem:[#allocation2 + $0x60] sm:$0xff]
      %v471 = vld [vmem:[#allocation2 + $0x68] sm:$0xff]
      %v472 = vld [vmem:[#allocation2 + $0x70] sm:$0x3]
      %v473 = vld [vmem:[#allocation2 + $0x78] sm:$0xff]
      %v474 = vld [vmem:[#allocation2 + $0x80] sm:$0xff]
      %v475 = vld [vmem:[#allocation2 + $0x88] sm:$0x3]
      %v476 = vld [vmem:[#allocation2 + $0x90] sm:$0xff]
      %v477 = vld [vmem:[#allocation2 + $0x98] sm:$0xff]
      %v478 = vld [vmem:[#allocation2 + $0xa0] sm:$0x3]
      %v479 = vld [vmem:[#allocation2 + $0xa8] sm:$0xff]
      %v480 = vld [vmem:[#allocation2 + $0xb0] sm:$0xff]
      %v481 = vld [vmem:[#allocation2 + $0xb8] sm:$0x3]
      %v482 = vld [vmem:[#allocation2 + $0xc0] sm:$0xff]
      %v483 = vld [vmem:[#allocation2 + $0xc8] sm:$0xff]
      %v484 = vld [vmem:[#allocation2 + $0xd0] sm:$0x3]
      %v485 = vld [vmem:[#allocation2 + $0xd8] sm:$0xff]
      %v486 = vld [vmem:[#allocation2 + $0xe0] sm:$0xff]
      %v487 = vld [vmem:[#allocation2 + $0xe8] sm:$0x3]
      %v488 = vld [vmem:[#allocation2 + $0xf0] sm:$0xff]
      %v489 = vld [vmem:[#allocation2 + $0xf8] sm:$0xff]
      %v490 = vld [vmem:[#allocation2 + $0x100] sm:$0x3]
      %v491 = vld [vmem:[#allocation2 + $0x108] sm:$0xff]
      %v492 = vld [vmem:[#allocation2 + $0x110] sm:$0xff]
      %v493 = vld [vmem:[#allocation2 + $0x118] sm:$0x3]
      %v494 = vld [vmem:[#allocation2 + $0x120] sm:$0xff]
      %v495 = vld [vmem:[#allocation2 + $0x128] sm:$0xff]
      %v496 = vld [vmem:[#allocation2 + $0x130] sm:$0x3]
      %v497 = vld [vmem:[#allocation2 + $0x138] sm:$0xff]
      %v498 = vld [vmem:[#allocation2 + $0x140] sm:$0xff]
      %v499 = vld [vmem:[#allocation2 + $0x148] sm:$0x3]
      %v500 = vld [vmem:[#allocation2 + $0x150] sm:$0xff]
      %v501 = vld [vmem:[#allocation2 + $0x158] sm:$0xff]
      %v502 = vld [vmem:[#allocation2 + $0x160] sm:$0x3]
      %v503 = vld [vmem:[#allocation2 + $0x168] sm:$0xff]
      %v504 = vld [vmem:[#allocation2 + $0x170] sm:$0xff]
      %v505 = vld [vmem:[#allocation2 + $0x178] sm:$0x3]
      %v506 = vld [vmem:[#allocation2 + $0x180] sm:$0xff]
      %v507 = vld [vmem:[#allocation2 + $0x188] sm:$0xff]
      %v508 = vld [vmem:[#allocation2 + $0x190] sm:$0x3]
      %v509 = vld [vmem:[#allocation2 + $0x198] sm:$0xff]
      %v510 = vld [vmem:[#allocation2 + $0x1a0] sm:$0xff]
      %v511 = vld [vmem:[#allocation2 + $0x1a8] sm:$0x3]
      %v512 = vpack.c.bf16 %v459, %v458
      %v513 = vpack.c.bf16 %v462, %v461
      %v514 = vpack.c.bf16 %v465, %v464
      %v515 = vpack.c.bf16 %v468, %v467
      %v516 = vpack.c.bf16 %v471, %v470
      %v517 = vpack.c.bf16 %v474, %v473
      %v518 = vpack.c.bf16 %v477, %v476
      %v519 = vpack.c.bf16 %v480, %v479
      %v520 = vpack.c.bf16 %v483, %v482
      %v521 = vpack.c.bf16 %v486, %v485
      %v522 = vpack.c.bf16 %v489, %v488
      %v523 = vpack.c.bf16 %v492, %v491
      %v524 = vpack.c.bf16 %v495, %v494
      %v525 = vpack.c.bf16 %v498, %v497
      %v526 = vpack.c.bf16 %v501, %v500
      %v527 = vpack.c.bf16 %v504, %v503
      %528 = vst.msk [vmem:[#allocation3] sm:$0xff] %vm379, %v512
      %529 = vst.msk [vmem:[#allocation3 + $0x8] sm:$0xff] %vm379, %v513
      %530 = vst.msk [vmem:[#allocation3 + $0x10] sm:$0xff] %vm379, %v514
      %531 = vst.msk [vmem:[#allocation3 + $0x18] sm:$0xff] %vm379, %v515
      %532 = vst.msk [vmem:[#allocation3 + $0x20] sm:$0xff] %vm379, %v516
      %533 = vst.msk [vmem:[#allocation3 + $0x28] sm:$0xff] %vm379, %v517
      %534 = vst.msk [vmem:[#allocation3 + $0x30] sm:$0xff] %vm379, %v518
      %535 = vst.msk [vmem:[#allocation3 + $0x38] sm:$0xff] %vm379, %v519
      %536 = vst.msk [vmem:[#allocation3 + $0x40] sm:$0xff] %vm379, %v520
      %537 = vst.msk [vmem:[#allocation3 + $0x48] sm:$0xff] %vm379, %v521
      %538 = vst.msk [vmem:[#allocation3 + $0x50] sm:$0xff] %vm379, %v522
      %539 = vst.msk [vmem:[#allocation3 + $0x58] sm:$0xff] %vm379, %v523
      %540 = vst.msk [vmem:[#allocation3 + $0x60] sm:$0xff] %vm379, %v524
      %541 = vst.msk [vmem:[#allocation3 + $0x68] sm:$0xff] %vm379, %v525
      %542 = vst.msk [vmem:[#allocation3 + $0x70] sm:$0xff] %vm379, %v526
      %543 = vst.msk [vmem:[#allocation3 + $0x78] sm:$0xff] %vm379, %v527
      %vm592 = vcmask 1046528
      %v593 = vrot.slane %v458, 1
      %v594 = vrot.slane %v459, 1
      %v595 = vsel %vm592, %v593, %v594
      %v596 = vrot.slane %v460, 1
      %v597 = vsel %vm592, %v594, %v596
      %v598 = vrot.slane %v461, 1
      %v599 = vrot.slane %v462, 1
      %v600 = vsel %vm592, %v598, %v599
      %v601 = vrot.slane %v463, 1
      %v602 = vsel %vm592, %v599, %v601
      %v603 = vrot.slane %v464, 1
      %v604 = vrot.slane %v465, 1
      %v605 = vsel %vm592, %v603, %v604
      %v606 = vrot.slane %v466, 1
      %v607 = vsel %vm592, %v604, %v606
      %v608 = vrot.slane %v467, 1
      %v609 = vrot.slane %v468, 1
      %v610 = vsel %vm592, %v608, %v609
      %v611 = vrot.slane %v469, 1
      %v612 = vsel %vm592, %v609, %v611
      %v613 = vrot.slane %v470, 1
      %v614 = vrot.slane %v471, 1
      %v615 = vsel %vm592, %v613, %v614
      %v616 = vrot.slane %v472, 1
      %v617 = vsel %vm592, %v614, %v616
      %v618 = vrot.slane %v473, 1
      %v619 = vrot.slane %v474, 1
      %v620 = vsel %vm592, %v618, %v619
      %v621 = vrot.slane %v475, 1
      %v622 = vsel %vm592, %v619, %v621
      %v623 = vrot.slane %v476, 1
      %v624 = vrot.slane %v477, 1
      %v625 = vsel %vm592, %v623, %v624
      %v626 = vrot.slane %v478, 1
      %v627 = vsel %vm592, %v624, %v626
      %v628 = vrot.slane %v479, 1
      %v629 = vrot.slane %v480, 1
      %v630 = vsel %vm592, %v628, %v629
      %v631 = vrot.slane %v481, 1
      %v632 = vsel %vm592, %v629, %v631
      %v633 = vrot.slane %v482, 1
      %v634 = vrot.slane %v483, 1
      %v635 = vsel %vm592, %v633, %v634
      %v636 = vrot.slane %v484, 1
      %v637 = vsel %vm592, %v634, %v636
      %v638 = vrot.slane %v485, 1
      %v639 = vrot.slane %v486, 1
      %v640 = vsel %vm592, %v638, %v639
      %v641 = vrot.slane %v487, 1
      %v642 = vsel %vm592, %v639, %v641
      %v643 = vrot.slane %v488, 1
      %v644 = vrot.slane %v489, 1
      %v645 = vsel %vm592, %v643, %v644
      %v646 = vrot.slane %v490, 1
      %v647 = vsel %vm592, %v644, %v646
      %v648 = vrot.slane %v491, 1
      %v649 = vrot.slane %v492, 1
      %v650 = vsel %vm592, %v648, %v649
      %v651 = vrot.slane %v493, 1
      %v652 = vsel %vm592, %v649, %v651
      %v653 = vrot.slane %v494, 1
      %v654 = vrot.slane %v495, 1
      %v655 = vsel %vm592, %v653, %v654
      %v656 = vrot.slane %v496, 1
      %v657 = vsel %vm592, %v654, %v656
      %v658 = vrot.slane %v497, 1
      %v659 = vrot.slane %v498, 1
      %v660 = vsel %vm592, %v658, %v659
      %v661 = vrot.slane %v499, 1
      %v662 = vsel %vm592, %v659, %v661
      %v663 = vrot.slane %v500, 1
      %v664 = vrot.slane %v501, 1
      %v665 = vsel %vm592, %v663, %v664
      %v666 = vrot.slane %v502, 1
      %v667 = vsel %vm592, %v664, %v666
      %v668 = vrot.slane %v503, 1
      %v669 = vrot.slane %v504, 1
      %v670 = vsel %vm592, %v668, %v669
      %v671 = vrot.slane %v505, 1
      %v672 = vsel %vm592, %v669, %v671
      %v705 = vpack.c.bf16 %v597, %v595
      %v706 = vpack.c.bf16 %v602, %v600
      %v707 = vpack.c.bf16 %v607, %v605
      %v708 = vpack.c.bf16 %v612, %v610
      %v709 = vpack.c.bf16 %v617, %v615
      %v710 = vpack.c.bf16 %v622, %v620
      %v711 = vpack.c.bf16 %v627, %v625
      %v712 = vpack.c.bf16 %v632, %v630
      %v713 = vpack.c.bf16 %v637, %v635
      %v714 = vpack.c.bf16 %v642, %v640
      %v715 = vpack.c.bf16 %v647, %v645
      %v716 = vpack.c.bf16 %v652, %v650
      %v717 = vpack.c.bf16 %v657, %v655
      %v718 = vpack.c.bf16 %v662, %v660
      %v719 = vpack.c.bf16 %v667, %v665
      %v720 = vpack.c.bf16 %v672, %v670
      %737 = vrot.lane.b32.xlu0 %v705, 8
      %v738 = vpop.permute.xlu0 %737
      %739 = vrot.lane.b32.xlu0 %v706, 8
      %v740 = vpop.permute.xlu0 %739
      %741 = vrot.lane.b32.xlu0 %v707, 8
      %v742 = vpop.permute.xlu0 %741
      %743 = vrot.lane.b32.xlu0 %v708, 8
      %v744 = vpop.permute.xlu0 %743
      %745 = vrot.lane.b32.xlu0 %v709, 8
      %v746 = vpop.permute.xlu0 %745
      %747 = vrot.lane.b32.xlu0 %v710, 8
      %v748 = vpop.permute.xlu0 %747
      %749 = vrot.lane.b32.xlu0 %v711, 8
      %v750 = vpop.permute.xlu0 %749
      %751 = vrot.lane.b32.xlu0 %v712, 8
      %v752 = vpop.permute.xlu0 %751
      %753 = vrot.lane.b32.xlu0 %v713, 8
      %v754 = vpop.permute.xlu0 %753
      %755 = vrot.lane.b32.xlu0 %v714, 8
      %v756 = vpop.permute.xlu0 %755
      %757 = vrot.lane.b32.xlu0 %v715, 8
      %v758 = vpop.permute.xlu0 %757
      %759 = vrot.lane.b32.xlu0 %v716, 8
      %v760 = vpop.permute.xlu0 %759
      %761 = vrot.lane.b32.xlu0 %v717, 8
      %v762 = vpop.permute.xlu0 %761
      %763 = vrot.lane.b32.xlu0 %v718, 8
      %v764 = vpop.permute.xlu0 %763
      %765 = vrot.lane.b32.xlu0 %v719, 8
      %v766 = vpop.permute.xlu0 %765
      %767 = vrot.lane.b32.xlu0 %v720, 8
      %v768 = vpop.permute.xlu0 %767
      %vm785 = vcmask 130112
      %786 = vst.msk [vmem:[#allocation3] sm:$0xff] %vm785, %v738
      %787 = vst.msk [vmem:[#allocation3 + $0x8] sm:$0xff] %vm785, %v740
      %788 = vst.msk [vmem:[#allocation3 + $0x10] sm:$0xff] %vm785, %v742
      %789 = vst.msk [vmem:[#allocation3 + $0x18] sm:$0xff] %vm785, %v744
      %790 = vst.msk [vmem:[#allocation3 + $0x20] sm:$0xff] %vm785, %v746
      %791 = vst.msk [vmem:[#allocation3 + $0x28] sm:$0xff] %vm785, %v748
      %792 = vst.msk [vmem:[#allocation3 + $0x30] sm:$0xff] %vm785, %v750
      %793 = vst.msk [vmem:[#allocation3 + $0x38] sm:$0xff] %vm785, %v752
      %794 = vst.msk [vmem:[#allocation3 + $0x40] sm:$0xff] %vm785, %v754
      %795 = vst.msk [vmem:[#allocation3 + $0x48] sm:$0xff] %vm785, %v756
      %796 = vst.msk [vmem:[#allocation3 + $0x50] sm:$0xff] %vm785, %v758
      %797 = vst.msk [vmem:[#allocation3 + $0x58] sm:$0xff] %vm785, %v760
      %798 = vst.msk [vmem:[#allocation3 + $0x60] sm:$0xff] %vm785, %v762
      %799 = vst.msk [vmem:[#allocation3 + $0x68] sm:$0xff] %vm785, %v764
      %800 = vst.msk [vmem:[#allocation3 + $0x70] sm:$0xff] %vm785, %v766
      %801 = vst.msk [vmem:[#allocation3 + $0x78] sm:$0xff] %vm785, %v768
      %vm802 = vcmask 1045504
      %v803 = vrot.slane %v458, 2
      %v804 = vrot.slane %v459, 2
      %v805 = vsel %vm802, %v803, %v804
      %v806 = vrot.slane %v460, 2
      %v807 = vsel %vm802, %v804, %v806
      %v808 = vrot.slane %v461, 2
      %v809 = vrot.slane %v462, 2
      %v810 = vsel %vm802, %v808, %v809
      %v811 = vrot.slane %v463, 2
      %v812 = vsel %vm802, %v809, %v811
      %v813 = vrot.slane %v464, 2
      %v814 = vrot.slane %v465, 2
      %v815 = vsel %vm802, %v813, %v814
      %v816 = vrot.slane %v466, 2
      %v817 = vsel %vm802, %v814, %v816
      %v818 = vrot.slane %v467, 2
      %v819 = vrot.slane %v468, 2
      %v820 = vsel %vm802, %v818, %v819
      %v821 = vrot.slane %v469, 2
      %v822 = vsel %vm802, %v819, %v821
      %v823 = vrot.slane %v470, 2
      %v824 = vrot.slane %v471, 2
      %v825 = vsel %vm802, %v823, %v824
      %v826 = vrot.slane %v472, 2
      %v827 = vsel %vm802, %v824, %v826
      %v828 = vrot.slane %v473, 2
      %v829 = vrot.slane %v474, 2
      %v830 = vsel %vm802, %v828, %v829
      %v831 = vrot.slane %v475, 2
      %v832 = vsel %vm802, %v829, %v831
      %v833 = vrot.slane %v476, 2
      %v834 = vrot.slane %v477, 2
      %v835 = vsel %vm802, %v833, %v834
      %v836 = vrot.slane %v478, 2
      %v837 = vsel %vm802, %v834, %v836
      %v838 = vrot.slane %v479, 2
      %v839 = vrot.slane %v480, 2
      %v840 = vsel %vm802, %v838, %v839
      %v841 = vrot.slane %v481, 2
      %v842 = vsel %vm802, %v839, %v841
      %v843 = vrot.slane %v482, 2
      %v844 = vrot.slane %v483, 2
      %v845 = vsel %vm802, %v843, %v844
      %v846 = vrot.slane %v484, 2
      %v847 = vsel %vm802, %v844, %v846
      %v848 = vrot.slane %v485, 2
      %v849 = vrot.slane %v486, 2
      %v850 = vsel %vm802, %v848, %v849
      %v851 = vrot.slane %v487, 2
      %v852 = vsel %vm802, %v849, %v851
      %v853 = vrot.slane %v488, 2
      %v854 = vrot.slane %v489, 2
      %v855 = vsel %vm802, %v853, %v854
      %v856 = vrot.slane %v490, 2
      %v857 = vsel %vm802, %v854, %v856
      %v858 = vrot.slane %v491, 2
      %v859 = vrot.slane %v492, 2
      %v860 = vsel %vm802, %v858, %v859
      %v861 = vrot.slane %v493, 2
      %v862 = vsel %vm802, %v859, %v861
      %v863 = vrot.slane %v494, 2
      %v864 = vrot.slane %v495, 2
      %v865 = vsel %vm802, %v863, %v864
      %v866 = vrot.slane %v496, 2
      %v867 = vsel %vm802, %v864, %v866
      %v868 = vrot.slane %v497, 2
      %v869 = vrot.slane %v498, 2
      %v870 = vsel %vm802, %v868, %v869
      %v871 = vrot.slane %v499, 2
      %v872 = vsel %vm802, %v869, %v871
      %v873 = vrot.slane %v500, 2
      %v874 = vrot.slane %v501, 2
      %v875 = vsel %vm802, %v873, %v874
      %v876 = vrot.slane %v502, 2
      %v877 = vsel %vm802, %v874, %v876
      %v878 = vrot.slane %v503, 2
      %v879 = vrot.slane %v504, 2
      %v880 = vsel %vm802, %v878, %v879
      %v881 = vrot.slane %v505, 2
      %v882 = vsel %vm802, %v879, %v881
      %v915 = vpack.c.bf16 %v807, %v805
      %v916 = vpack.c.bf16 %v812, %v810
      %v917 = vpack.c.bf16 %v817, %v815
      %v918 = vpack.c.bf16 %v822, %v820
      %v919 = vpack.c.bf16 %v827, %v825
      %v920 = vpack.c.bf16 %v832, %v830
      %v921 = vpack.c.bf16 %v837, %v835
      %v922 = vpack.c.bf16 %v842, %v840
      %v923 = vpack.c.bf16 %v847, %v845
      %v924 = vpack.c.bf16 %v852, %v850
      %v925 = vpack.c.bf16 %v857, %v855
      %v926 = vpack.c.bf16 %v862, %v860
      %v927 = vpack.c.bf16 %v867, %v865
      %v928 = vpack.c.bf16 %v872, %v870
      %v929 = vpack.c.bf16 %v877, %v875
      %v930 = vpack.c.bf16 %v882, %v880
      %947 = vrot.lane.b32.xlu0 %v915, 16
      %v948 = vpop.permute.xlu0 %947
      %949 = vrot.lane.b32.xlu0 %v916, 16
      %v950 = vpop.permute.xlu0 %949
      %951 = vrot.lane.b32.xlu0 %v917, 16
      %v952 = vpop.permute.xlu0 %951
      %953 = vrot.lane.b32.xlu0 %v918, 16
      %v954 = vpop.permute.xlu0 %953
      %955 = vrot.lane.b32.xlu0 %v919, 16
      %v956 = vpop.permute.xlu0 %955
      %957 = vrot.lane.b32.xlu0 %v920, 16
      %v958 = vpop.permute.xlu0 %957
      %959 = vrot.lane.b32.xlu0 %v921, 16
      %v960 = vpop.permute.xlu0 %959
      %961 = vrot.lane.b32.xlu0 %v922, 16
      %v962 = vpop.permute.xlu0 %961
      %963 = vrot.lane.b32.xlu0 %v923, 16
      %v964 = vpop.permute.xlu0 %963
      %965 = vrot.lane.b32.xlu0 %v924, 16
      %v966 = vpop.permute.xlu0 %965
      %967 = vrot.lane.b32.xlu0 %v925, 16
      %v968 = vpop.permute.xlu0 %967
      %969 = vrot.lane.b32.xlu0 %v926, 16
      %v970 = vpop.permute.xlu0 %969
      %971 = vrot.lane.b32.xlu0 %v927, 16
      %v972 = vpop.permute.xlu0 %971
      %973 = vrot.lane.b32.xlu0 %v928, 16
      %v974 = vpop.permute.xlu0 %973
      %975 = vrot.lane.b32.xlu0 %v929, 16
      %v976 = vpop.permute.xlu0 %975
      %977 = vrot.lane.b32.xlu0 %v930, 16
      %v978 = vpop.permute.xlu0 %977
      %vm995 = vcmask 195712
      %996 = vst.msk [vmem:[#allocation3] sm:$0xff] %vm995, %v948
      %997 = vst.msk [vmem:[#allocation3 + $0x8] sm:$0xff] %vm995, %v950
      %998 = vst.msk [vmem:[#allocation3 + $0x10] sm:$0xff] %vm995, %v952
      %999 = vst.msk [vmem:[#allocation3 + $0x18] sm:$0xff] %vm995, %v954
      %1000 = vst.msk [vmem:[#allocation3 + $0x20] sm:$0xff] %vm995, %v956
      %1001 = vst.msk [vmem:[#allocation3 + $0x28] sm:$0xff] %vm995, %v958
      %1002 = vst.msk [vmem:[#allocation3 + $0x30] sm:$0xff] %vm995, %v960
      %1003 = vst.msk [vmem:[#allocation3 + $0x38] sm:$0xff] %vm995, %v962
      %1004 = vst.msk [vmem:[#allocation3 + $0x40] sm:$0xff] %vm995, %v964
      %1005 = vst.msk [vmem:[#allocation3 + $0x48] sm:$0xff] %vm995, %v966
      %1006 = vst.msk [vmem:[#allocation3 + $0x50] sm:$0xff] %vm995, %v968
      %1007 = vst.msk [vmem:[#allocation3 + $0x58] sm:$0xff] %vm995, %v970
      %1008 = vst.msk [vmem:[#allocation3 + $0x60] sm:$0xff] %vm995, %v972
      %1009 = vst.msk [vmem:[#allocation3 + $0x68] sm:$0xff] %vm995, %v974
      %1010 = vst.msk [vmem:[#allocation3 + $0x70] sm:$0xff] %vm995, %v976
      %1011 = vst.msk [vmem:[#allocation3 + $0x78] sm:$0xff] %vm995, %v978
      %v1012 = vpack.c.bf16 %v507, %v506
      %1029 = vrot.lane.b32.xlu0 %v513, 24
      %v1030 = vpop.permute.xlu0 %1029
      %1031 = vrot.lane.b32.xlu0 %v514, 24
      %v1032 = vpop.permute.xlu0 %1031
      %1033 = vrot.lane.b32.xlu0 %v515, 24
      %v1034 = vpop.permute.xlu0 %1033
      %1035 = vrot.lane.b32.xlu0 %v516, 24
      %v1036 = vpop.permute.xlu0 %1035
      %1037 = vrot.lane.b32.xlu0 %v517, 24
      %v1038 = vpop.permute.xlu0 %1037
      %1039 = vrot.lane.b32.xlu0 %v518, 24
      %v1040 = vpop.permute.xlu0 %1039
      %1041 = vrot.lane.b32.xlu0 %v519, 24
      %v1042 = vpop.permute.xlu0 %1041
      %1043 = vrot.lane.b32.xlu0 %v520, 24
      %v1044 = vpop.permute.xlu0 %1043
      %1045 = vrot.lane.b32.xlu0 %v521, 24
      %v1046 = vpop.permute.xlu0 %1045
      %1047 = vrot.lane.b32.xlu0 %v522, 24
      %v1048 = vpop.permute.xlu0 %1047
      %1049 = vrot.lane.b32.xlu0 %v523, 24
      %v1050 = vpop.permute.xlu0 %1049
      %1051 = vrot.lane.b32.xlu0 %v524, 24
      %v1052 = vpop.permute.xlu0 %1051
      %1053 = vrot.lane.b32.xlu0 %v525, 24
      %v1054 = vpop.permute.xlu0 %1053
      %1055 = vrot.lane.b32.xlu0 %v526, 24
      %v1056 = vpop.permute.xlu0 %1055
      %1057 = vrot.lane.b32.xlu0 %v527, 24
      %v1058 = vpop.permute.xlu0 %1057
      %1059 = vrot.lane.b32.xlu0 %v1012, 24
      %v1060 = vpop.permute.xlu0 %1059
      %vm1077 = vcmask 261312
      %1078 = vst.msk [vmem:[#allocation3] sm:$0xff] %vm1077, %v1030
      %1079 = vst.msk [vmem:[#allocation3 + $0x8] sm:$0xff] %vm1077, %v1032
      %1080 = vst.msk [vmem:[#allocation3 + $0x10] sm:$0xff] %vm1077, %v1034
      %1081 = vst.msk [vmem:[#allocation3 + $0x18] sm:$0xff] %vm1077, %v1036
      %1082 = vst.msk [vmem:[#allocation3 + $0x20] sm:$0xff] %vm1077, %v1038
      %1083 = vst.msk [vmem:[#allocation3 + $0x28] sm:$0xff] %vm1077, %v1040
      %1084 = vst.msk [vmem:[#allocation3 + $0x30] sm:$0xff] %vm1077, %v1042
      %1085 = vst.msk [vmem:[#allocation3 + $0x38] sm:$0xff] %vm1077, %v1044
      %1086 = vst.msk [vmem:[#allocation3 + $0x40] sm:$0xff] %vm1077, %v1046
      %1087 = vst.msk [vmem:[#allocation3 + $0x48] sm:$0xff] %vm1077, %v1048
      %1088 = vst.msk [vmem:[#allocation3 + $0x50] sm:$0xff] %vm1077, %v1050
      %1089 = vst.msk [vmem:[#allocation3 + $0x58] sm:$0xff] %vm1077, %v1052
      %1090 = vst.msk [vmem:[#allocation3 + $0x60] sm:$0xff] %vm1077, %v1054
      %1091 = vst.msk [vmem:[#allocation3 + $0x68] sm:$0xff] %vm1077, %v1056
      %1092 = vst.msk [vmem:[#allocation3 + $0x70] sm:$0xff] %vm1077, %v1058
      %1093 = vst.msk [vmem:[#allocation3 + $0x78] sm:$0xff] %vm1077, %v1060
      %v1097 = vrot.slane %v506, 1
      %v1098 = vrot.slane %v507, 1
      %v1099 = vsel %vm592, %v1097, %v1098
      %v1100 = vrot.slane %v508, 1
      %v1101 = vsel %vm592, %v1098, %v1100
      %v1104 = vpack.c.bf16 %v1101, %v1099
      %1106 = vrot.lane.b32.xlu0 %v706, 32
      %v1107 = vpop.permute.xlu0 %1106
      %1108 = vrot.lane.b32.xlu0 %v707, 32
      %v1109 = vpop.permute.xlu0 %1108
      %1110 = vrot.lane.b32.xlu0 %v708, 32
      %v1111 = vpop.permute.xlu0 %1110
      %1112 = vrot.lane.b32.xlu0 %v709, 32
      %v1113 = vpop.permute.xlu0 %1112
      %1114 = vrot.lane.b32.xlu0 %v710, 32
      %v1115 = vpop.permute.xlu0 %1114
      %1116 = vrot.lane.b32.xlu0 %v711, 32
      %v1117 = vpop.permute.xlu0 %1116
      %1118 = vrot.lane.b32.xlu0 %v712, 32
      %v1119 = vpop.permute.xlu0 %1118
      %1120 = vrot.lane.b32.xlu0 %v713, 32
      %v1121 = vpop.permute.xlu0 %1120
      %1122 = vrot.lane.b32.xlu0 %v714, 32
      %v1123 = vpop.permute.xlu0 %1122
      %1124 = vrot.lane.b32.xlu0 %v715, 32
      %v1125 = vpop.permute.xlu0 %1124
      %1126 = vrot.lane.b32.xlu0 %v716, 32
      %v1127 = vpop.permute.xlu0 %1126
      %1128 = vrot.lane.b32.xlu0 %v717, 32
      %v1129 = vpop.permute.xlu0 %1128
      %1130 = vrot.lane.b32.xlu0 %v718, 32
      %v1131 = vpop.permute.xlu0 %1130
      %1132 = vrot.lane.b32.xlu0 %v719, 32
      %v1133 = vpop.permute.xlu0 %1132
      %1134 = vrot.lane.b32.xlu0 %v720, 32
      %v1135 = vpop.permute.xlu0 %1134
      %1136 = vrot.lane.b32.xlu0 %v1104, 32
      %v1137 = vpop.permute.xlu0 %1136
      %vm1154 = vcmask 326912
      %1155 = vst.msk [vmem:[#allocation3] sm:$0xff] %vm1154, %v1107
      %1156 = vst.msk [vmem:[#allocation3 + $0x8] sm:$0xff] %vm1154, %v1109
      %1157 = vst.msk [vmem:[#allocation3 + $0x10] sm:$0xff] %vm1154, %v1111
      %1158 = vst.msk [vmem:[#allocation3 + $0x18] sm:$0xff] %vm1154, %v1113
      %1159 = vst.msk [vmem:[#allocation3 + $0x20] sm:$0xff] %vm1154, %v1115
      %1160 = vst.msk [vmem:[#allocation3 + $0x28] sm:$0xff] %vm1154, %v1117
      %1161 = vst.msk [vmem:[#allocation3 + $0x30] sm:$0xff] %vm1154, %v1119
      %1162 = vst.msk [vmem:[#allocation3 + $0x38] sm:$0xff] %vm1154, %v1121
      %1163 = vst.msk [vmem:[#allocation3 + $0x40] sm:$0xff] %vm1154, %v1123
      %1164 = vst.msk [vmem:[#allocation3 + $0x48] sm:$0xff] %vm1154, %v1125
      %1165 = vst.msk [vmem:[#allocation3 + $0x50] sm:$0xff] %vm1154, %v1127
      %1166 = vst.msk [vmem:[#allocation3 + $0x58] sm:$0xff] %vm1154, %v1129
      %1167 = vst.msk [vmem:[#allocation3 + $0x60] sm:$0xff] %vm1154, %v1131
      %1168 = vst.msk [vmem:[#allocation3 + $0x68] sm:$0xff] %vm1154, %v1133
      %1169 = vst.msk [vmem:[#allocation3 + $0x70] sm:$0xff] %vm1154, %v1135
      %1170 = vst.msk [vmem:[#allocation3 + $0x78] sm:$0xff] %vm1154, %v1137
      %v1171 = vrot.slane %v506, 2
      %v1172 = vrot.slane %v507, 2
      %v1173 = vsel %vm802, %v1171, %v1172
      %v1174 = vrot.slane %v508, 2
      %v1175 = vsel %vm802, %v1172, %v1174
      %v1178 = vpack.c.bf16 %v1175, %v1173
      %1180 = vrot.lane.b32.xlu0 %v916, 40
      %v1181 = vpop.permute.xlu0 %1180
      %1182 = vrot.lane.b32.xlu0 %v917, 40
      %v1183 = vpop.permute.xlu0 %1182
      %1184 = vrot.lane.b32.xlu0 %v918, 40
      %v1185 = vpop.permute.xlu0 %1184
      %1186 = vrot.lane.b32.xlu0 %v919, 40
      %v1187 = vpop.permute.xlu0 %1186
      %1188 = vrot.lane.b32.xlu0 %v920, 40
      %v1189 = vpop.permute.xlu0 %1188
      %1190 = vrot.lane.b32.xlu0 %v921, 40
      %v1191 = vpop.permute.xlu0 %1190
      %1192 = vrot.lane.b32.xlu0 %v922, 40
      %v1193 = vpop.permute.xlu0 %1192
      %1194 = vrot.lane.b32.xlu0 %v923, 40
      %v1195 = vpop.permute.xlu0 %1194
      %1196 = vrot.lane.b32.xlu0 %v924, 40
      %v1197 = vpop.permute.xlu0 %1196
      %1198 = vrot.lane.b32.xlu0 %v925, 40
      %v1199 = vpop.permute.xlu0 %1198
      %1200 = vrot.lane.b32.xlu0 %v926, 40
      %v1201 = vpop.permute.xlu0 %1200
      %1202 = vrot.lane.b32.xlu0 %v927, 40
      %v1203 = vpop.permute.xlu0 %1202
      %1204 = vrot.lane.b32.xlu0 %v928, 40
      %v1205 = vpop.permute.xlu0 %1204
      %1206 = vrot.lane.b32.xlu0 %v929, 40
      %v1207 = vpop.permute.xlu0 %1206
      %1208 = vrot.lane.b32.xlu0 %v930, 40
      %v1209 = vpop.permute.xlu0 %1208
      %1210 = vrot.lane.b32.xlu0 %v1178, 40
      %v1211 = vpop.permute.xlu0 %1210
      %vm1228 = vcmask 392512
      %1229 = vst.msk [vmem:[#allocation3] sm:$0xff] %vm1228, %v1181
      %1230 = vst.msk [vmem:[#allocation3 + $0x8] sm:$0xff] %vm1228, %v1183
      %1231 = vst.msk [vmem:[#allocation3 + $0x10] sm:$0xff] %vm1228, %v1185
      %1232 = vst.msk [vmem:[#allocation3 + $0x18] sm:$0xff] %vm1228, %v1187
      %1233 = vst.msk [vmem:[#allocation3 + $0x20] sm:$0xff] %vm1228, %v1189
      %1234 = vst.msk [vmem:[#allocation3 + $0x28] sm:$0xff] %vm1228, %v1191
      %1235 = vst.msk [vmem:[#allocation3 + $0x30] sm:$0xff] %vm1228, %v1193
      %1236 = vst.msk [vmem:[#allocation3 + $0x38] sm:$0xff] %vm1228, %v1195
      %1237 = vst.msk [vmem:[#allocation3 + $0x40] sm:$0xff] %vm1228, %v1197
      %1238 = vst.msk [vmem:[#allocation3 + $0x48] sm:$0xff] %vm1228, %v1199
      %1239 = vst.msk [vmem:[#allocation3 + $0x50] sm:$0xff] %vm1228, %v1201
      %1240 = vst.msk [vmem:[#allocation3 + $0x58] sm:$0xff] %vm1228, %v1203
      %1241 = vst.msk [vmem:[#allocation3 + $0x60] sm:$0xff] %vm1228, %v1205
      %1242 = vst.msk [vmem:[#allocation3 + $0x68] sm:$0xff] %vm1228, %v1207
      %1243 = vst.msk [vmem:[#allocation3 + $0x70] sm:$0xff] %vm1228, %v1209
      %1244 = vst.msk [vmem:[#allocation3 + $0x78] sm:$0xff] %vm1228, %v1211
      %v1245 = vpack.c.bf16 %v510, %v509
      %1247 = vrot.lane.b32.xlu0 %v514, 48
      %v1248 = vpop.permute.xlu0 %1247
      %1249 = vrot.lane.b32.xlu0 %v515, 48
      %v1250 = vpop.permute.xlu0 %1249
      %1251 = vrot.lane.b32.xlu0 %v516, 48
      %v1252 = vpop.permute.xlu0 %1251
      %1253 = vrot.lane.b32.xlu0 %v517, 48
      %v1254 = vpop.permute.xlu0 %1253
      %1255 = vrot.lane.b32.xlu0 %v518, 48
      %v1256 = vpop.permute.xlu0 %1255
      %1257 = vrot.lane.b32.xlu0 %v519, 48
      %v1258 = vpop.permute.xlu0 %1257
      %1259 = vrot.lane.b32.xlu0 %v520, 48
      %v1260 = vpop.permute.xlu0 %1259
      %1261 = vrot.lane.b32.xlu0 %v521, 48
      %v1262 = vpop.permute.xlu0 %1261
      %1263 = vrot.lane.b32.xlu0 %v522, 48
      %v1264 = vpop.permute.xlu0 %1263
      %1265 = vrot.lane.b32.xlu0 %v523, 48
      %v1266 = vpop.permute.xlu0 %1265
      %1267 = vrot.lane.b32.xlu0 %v524, 48
      %v1268 = vpop.permute.xlu0 %1267
      %1269 = vrot.lane.b32.xlu0 %v525, 48
      %v1270 = vpop.permute.xlu0 %1269
      %1271 = vrot.lane.b32.xlu0 %v526, 48
      %v1272 = vpop.permute.xlu0 %1271
      %1273 = vrot.lane.b32.xlu0 %v527, 48
      %v1274 = vpop.permute.xlu0 %1273
      %1275 = vrot.lane.b32.xlu0 %v1012, 48
      %v1276 = vpop.permute.xlu0 %1275
      %1277 = vrot.lane.b32.xlu0 %v1245, 48
      %v1278 = vpop.permute.xlu0 %1277
      %vm1295 = vcmask 458112
      %1296 = vst.msk [vmem:[#allocation3] sm:$0xff] %vm1295, %v1248
      %1297 = vst.msk [vmem:[#allocation3 + $0x8] sm:$0xff] %vm1295, %v1250
      %1298 = vst.msk [vmem:[#allocation3 + $0x10] sm:$0xff] %vm1295, %v1252
      %1299 = vst.msk [vmem:[#allocation3 + $0x18] sm:$0xff] %vm1295, %v1254
      %1300 = vst.msk [vmem:[#allocation3 + $0x20] sm:$0xff] %vm1295, %v1256
      %1301 = vst.msk [vmem:[#allocation3 + $0x28] sm:$0xff] %vm1295, %v1258
      %1302 = vst.msk [vmem:[#allocation3 + $0x30] sm:$0xff] %vm1295, %v1260
      %1303 = vst.msk [vmem:[#allocation3 + $0x38] sm:$0xff] %vm1295, %v1262
      %1304 = vst.msk [vmem:[#allocation3 + $0x40] sm:$0xff] %vm1295, %v1264
      %1305 = vst.msk [vmem:[#allocation3 + $0x48] sm:$0xff] %vm1295, %v1266
      %1306 = vst.msk [vmem:[#allocation3 + $0x50] sm:$0xff] %vm1295, %v1268
      %1307 = vst.msk [vmem:[#allocation3 + $0x58] sm:$0xff] %vm1295, %v1270
      %1308 = vst.msk [vmem:[#allocation3 + $0x60] sm:$0xff] %vm1295, %v1272
      %1309 = vst.msk [vmem:[#allocation3 + $0x68] sm:$0xff] %vm1295, %v1274
      %1310 = vst.msk [vmem:[#allocation3 + $0x70] sm:$0xff] %vm1295, %v1276
      %1311 = vst.msk [vmem:[#allocation3 + $0x78] sm:$0xff] %vm1295, %v1278
      %v1315 = vrot.slane %v509, 1
      %v1316 = vrot.slane %v510, 1
      %v1317 = vsel %vm592, %v1315, %v1316
      %v1318 = vrot.slane %v511, 1
      %v1319 = vsel %vm592, %v1316, %v1318
      %v1322 = vpack.c.bf16 %v1319, %v1317
      %1324 = vrot.lane.b32.xlu0 %v707, 56
      %v1325 = vpop.permute.xlu0 %1324
      %1326 = vrot.lane.b32.xlu0 %v708, 56
      %v1327 = vpop.permute.xlu0 %1326
      %1328 = vrot.lane.b32.xlu0 %v709, 56
      %v1329 = vpop.permute.xlu0 %1328
      %1330 = vrot.lane.b32.xlu0 %v710, 56
      %v1331 = vpop.permute.xlu0 %1330
      %1332 = vrot.lane.b32.xlu0 %v711, 56
      %v1333 = vpop.permute.xlu0 %1332
      %1334 = vrot.lane.b32.xlu0 %v712, 56
      %v1335 = vpop.permute.xlu0 %1334
      %1336 = vrot.lane.b32.xlu0 %v713, 56
      %v1337 = vpop.permute.xlu0 %1336
      %1338 = vrot.lane.b32.xlu0 %v714, 56
      %v1339 = vpop.permute.xlu0 %1338
      %1340 = vrot.lane.b32.xlu0 %v715, 56
      %v1341 = vpop.permute.xlu0 %1340
      %1342 = vrot.lane.b32.xlu0 %v716, 56
      %v1343 = vpop.permute.xlu0 %1342
      %1344 = vrot.lane.b32.xlu0 %v717, 56
      %v1345 = vpop.permute.xlu0 %1344
      %1346 = vrot.lane.b32.xlu0 %v718, 56
      %v1347 = vpop.permute.xlu0 %1346
      %1348 = vrot.lane.b32.xlu0 %v719, 56
      %v1349 = vpop.permute.xlu0 %1348
      %1350 = vrot.lane.b32.xlu0 %v720, 56
      %v1351 = vpop.permute.xlu0 %1350
      %1352 = vrot.lane.b32.xlu0 %v1104, 56
      %v1353 = vpop.permute.xlu0 %1352
      %1354 = vrot.lane.b32.xlu0 %v1322, 56
      %v1355 = vpop.permute.xlu0 %1354
      %vm1372 = vcmask 523712
      %1373 = vst.msk [vmem:[#allocation3] sm:$0xff] %vm1372, %v1325
      %1374 = vst.msk [vmem:[#allocation3 + $0x8] sm:$0xff] %vm1372, %v1327
      %1375 = vst.msk [vmem:[#allocation3 + $0x10] sm:$0xff] %vm1372, %v1329
      %1376 = vst.msk [vmem:[#allocation3 + $0x18] sm:$0xff] %vm1372, %v1331
      %1377 = vst.msk [vmem:[#allocation3 + $0x20] sm:$0xff] %vm1372, %v1333
      %1378 = vst.msk [vmem:[#allocation3 + $0x28] sm:$0xff] %vm1372, %v1335
      %1379 = vst.msk [vmem:[#allocation3 + $0x30] sm:$0xff] %vm1372, %v1337
      %1380 = vst.msk [vmem:[#allocation3 + $0x38] sm:$0xff] %vm1372, %v1339
      %1381 = vst.msk [vmem:[#allocation3 + $0x40] sm:$0xff] %vm1372, %v1341
      %1382 = vst.msk [vmem:[#allocation3 + $0x48] sm:$0xff] %vm1372, %v1343
      %1383 = vst.msk [vmem:[#allocation3 + $0x50] sm:$0xff] %vm1372, %v1345
      %1384 = vst.msk [vmem:[#allocation3 + $0x58] sm:$0xff] %vm1372, %v1347
      %1385 = vst.msk [vmem:[#allocation3 + $0x60] sm:$0xff] %vm1372, %v1349
      %1386 = vst.msk [vmem:[#allocation3 + $0x68] sm:$0xff] %vm1372, %v1351
      %1387 = vst.msk [vmem:[#allocation3 + $0x70] sm:$0xff] %vm1372, %v1353
      %1388 = vst.msk [vmem:[#allocation3 + $0x78] sm:$0xff] %vm1372, %v1355
      %v1389 = vrot.slane %v509, 2
      %v1390 = vrot.slane %v510, 2
      %v1391 = vsel %vm802, %v1389, %v1390
      %v1392 = vrot.slane %v511, 2
      %v1393 = vsel %vm802, %v1390, %v1392
      %v1396 = vpack.c.bf16 %v1393, %v1391
      %1398 = vrot.lane.b32.xlu0 %v917, 64
      %v1399 = vpop.permute.xlu0 %1398
      %1400 = vrot.lane.b32.xlu0 %v918, 64
      %v1401 = vpop.permute.xlu0 %1400
      %1402 = vrot.lane.b32.xlu0 %v919, 64
      %v1403 = vpop.permute.xlu0 %1402
      %1404 = vrot.lane.b32.xlu0 %v920, 64
      %v1405 = vpop.permute.xlu0 %1404
      %1406 = vrot.lane.b32.xlu0 %v921, 64
      %v1407 = vpop.permute.xlu0 %1406
      %1408 = vrot.lane.b32.xlu0 %v922, 64
      %v1409 = vpop.permute.xlu0 %1408
      %1410 = vrot.lane.b32.xlu0 %v923, 64
      %v1411 = vpop.permute.xlu0 %1410
      %1412 = vrot.lane.b32.xlu0 %v924, 64
      %v1413 = vpop.permute.xlu0 %1412
      %1414 = vrot.lane.b32.xlu0 %v925, 64
      %v1415 = vpop.permute.xlu0 %1414
      %1416 = vrot.lane.b32.xlu0 %v926, 64
      %v1417 = vpop.permute.xlu0 %1416
      %1418 = vrot.lane.b32.xlu0 %v927, 64
      %v1419 = vpop.permute.xlu0 %1418
      %1420 = vrot.lane.b32.xlu0 %v928, 64
      %v1421 = vpop.permute.xlu0 %1420
      %1422 = vrot.lane.b32.xlu0 %v929, 64
      %v1423 = vpop.permute.xlu0 %1422
      %1424 = vrot.lane.b32.xlu0 %v930, 64
      %v1425 = vpop.permute.xlu0 %1424
      %1426 = vrot.lane.b32.xlu0 %v1178, 64
      %v1427 = vpop.permute.xlu0 %1426
      %1428 = vrot.lane.b32.xlu0 %v1396, 64
      %v1429 = vpop.permute.xlu0 %1428
      %vm1446 = vcmask 589312
      %1447 = vst.msk [vmem:[#allocation3] sm:$0xff] %vm1446, %v1399
      %1448 = vst.msk [vmem:[#allocation3 + $0x8] sm:$0xff] %vm1446, %v1401
      %1449 = vst.msk [vmem:[#allocation3 + $0x10] sm:$0xff] %vm1446, %v1403
      %1450 = vst.msk [vmem:[#allocation3 + $0x18] sm:$0xff] %vm1446, %v1405
      %1451 = vst.msk [vmem:[#allocation3 + $0x20] sm:$0xff] %vm1446, %v1407
      %1452 = vst.msk [vmem:[#allocation3 + $0x28] sm:$0xff] %vm1446, %v1409
      %1453 = vst.msk [vmem:[#allocation3 + $0x30] sm:$0xff] %vm1446, %v1411
      %1454 = vst.msk [vmem:[#allocation3 + $0x38] sm:$0xff] %vm1446, %v1413
      %1455 = vst.msk [vmem:[#allocation3 + $0x40] sm:$0xff] %vm1446, %v1415
      %1456 = vst.msk [vmem:[#allocation3 + $0x48] sm:$0xff] %vm1446, %v1417
      %1457 = vst.msk [vmem:[#allocation3 + $0x50] sm:$0xff] %vm1446, %v1419
      %1458 = vst.msk [vmem:[#allocation3 + $0x58] sm:$0xff] %vm1446, %v1421
      %1459 = vst.msk [vmem:[#allocation3 + $0x60] sm:$0xff] %vm1446, %v1423
      %1460 = vst.msk [vmem:[#allocation3 + $0x68] sm:$0xff] %vm1446, %v1425
      %1461 = vst.msk [vmem:[#allocation3 + $0x70] sm:$0xff] %vm1446, %v1427
      %1462 = vst.msk [vmem:[#allocation3 + $0x78] sm:$0xff] %vm1446, %v1429
      %v1463 = vld [vmem:[#allocation3] sm:$0xff]
      %v1464 = vld [vmem:[#allocation3 + $0x8] sm:$0xff]
      %v1465 = vld [vmem:[#allocation3 + $0x10] sm:$0xff]
      %v1466 = vld [vmem:[#allocation3 + $0x18] sm:$0xff]
      %v1467 = vld [vmem:[#allocation3 + $0x20] sm:$0xff]
      %v1468 = vld [vmem:[#allocation3 + $0x28] sm:$0xff]
      %v1469 = vld [vmem:[#allocation3 + $0x30] sm:$0xff]
      %v1470 = vld [vmem:[#allocation3 + $0x38] sm:$0xff]
      %v1471 = vld [vmem:[#allocation3 + $0x40] sm:$0xff]
      %v1472 = vld [vmem:[#allocation3 + $0x48] sm:$0xff]
      %v1473 = vld [vmem:[#allocation3 + $0x50] sm:$0xff]
      %v1474 = vld [vmem:[#allocation3 + $0x58] sm:$0xff]
      %v1475 = vld [vmem:[#allocation3 + $0x60] sm:$0xff]
      %v1476 = vld [vmem:[#allocation3 + $0x68] sm:$0xff]
      %v1477 = vld [vmem:[#allocation3 + $0x70] sm:$0xff]
      %v1478 = vld [vmem:[#allocation3 + $0x78] sm:$0xff]
      %v1479 = vld [vmem:[%s1] sm:$0xf]
      %v1480 = vld [vmem:[%s1 + $0x4] sm:$0xf]
      %v1481 = vld [vmem:[%s1 + $0x8] sm:$0xf]
      %v1482 = vld [vmem:[%s1 + $0xc] sm:$0xf]
      %v1483 = vld [vmem:[%s1 + $0x10] sm:$0xf]
      %v1484 = vld [vmem:[%s1 + $0x14] sm:$0xf]
      %v1485 = vld [vmem:[%s1 + $0x18] sm:$0xf]
      %v1486 = vld [vmem:[%s1 + $0x1c] sm:$0xf]
      %v1487 = vld [vmem:[%s1 + $0x20] sm:$0xf]
      %v1497 = vunpack.c.l.b16 %v1479
      %v1498 = vunpack.c.l.b16 %v1480
      %v1499 = vunpack.c.l.b16 %v1481
      %v1500 = vunpack.c.l.b16 %v1482
      %v1501 = vunpack.c.l.b16 %v1483
      %v1502 = vunpack.c.l.b16 %v1484
      %v1503 = vunpack.c.l.b16 %v1485
      %v1504 = vunpack.c.l.b16 %v1486
      %v1505 = vunpack.c.l.b16 %v1487
      %v1506 = vpack.c.b16 %v1498, %v1497
      %v1507 = vpack.c.b16 %v1500, %v1499
      %v1508 = vpack.c.b16 %v1502, %v1501
      %v1509 = vpack.c.b16 %v1504, %v1503
      %v1510 = vpack.c.b16 %v1505, %v1505
      %vm1515 = vcmask 588800
      %v1517 = vsel %vm1515, %v1463, 0
      %v1520 = vsel %vm1515, %v1464, 0
      %v1523 = vsel %vm1515, %v1465, 0
      %v1526 = vsel %vm1515, %v1466, 0
      %v1529 = vsel %vm1515, %v1467, 0
      %v1532 = vsel %vm1515, %v1468, 0
      %v1535 = vsel %vm1515, %v1469, 0
      %v1538 = vsel %vm1515, %v1470, 0
      %v1541 = vsel %vm1515, %v1471, 0
      %v1544 = vsel %vm1515, %v1472, 0
      %v1547 = vsel %vm1515, %v1473, 0
      %v1550 = vsel %vm1515, %v1474, 0
      %v1553 = vsel %vm1515, %v1475, 0
      %v1556 = vsel %vm1515, %v1476, 0
      %v1559 = vsel %vm1515, %v1477, 0
      %v1562 = vsel %vm1515, %v1478, 0
      %vm1564 = vcmask 1043456
      %v1566 = vsel %vm1564, %v1510, 0
      %1568 = vmatprep.subr.bf16.mxu0 0
      %1569 = vmatpush1.bf16.msra.mxu0 %v1506
      %1570 = vmatprep.subr.bf16.mxu0 0
      %1571 = vmatpush1.bf16.msra.mxu0 %v1507
      %1572 = vmatprep.subr.bf16.mxu0 0
      %1573 = vmatpush1.bf16.msra.mxu0 %v1508
      %1574 = vmatprep.subr.bf16.mxu0 0
      %1575 = vmatpush1.bf16.msra.mxu0 %v1509
      %1576 = vmatprep.subr.bf16.mxu0 0
      %1577 = vmatpush1.bf16.msra.mxu0 %v1566
      %1578 = vmatprep.subr.bf16.mxu0 0
      %1579 = vmatpush1.bf16.msra.mxu0 0
      %1580 = vmatprep.subr.bf16.mxu0 0
      %1581 = vmatpush1.bf16.msra.mxu0 0
      %1582 = vmatprep.subr.bf16.mxu0 0
      %1583 = vmatpush1.bf16.msra.mxu0 0
      %1584 = vmatprep.subr.bf16.mxu0 0
      %1585 = vmatpush1.bf16.msra.mxu0 0
      %1586 = vmatprep.subr.bf16.mxu0 0
      %1587 = vmatpush1.bf16.msra.mxu0 0
      %1588 = vmatprep.subr.bf16.mxu0 0
      %1589 = vmatpush1.bf16.msra.mxu0 0
      %1590 = vmatprep.subr.bf16.mxu0 0
      %1591 = vmatpush1.bf16.msra.mxu0 0
      %1592 = vmatprep.subr.bf16.mxu0 0
      %1593 = vmatpush1.bf16.msra.mxu0 0
      %1594 = vmatprep.subr.bf16.mxu0 0
      %1595 = vmatpush1.bf16.msra.mxu0 0
      %1596 = vmatprep.subr.bf16.mxu0 0
      %1597 = vmatpush1.bf16.msra.mxu0 0
      %1598 = vmatprep.subr.bf16.mxu0 0
      %1599 = vmatpush1.bf16.msra.mxu0 0
      %1600 = vmatprep.mubr.bf16.mxu0 0
      %1601 = vmatmul.mubr.bf16.gmra.mrb[0].mxu0 %v1517
      %v1602 = vpop.f32.mrb[0].mxu0
      %v1603 = vadd.f32 0.0, %v1602
      %v1604 = vpop.f32.mrb[0].mxu0
      %v1605 = vpop.f32.mrb[0].mxu0
      %v1606 = vadd.f32 0.0, %v1605
      %v1607 = vpop.f32.mrb[0].mxu0
      %1608 = vmatprep.mubr.bf16.mxu0 0
      %1609 = vmatmul.mubr.bf16.gmra.mrb[0].mxu0 %v1520
      %v1610 = vpop.f32.mrb[0].mxu0
      %v1611 = vadd.f32 0.0, %v1610
      %v1612 = vpop.f32.mrb[0].mxu0
      %v1613 = vpop.f32.mrb[0].mxu0
      %v1614 = vadd.f32 0.0, %v1613
      %v1615 = vpop.f32.mrb[0].mxu0
      %1616 = vmatprep.mubr.bf16.mxu0 0
      %1617 = vmatmul.mubr.bf16.gmra.mrb[0].mxu0 %v1523
      %v1618 = vpop.f32.mrb[0].mxu0
      %v1619 = vadd.f32 0.0, %v1618
      %v1620 = vpop.f32.mrb[0].mxu0
      %v1621 = vpop.f32.mrb[0].mxu0
      %v1622 = vadd.f32 0.0, %v1621
      %v1623 = vpop.f32.mrb[0].mxu0
      %1624 = vmatprep.mubr.bf16.mxu0 0
      %1625 = vmatmul.mubr.bf16.gmra.mrb[0].mxu0 %v1526
      %v1626 = vpop.f32.mrb[0].mxu0
      %v1627 = vadd.f32 0.0, %v1626
      %v1628 = vpop.f32.mrb[0].mxu0
      %v1629 = vpop.f32.mrb[0].mxu0
      %v1630 = vadd.f32 0.0, %v1629
      %v1631 = vpop.f32.mrb[0].mxu0
      %1632 = vmatprep.mubr.bf16.mxu0 0
      %1633 = vmatmul.mubr.bf16.gmra.mrb[0].mxu0 %v1529
      %v1634 = vpop.f32.mrb[0].mxu0
      %v1635 = vadd.f32 0.0, %v1634
      %v1636 = vpop.f32.mrb[0].mxu0
      %v1637 = vpop.f32.mrb[0].mxu0
      %v1638 = vadd.f32 0.0, %v1637
      %v1639 = vpop.f32.mrb[0].mxu0
      %1640 = vmatprep.mubr.bf16.mxu0 0
      %1641 = vmatmul.mubr.bf16.gmra.mrb[0].mxu0 %v1532
      %v1642 = vpop.f32.mrb[0].mxu0
      %v1643 = vadd.f32 0.0, %v1642
      %v1644 = vpop.f32.mrb[0].mxu0
      %v1645 = vpop.f32.mrb[0].mxu0
      %v1646 = vadd.f32 0.0, %v1645
      %v1647 = vpop.f32.mrb[0].mxu0
      %1648 = vmatprep.mubr.bf16.mxu0 0
      %1649 = vmatmul.mubr.bf16.gmra.mrb[0].mxu0 %v1535
      %v1650 = vpop.f32.mrb[0].mxu0
      %v1651 = vadd.f32 0.0, %v1650
      %v1652 = vpop.f32.mrb[0].mxu0
      %v1653 = vpop.f32.mrb[0].mxu0
      %v1654 = vadd.f32 0.0, %v1653
      %v1655 = vpop.f32.mrb[0].mxu0
      %1656 = vmatprep.mubr.bf16.mxu0 0
      %1657 = vmatmul.mubr.bf16.gmra.mrb[0].mxu0 %v1538
      %v1658 = vpop.f32.mrb[0].mxu0
      %v1659 = vadd.f32 0.0, %v1658
      %v1660 = vpop.f32.mrb[0].mxu0
      %v1661 = vpop.f32.mrb[0].mxu0
      %v1662 = vadd.f32 0.0, %v1661
      %v1663 = vpop.f32.mrb[0].mxu0
      %1664 = vmatprep.mubr.bf16.mxu0 0
      %1665 = vmatmul.mubr.bf16.gmra.mrb[0].mxu0 %v1541
      %v1666 = vpop.f32.mrb[0].mxu0
      %v1667 = vadd.f32 0.0, %v1666
      %v1668 = vpop.f32.mrb[0].mxu0
      %v1669 = vpop.f32.mrb[0].mxu0
      %v1670 = vadd.f32 0.0, %v1669
      %v1671 = vpop.f32.mrb[0].mxu0
      %1672 = vmatprep.mubr.bf16.mxu0 0
      %1673 = vmatmul.mubr.bf16.gmra.mrb[0].mxu0 %v1544
      %v1674 = vpop.f32.mrb[0].mxu0
      %v1675 = vadd.f32 0.0, %v1674
      %v1676 = vpop.f32.mrb[0].mxu0
      %v1677 = vpop.f32.mrb[0].mxu0
      %v1678 = vadd.f32 0.0, %v1677
      %v1679 = vpop.f32.mrb[0].mxu0
      %1680 = vmatprep.mubr.bf16.mxu0 0
      %1681 = vmatmul.mubr.bf16.gmra.mrb[0].mxu0 %v1547
      %v1682 = vpop.f32.mrb[0].mxu0
      %v1683 = vadd.f32 0.0, %v1682
      %v1684 = vpop.f32.mrb[0].mxu0
      %v1685 = vpop.f32.mrb[0].mxu0
      %v1686 = vadd.f32 0.0, %v1685
      %v1687 = vpop.f32.mrb[0].mxu0
      %1688 = vmatprep.mubr.bf16.mxu0 0
      %1689 = vmatmul.mubr.bf16.gmra.mrb[0].mxu0 %v1550
      %v1690 = vpop.f32.mrb[0].mxu0
      %v1691 = vadd.f32 0.0, %v1690
      %v1692 = vpop.f32.mrb[0].mxu0
      %v1693 = vpop.f32.mrb[0].mxu0
      %v1694 = vadd.f32 0.0, %v1693
      %v1695 = vpop.f32.mrb[0].mxu0
      %1696 = vmatprep.mubr.bf16.mxu0 0
      %1697 = vmatmul.mubr.bf16.gmra.mrb[0].mxu0 %v1553
      %v1698 = vpop.f32.mrb[0].mxu0
      %v1699 = vadd.f32 0.0, %v1698
      %v1700 = vpop.f32.mrb[0].mxu0
      %v1701 = vpop.f32.mrb[0].mxu0
      %v1702 = vadd.f32 0.0, %v1701
      %v1703 = vpop.f32.mrb[0].mxu0
      %1704 = vmatprep.mubr.bf16.mxu0 0
      %1705 = vmatmul.mubr.bf16.gmra.mrb[0].mxu0 %v1556
      %v1706 = vpop.f32.mrb[0].mxu0
      %v1707 = vadd.f32 0.0, %v1706
      %v1708 = vpop.f32.mrb[0].mxu0
      %v1709 = vpop.f32.mrb[0].mxu0
      %v1710 = vadd.f32 0.0, %v1709
      %v1711 = vpop.f32.mrb[0].mxu0
      %1712 = vmatprep.mubr.bf16.mxu0 0
      %1713 = vmatmul.mubr.bf16.gmra.mrb[0].mxu0 %v1559
      %v1714 = vpop.f32.mrb[0].mxu0
      %v1715 = vadd.f32 0.0, %v1714
      %v1716 = vpop.f32.mrb[0].mxu0
      %v1717 = vpop.f32.mrb[0].mxu0
      %v1718 = vadd.f32 0.0, %v1717
      %v1719 = vpop.f32.mrb[0].mxu0
      %1720 = vmatprep.mubr.bf16.mxu0 0
      %1721 = vmatmul.mubr.bf16.gmra.mrb[0].mxu0 %v1562
      %v1722 = vpop.f32.mrb[0].mxu0
      %v1723 = vadd.f32 0.0, %v1722
      %v1724 = vpop.f32.mrb[0].mxu0
      %v1725 = vpop.f32.mrb[0].mxu0
      %v1726 = vadd.f32 0.0, %v1725
      %v1727 = vpop.f32.mrb[0].mxu0
      %1728 = vdwg.mxu0
      %1729 = vst.msk [vmem:[%s231] sm:$0xff] %vm379, %v1603
      %1730 = vst.msk [vmem:[%s231 + $0x8] sm:$0xff] %vm379, %v1606
      %1731 = vst.msk [vmem:[%s231 + $0x10] sm:$0xff] %vm379, %v1611
      %1732 = vst.msk [vmem:[%s231 + $0x18] sm:$0xff] %vm379, %v1614
      %1733 = vst.msk [vmem:[%s231 + $0x20] sm:$0xff] %vm379, %v1619
      %1734 = vst.msk [vmem:[%s231 + $0x28] sm:$0xff] %vm379, %v1622
      %1735 = vst.msk [vmem:[%s231 + $0x30] sm:$0xff] %vm379, %v1627
      %1736 = vst.msk [vmem:[%s231 + $0x38] sm:$0xff] %vm379, %v1630
      %1737 = vst.msk [vmem:[%s231 + $0x40] sm:$0xff] %vm379, %v1635
      %1738 = vst.msk [vmem:[%s231 + $0x48] sm:$0xff] %vm379, %v1638
      %1739 = vst.msk [vmem:[%s231 + $0x50] sm:$0xff] %vm379, %v1643
      %1740 = vst.msk [vmem:[%s231 + $0x58] sm:$0xff] %vm379, %v1646
      %1741 = vst.msk [vmem:[%s231 + $0x60] sm:$0xff] %vm379, %v1651
      %1742 = vst.msk [vmem:[%s231 + $0x68] sm:$0xff] %vm379, %v1654
      %1743 = vst.msk [vmem:[%s231 + $0x70] sm:$0xff] %vm379, %v1659
      %1744 = vst.msk [vmem:[%s231 + $0x78] sm:$0xff] %vm379, %v1662
      %1745 = vst.msk [vmem:[%s231 + $0x80] sm:$0xff] %vm379, %v1667
      %1746 = vst.msk [vmem:[%s231 + $0x88] sm:$0xff] %vm379, %v1670
      %1747 = vst.msk [vmem:[%s231 + $0x90] sm:$0xff] %vm379, %v1675
      %1748 = vst.msk [vmem:[%s231 + $0x98] sm:$0xff] %vm379, %v1678
      %1749 = vst.msk [vmem:[%s231 + $0xa0] sm:$0xff] %vm379, %v1683
      %1750 = vst.msk [vmem:[%s231 + $0xa8] sm:$0xff] %vm379, %v1686
      %1751 = vst.msk [vmem:[%s231 + $0xb0] sm:$0xff] %vm379, %v1691
      %1752 = vst.msk [vmem:[%s231 + $0xb8] sm:$0xff] %vm379, %v1694
      %1753 = vst.msk [vmem:[%s231 + $0xc0] sm:$0xff] %vm379, %v1699
      %1754 = vst.msk [vmem:[%s231 + $0xc8] sm:$0xff] %vm379, %v1702
      %1755 = vst.msk [vmem:[%s231 + $0xd0] sm:$0xff] %vm379, %v1707
      %1756 = vst.msk [vmem:[%s231 + $0xd8] sm:$0xff] %vm379, %v1710
      %1757 = vst.msk [vmem:[%s231 + $0xe0] sm:$0xff] %vm379, %v1715
      %1758 = vst.msk [vmem:[%s231 + $0xe8] sm:$0xff] %vm379, %v1718
      %1759 = vst.msk [vmem:[%s231 + $0xf0] sm:$0xff] %vm379, %v1723
      %1760 = vst.msk [vmem:[%s231 + $0xf8] sm:$0xff] %vm379, %v1726
      %v1761 = vsel %vm379, %v1603, 0.0
      %v1762 = vsel %vm379, %v1606, 0.0
      %v1763 = vadd.f32 %v1761, %v1762
      %v1764 = vsel %vm379, %v1611, 0.0
      %v1765 = vadd.f32 %v1763, %v1764
      %v1766 = vsel %vm379, %v1614, 0.0
      %v1767 = vadd.f32 %v1765, %v1766
      %v1768 = vsel %vm379, %v1619, 0.0
      %v1769 = vadd.f32 %v1767, %v1768
      %v1770 = vsel %vm379, %v1622, 0.0
      %v1771 = vadd.f32 %v1769, %v1770
      %v1772 = vsel %vm379, %v1627, 0.0
      %v1773 = vadd.f32 %v1771, %v1772
      %v1774 = vsel %vm379, %v1630, 0.0
      %v1775 = vadd.f32 %v1773, %v1774
      %v1776 = vsel %vm379, %v1635, 0.0
      %v1777 = vadd.f32 %v1775, %v1776
      %v1778 = vsel %vm379, %v1638, 0.0
      %v1779 = vadd.f32 %v1777, %v1778
      %v1780 = vsel %vm379, %v1643, 0.0
      %v1781 = vadd.f32 %v1779, %v1780
      %v1782 = vsel %vm379, %v1646, 0.0
      %v1783 = vadd.f32 %v1781, %v1782
      %v1784 = vsel %vm379, %v1651, 0.0
      %v1785 = vadd.f32 %v1783, %v1784
      %v1786 = vsel %vm379, %v1654, 0.0
      %v1787 = vadd.f32 %v1785, %v1786
      %v1788 = vsel %vm379, %v1659, 0.0
      %v1789 = vadd.f32 %v1787, %v1788
      %v1790 = vsel %vm379, %v1662, 0.0
      %v1791 = vadd.f32 %v1789, %v1790
      %v1792 = vsel %vm379, %v1667, 0.0
      %v1793 = vadd.f32 %v1791, %v1792
      %v1794 = vsel %vm379, %v1670, 0.0
      %v1795 = vadd.f32 %v1793, %v1794
      %v1796 = vsel %vm379, %v1675, 0.0
      %v1797 = vadd.f32 %v1795, %v1796
      %v1798 = vsel %vm379, %v1678, 0.0
      %v1799 = vadd.f32 %v1797, %v1798
      %v1800 = vsel %vm379, %v1683, 0.0
      %v1801 = vadd.f32 %v1799, %v1800
      %v1802 = vsel %vm379, %v1686, 0.0
      %v1803 = vadd.f32 %v1801, %v1802
      %v1804 = vsel %vm379, %v1691, 0.0
      %v1805 = vadd.f32 %v1803, %v1804
      %v1806 = vsel %vm379, %v1694, 0.0
      %v1807 = vadd.f32 %v1805, %v1806
      %v1808 = vsel %vm379, %v1699, 0.0
      %v1809 = vadd.f32 %v1807, %v1808
      %v1810 = vsel %vm379, %v1702, 0.0
      %v1811 = vadd.f32 %v1809, %v1810
      %v1812 = vsel %vm379, %v1707, 0.0
      %v1813 = vadd.f32 %v1811, %v1812
      %v1814 = vsel %vm379, %v1710, 0.0
      %v1815 = vadd.f32 %v1813, %v1814
      %v1816 = vsel %vm379, %v1715, 0.0
      %v1817 = vadd.f32 %v1815, %v1816
      %v1818 = vsel %vm379, %v1718, 0.0
      %v1819 = vadd.f32 %v1817, %v1818
      %v1820 = vsel %vm379, %v1723, 0.0
      %v1821 = vadd.f32 %v1819, %v1820
      %v1822 = vsel %vm379, %v1726, 0.0
      %v1823 = vadd.f32 %v1821, %v1822
      %v1824 = vrot.slane %v1823, 4
      %v1825 = vadd.f32 %v1823, %v1824
      %v1826 = vrot.slane %v1825, 2
      %v1827 = vadd.f32 %v1825, %v1826
      %v1828 = vrot.slane %v1827, 1
      %v1829 = vadd.f32 %v1827, %v1828
      %1830 = vst.msk [vmem:[%s235] sm:$0x1] %vm388, %v1829
      %v1831 = vmul.f32 %v1603, %v1603
      %v1832 = vmul.f32 %v1606, %v1606
      %v1833 = vmul.f32 %v1611, %v1611
      %v1834 = vmul.f32 %v1614, %v1614
      %v1835 = vmul.f32 %v1619, %v1619
      %v1836 = vmul.f32 %v1622, %v1622
      %v1837 = vmul.f32 %v1627, %v1627
      %v1838 = vmul.f32 %v1630, %v1630
      %v1839 = vmul.f32 %v1635, %v1635
      %v1840 = vmul.f32 %v1638, %v1638
      %v1841 = vmul.f32 %v1643, %v1643
      %v1842 = vmul.f32 %v1646, %v1646
      %v1843 = vmul.f32 %v1651, %v1651
      %v1844 = vmul.f32 %v1654, %v1654
      %v1845 = vmul.f32 %v1659, %v1659
      %v1846 = vmul.f32 %v1662, %v1662
      %v1847 = vmul.f32 %v1667, %v1667
      %v1848 = vmul.f32 %v1670, %v1670
      %v1849 = vmul.f32 %v1675, %v1675
      %v1850 = vmul.f32 %v1678, %v1678
      %v1851 = vmul.f32 %v1683, %v1683
      %v1852 = vmul.f32 %v1686, %v1686
      %v1853 = vmul.f32 %v1691, %v1691
      %v1854 = vmul.f32 %v1694, %v1694
      %v1855 = vmul.f32 %v1699, %v1699
      %v1856 = vmul.f32 %v1702, %v1702
      %v1857 = vmul.f32 %v1707, %v1707
      %v1858 = vmul.f32 %v1710, %v1710
      %v1859 = vmul.f32 %v1715, %v1715
      %v1860 = vmul.f32 %v1718, %v1718
      %v1861 = vmul.f32 %v1723, %v1723
      %v1862 = vmul.f32 %v1726, %v1726
      %v1863 = vsel %vm379, %v1831, 0.0
      %v1864 = vsel %vm379, %v1832, 0.0
      %v1865 = vadd.f32 %v1863, %v1864
      %v1866 = vsel %vm379, %v1833, 0.0
      %v1867 = vadd.f32 %v1865, %v1866
      %v1868 = vsel %vm379, %v1834, 0.0
      %v1869 = vadd.f32 %v1867, %v1868
      %v1870 = vsel %vm379, %v1835, 0.0
      %v1871 = vadd.f32 %v1869, %v1870
      %v1872 = vsel %vm379, %v1836, 0.0
      %v1873 = vadd.f32 %v1871, %v1872
      %v1874 = vsel %vm379, %v1837, 0.0
      %v1875 = vadd.f32 %v1873, %v1874
      %v1876 = vsel %vm379, %v1838, 0.0
      %v1877 = vadd.f32 %v1875, %v1876
      %v1878 = vsel %vm379, %v1839, 0.0
      %v1879 = vadd.f32 %v1877, %v1878
      %v1880 = vsel %vm379, %v1840, 0.0
      %v1881 = vadd.f32 %v1879, %v1880
      %v1882 = vsel %vm379, %v1841, 0.0
      %v1883 = vadd.f32 %v1881, %v1882
      %v1884 = vsel %vm379, %v1842, 0.0
      %v1885 = vadd.f32 %v1883, %v1884
      %v1886 = vsel %vm379, %v1843, 0.0
      %v1887 = vadd.f32 %v1885, %v1886
      %v1888 = vsel %vm379, %v1844, 0.0
      %v1889 = vadd.f32 %v1887, %v1888
      %v1890 = vsel %vm379, %v1845, 0.0
      %v1891 = vadd.f32 %v1889, %v1890
      %v1892 = vsel %vm379, %v1846, 0.0
      %v1893 = vadd.f32 %v1891, %v1892
      %v1894 = vsel %vm379, %v1847, 0.0
      %v1895 = vadd.f32 %v1893, %v1894
      %v1896 = vsel %vm379, %v1848, 0.0
      %v1897 = vadd.f32 %v1895, %v1896
      %v1898 = vsel %vm379, %v1849, 0.0
      %v1899 = vadd.f32 %v1897, %v1898
      %v1900 = vsel %vm379, %v1850, 0.0
      %v1901 = vadd.f32 %v1899, %v1900
      %v1902 = vsel %vm379, %v1851, 0.0
      %v1903 = vadd.f32 %v1901, %v1902
      %v1904 = vsel %vm379, %v1852, 0.0
      %v1905 = vadd.f32 %v1903, %v1904
      %v1906 = vsel %vm379, %v1853, 0.0
      %v1907 = vadd.f32 %v1905, %v1906
      %v1908 = vsel %vm379, %v1854, 0.0
      %v1909 = vadd.f32 %v1907, %v1908
      %v1910 = vsel %vm379, %v1855, 0.0
      %v1911 = vadd.f32 %v1909, %v1910
      %v1912 = vsel %vm379, %v1856, 0.0
      %v1913 = vadd.f32 %v1911, %v1912
      %v1914 = vsel %vm379, %v1857, 0.0
      %v1915 = vadd.f32 %v1913, %v1914
      %v1916 = vsel %vm379, %v1858, 0.0
      %v1917 = vadd.f32 %v1915, %v1916
      %v1918 = vsel %vm379, %v1859, 0.0
      %v1919 = vadd.f32 %v1917, %v1918
      %v1920 = vsel %vm379, %v1860, 0.0
      %v1921 = vadd.f32 %v1919, %v1920
      %v1922 = vsel %vm379, %v1861, 0.0
      %v1923 = vadd.f32 %v1921, %v1922
      %v1924 = vsel %vm379, %v1862, 0.0
      %v1925 = vadd.f32 %v1923, %v1924
      %v1926 = vrot.slane %v1925, 4
      %v1927 = vadd.f32 %v1925, %v1926
      %v1928 = vrot.slane %v1927, 2
      %v1929 = vadd.f32 %v1927, %v1928
      %v1930 = vrot.slane %v1929, 1
      %v1931 = vadd.f32 %v1929, %v1930
      %1932 = vst.msk [vmem:[%s235 + $0x1] sm:$0x1] %vm388, %v1931
      %p1933 = scmp.lt.s32.totalorder %s17, 1
      %s1934 = scalar_select %p1933, %s17, 1
      %s1935 = smul.addr %s1934, 32
      %s1936 = smul.addr %s1935, 8
      %s1937 = scalar_lea.vmem %s4, %s1936
      %p1938 = scmp.lt.s32.totalorder %s17, 1
      %s1939 = scalar_select %p1938, %s17, 1
      %s1940 = smul.addr %s1939, 2
      %s1941 = scalar_lea.vmem %s5, %s1940
      // Predicated region
      $region37: #{plain_block_forward.4} parent=35 // pred_check
        %p1942 = pneg %p124
      $region38: #{plain_block_forward.4} parent=35 // pred_check_branch
        %1944 = sbr.rel (%p1942) target = $region40
      $region39: #{plain_block_forward.4} parent=35 // pred_region
        _
      $region40: #{plain_block_forward.4} parent=35 // pred_fallthru
        _
      // Predicated region
      $region41: #{plain_block_forward.4} parent=35 // pred_check
        %p1945 = pneg %p150
      $region42: #{plain_block_forward.4} parent=35 // pred_check_branch
        %1947 = sbr.rel (%p1945) target = $region44
      $region43: #{plain_block_forward.4} parent=35 // pred_region
        _
      $region44: #{plain_block_forward.4} parent=35 // pred_fallthru
        _
    $region36: #{plain_block_forward.4} parent=5 // pred_fallthru
      _
    %p1948 = scmp.le.s32.totalorder 2, %s12
    // Predicated region
    $region45: #{plain_block_forward.4} parent=5 // pred_check
      %p1949 = pneg %p1948
    $region46: #{plain_block_forward.4} parent=5 // pred_check_branch
      %1951 = sbr.rel (%p1949) target = $region48
    $region47: #{plain_block_forward.4} parent=5 // pred_region
      %s1952 = ssub.s32 %s12, 2
      // Predicated region
      $region49: #{plain_block_forward.4} parent=47 // pred_check
        %p1953 = pneg %p130
      $region50: #{plain_block_forward.4} parent=47 // pred_check_branch
        %1955 = sbr.rel (%p1953) target = $region52
      $region51: #{plain_block_forward.4} parent=47 // pred_region
        %p1956 = scmp.lt.s32.totalorder %s18, 1
        %s1957 = scalar_select %p1956, %s18, 1
        %s1958 = smul.addr %s1957, 32
        %s1959 = smul.addr %s1958, 8
        %s1960 = scalar_lea.vmem %s4, %s1959
      $region52: #{plain_block_forward.4} parent=47 // pred_fallthru
        _
      // Predicated region
      $region53: #{plain_block_forward.4} parent=47 // pred_check
        %p1961 = pneg %p156
      $region54: #{plain_block_forward.4} parent=47 // pred_check_branch
        %1963 = sbr.rel (%p1961) target = $region56
      $region55: #{plain_block_forward.4} parent=47 // pred_region
        %p1964 = scmp.lt.s32.totalorder %s18, 1
        %s1965 = scalar_select %p1964, %s18, 1
        %s1966 = smul.addr %s1965, 2
        %s1967 = scalar_lea.vmem %s5, %s1966
      $region56: #{plain_block_forward.4} parent=47 // pred_fallthru
        _
    $region48: #{plain_block_forward.4} parent=5 // pred_fallthru
      _
  $region6: #{plain_block_forward.4} parent=0 // loop_footer
    %s16 = sadd.s32 1, %s12
  $region7: #{plain_block_forward.4} parent=0 // loop_footer_branch
    %11 = sbr.rel target = $region3
  $region8: #{plain_block_forward.4} parent=0 // loop_exit
    _

</llo_original>
